<compile_context>
chip_gen: v7x
topology: tpu7x:2x2x1
jax: 0.10.0
libtpu: 0.0.40
codegen_flags: <defaults>
</compile_context>

<pallas_src>
import functools

import jax
import jax.numpy as jnp
from jax.experimental import pallas as pl
from jax.experimental.pallas import tpu as pltpu


# ----------------------------- glue helpers ---------------------------------

def _fake_quant(w, bits):
    qmax = 2.0 ** (bits - 1) - 1.0
    s = jnp.maximum(jnp.max(jnp.abs(w)), 1e-8) / qmax
    return jnp.clip(jnp.round(w / s), -qmax, qmax) * s


def _fold_bn(gamma, beta, mean, var, eps=1e-5):
    scale = gamma / jnp.sqrt(var + eps)
    bias = beta - mean * scale
    return scale, bias


def _vmem_limit_bytes():
    # 128 MiB physical on v5e/v6e, 64 MiB on v7x -> leave headroom.
    try:
        cap = int(pltpu.get_tpu_info().vmem_capacity_bytes)
    except Exception:
        cap = 64 * 1024 * 1024
    return int(min(cap * 3 // 4, 96 * 1024 * 1024))


_MW = 8        # sublane(W)-axis halo margin in the padded scratch (8-aligned)
_ROW_TILE = 8  # output rows per unrolled depthwise / projection chunk


# ----------------------------- the fused kernel ------------------------------

def _mbconv_kernel(*refs, k, stride, H, W, Ho, Wo, pad, expand, use_res,
                   cin, chid, cout):
    if expand:
        (x_ref, wexp_ref, b1_ref, wdw_ref, b2_ref,
         wse1_ref, bse1_ref, wse2_ref, bse2_ref, wproj_ref, b3_ref,
         o_ref, hpad_ref, hid_ref) = refs
    else:
        (x_ref, wdw_ref, b2_ref,
         wse1_ref, bse1_ref, wse2_ref, bse2_ref, wproj_ref, b3_ref,
         o_ref, hpad_ref, hid_ref) = refs

    C = chid
    p = pad
    mw = _MW

    # ---- zero ONLY the halo border of the padded scratch (the interior is
    #      fully overwritten below) -> removes a full-buffer VMEM store. ----
    if p > 0:
        zrow = jnp.zeros((p, W + 2 * mw, C), jnp.float32)
        hpad_ref[0:p, :, :] = zrow
        hpad_ref[p + H:p + H + p, :, :] = zrow
        zcol = jnp.zeros((H, p, C), jnp.float32)
        hpad_ref[p:p + H, mw - p:mw, :] = zcol
        hpad_ref[p:p + H, mw + W:mw + W + p, :] = zcol

    # ---- expand 1x1 conv + folded BN + Swish, written into the interior ----
    x = x_ref[0].astype(jnp.float32)                        # (H, W, Cin)
    if expand:
        b1 = b1_ref[...].reshape(1, 1, C)
        if cin <= 32:
            # tiny K: VPU broadcast-FMA beats an MXU dot whose K pads to 128+
            we = wexp_ref[...]                              # (Cin, Chid) f32
            h = jnp.broadcast_to(b1, (H, W, C))
            for c in range(cin):
                h = h + x[:, :, c:c + 1] * we[c].reshape(1, 1, C)
        else:
            hb = jnp.dot(x.reshape(H * W, cin).astype(jnp.bfloat16),
                         wexp_ref[...].astype(jnp.bfloat16),
                         preferred_element_type=jnp.float32)
            h = hb.reshape(H, W, C) + b1
        h = h * jax.nn.sigmoid(h)                           # Swish
        hpad_ref[p:p + H, mw:mw + W, :] = h
    else:
        hpad_ref[p:p + H, mw:mw + W, :] = x

    # ---- depthwise kxk (stride folded into the tap reads) + BN + Swish,
    #      tiled over output-row chunks so the accumulator stays vreg-sized;
    #      taps are read straight from the scratch Ref (no whole-ref load).
    #      SE average-pool sums accumulated on the side. ----
    wd = wdw_ref[...]                                       # (k, k, C)
    b2 = b2_ref[...].reshape(1, 1, C)
    Wd = (Wo - 1) * stride + 1                              # dense column span
    pool = jnp.zeros((1, C), jnp.float32)
    n_chunks = (Ho + _ROW_TILE - 1) // _ROW_TILE
    for t in range(n_chunks):
        r0 = t * _ROW_TILE
        rows = min(_ROW_TILE, Ho - r0)
        acc = jnp.zeros((rows, Wd, C), jnp.float32)
        for kh in range(k):
            for kw in range(k):
                rstart = r0 * stride + kh
                cstart = mw - p + kw
                if stride == 1:
                    tap = hpad_ref[rstart:rstart + rows, cstart:cstart + Wd, :]
                else:
                    # strided read along H (cheap, leading axis); the W stride
                    # is handled once per chunk below, not per tap.
                    tap = hpad_ref[pl.ds(rstart, rows, stride=stride),
                                   cstart:cstart + Wd, :]
                acc = acc + tap * wd[kh, kw].reshape(1, 1, C)
        if stride > 1:
            acc = acc[:, ::stride, :]                       # single compaction
        y = acc + b2
        y = y * jax.nn.sigmoid(y)                           # Swish
        hid_ref[r0:r0 + rows, :, :] = y
        pool = pool + jnp.sum(y, axis=(0, 1)).reshape(1, C)

    # ---- SE gate: pooled -> FC -> Swish -> FC -> Sigmoid (tiny; VPU/XLU) ----
    pooled = pool * (1.0 / float(Ho * Wo))                  # (1, C)
    z = jnp.sum(wse1_ref[...] * pooled, axis=-1, keepdims=True) + bse1_ref[...]
    z = z * jax.nn.sigmoid(z)                               # (red, 1)
    g = jnp.sum(wse2_ref[...] * z, axis=0, keepdims=True) + bse2_ref[...]
    g = jax.nn.sigmoid(g).reshape(1, 1, C)                  # (1, 1, C)

    # ---- SE-gated 1x1 projection + folded BN (+ residual); bf16 MXU operands
    #      with f32 accumulation, chunked over the same output-row tiles. ----
    wp = wproj_ref[...]                                     # (Chid, Cout) bf16
    b3 = b3_ref[...]                                        # (1, Cout) f32
    for t in range(n_chunks):
        r0 = t * _ROW_TILE
        rows = min(_ROW_TILE, Ho - r0)
        xg = hid_ref[r0:r0 + rows, :, :] * g                # (rows, Wo, C)
        yb = jnp.dot(xg.reshape(rows * Wo, C).astype(jnp.bfloat16), wp,
                     preferred_element_type=jnp.float32)
        yb = (yb + b3).reshape(rows, Wo, cout)
        if use_res:
            yb = yb + x[r0:r0 + rows, :, :]                 # stride==1, Cin==Cout
        o_ref[:, r0:r0 + rows, :, :] = yb[None].astype(o_ref.dtype)


# ----------------------------- wrapper ---------------------------------------

def quantized_mbconv(params, x_nchw, *, in_c, out_c, k, s, e_r):
    use_res = (s == 1 and in_c == out_c)
    expand = (e_r != 1)
    x = jnp.transpose(x_nchw, (0, 2, 3, 1))                 # NCHW -> NHWC
    N, H, W, Cin = x.shape
    Chid = params["w_dw"].shape[-1]
    Cout = params["w_proj"].shape[-1]
    red = params["w_se1"].shape[-1]
    p = (k - 1) // 2
    assert p <= _MW
    Ho = (H + 2 * p - k) // s + 1
    Wo = (W + 2 * p - k) // s + 1
    f32 = jnp.float32

    # Fold BN scales into the (already fake-quantized) conv weights; the
    # projection weight is handed to the MXU in bf16.
    w_dw_eff = (params["w_dw"] * params["bn2_scale"]).astype(f32)
    b2 = params["bn2_bias"].reshape(1, Chid).astype(f32)
    w_proj_eff = (params["w_proj"] * params["bn3_scale"][None, :]).astype(jnp.bfloat16)
    b3 = params["bn3_bias"].reshape(1, Cout).astype(f32)
    w_se1_t = params["w_se1"].T.astype(f32)                 # (red, Chid)
    b_se1 = params["b_se1"].reshape(red, 1).astype(f32)
    w_se2 = params["w_se2"].astype(f32)                     # (red, Chid)
    b_se2 = params["b_se2"].reshape(1, Chid).astype(f32)

    args = [x]
    in_specs = [pl.BlockSpec((1, H, W, Cin), lambda n: (n, 0, 0, 0))]
    if expand:
        w_exp_eff = (params["w_exp"] * params["bn1_scale"][None, :]).astype(f32)
        b1 = params["bn1_bias"].reshape(1, Chid).astype(f32)
        args += [w_exp_eff, b1]
        in_specs += [pl.BlockSpec((Cin, Chid), lambda n: (0, 0)),
                     pl.BlockSpec((1, Chid), lambda n: (0, 0))]
    args += [w_dw_eff, b2, w_se1_t, b_se1, w_se2, b_se2, w_proj_eff, b3]
    in_specs += [
        pl.BlockSpec((k, k, Chid), lambda n: (0, 0, 0)),
        pl.BlockSpec((1, Chid), lambda n: (0, 0)),
        pl.BlockSpec((red, Chid), lambda n: (0, 0)),
        pl.BlockSpec((red, 1), lambda n: (0, 0)),
        pl.BlockSpec((red, Chid), lambda n: (0, 0)),
        pl.BlockSpec((1, Chid), lambda n: (0, 0)),
        pl.BlockSpec((Chid, Cout), lambda n: (0, 0)),
        pl.BlockSpec((1, Cout), lambda n: (0, 0)),
    ]

    kernel = functools.partial(
        _mbconv_kernel, k=k, stride=s, H=H, W=W, Ho=Ho, Wo=Wo, pad=p,
        expand=expand, use_res=use_res, cin=Cin, chid=Chid, cout=Cout)

    out = pl.pallas_call(
        kernel,
        out_shape=jax.ShapeDtypeStruct((N, Ho, Wo, Cout), x.dtype),
        grid=(N,),
        in_specs=in_specs,
        out_specs=pl.BlockSpec((1, Ho, Wo, Cout), lambda n: (n, 0, 0, 0)),
        scratch_shapes=[
            pltpu.VMEM((H + 2 * p, W + 2 * _MW, Chid), jnp.float32),  # padded hidden
            pltpu.VMEM((Ho, Wo, Chid), jnp.float32),                  # dw output
        ],
        compiler_params=pltpu.CompilerParams(
            dimension_semantics=("parallel",),
            vmem_limit_bytes=_vmem_limit_bytes()),
    )(*args)
    return jnp.transpose(out, (0, 3, 1, 2))                 # NHWC -> NCHW


# ----------------------------- pure-JAX reference ----------------------------

def reference(params, x_nchw, *, in_c, out_c, k, s, e_r):
    use_res = (s == 1 and in_c == out_c)
    x = jnp.transpose(x_nchw, (0, 2, 3, 1))
    h = x
    if e_r != 1:
        y = jnp.einsum("nhwc,cd->nhwd", h, params["w_exp"])
        y = y * params["bn1_scale"] + params["bn1_bias"]
        h = y * jax.nn.sigmoid(y)
    p = (k - 1) // 2
    xp = jnp.pad(h, ((0, 0), (p, p), (p, p), (0, 0)))
    N, H, W, C = h.shape
    H1, W1 = H + 2 * p - k + 1, W + 2 * p - k + 1
    acc = jnp.zeros((N, H1, W1, C), jnp.float32)
    for kh in range(k):
        for kw in range(k):
            acc = acc + xp[:, kh:kh + H1, kw:kw + W1, :] * params["w_dw"][kh, kw]
    y = acc * params["bn2_scale"] + params["bn2_bias"]
    h = (y * jax.nn.sigmoid(y))[:, ::s, ::s, :]
    pooled = jnp.mean(h, axis=(1, 2))
    z = pooled @ params["w_se1"] + params["b_se1"]
    z = z * jax.nn.sigmoid(z)
    g = jax.nn.sigmoid(z @ params["w_se2"] + params["b_se2"])
    h = h * g[:, None, None, :]
    y = jnp.einsum("nhwc,cd->nhwd", h, params["w_proj"])
    y = y * params["bn3_scale"] + params["bn3_bias"]
    if use_res:
        y = y + x
    return jnp.transpose(y, (0, 3, 1, 2))


# ----------------------------- main ------------------------------------------

def _init_bn(key, c):
    k1, k2, k3, k4 = jax.random.split(key, 4)
    gamma = 1.0 + 0.1 * jax.random.normal(k1, (c,), jnp.float32)
    beta = 0.1 * jax.random.normal(k2, (c,), jnp.float32)
    mean = 0.1 * jax.random.normal(k3, (c,), jnp.float32)
    var = 1.0 + 0.1 * jax.random.uniform(k4, (c,), jnp.float32)
    return _fold_bn(gamma, beta, mean, var)


if __name__ == "__main__":
    N, in_c, H, W = 2, 4, 16, 16
    out_c, k, s, e_r, se_r, bits, act_bits = 4, 3, 1, 4, 0.25, 8, 8
    hidden_c = in_c * e_r
    reduced_dim = max(1, int(in_c * se_r))

    keys = jax.random.split(jax.random.PRNGKey(0), 12)
    x = jax.random.normal(keys[0], (N, in_c, H, W), jnp.float32)

    bn1_scale, bn1_bias = _init_bn(keys[4], hidden_c)
    bn2_scale, bn2_bias = _init_bn(keys[5], hidden_c)
    bn3_scale, bn3_bias = _init_bn(keys[6], out_c)

    params = {
        # quantized conv weights (quantization applied once, shared by ref)
        "w_exp":  _fake_quant(jax.random.normal(keys[1], (in_c, hidden_c), jnp.float32)
                              / jnp.sqrt(in_c), bits),
        "w_dw":   _fake_quant(jax.random.normal(keys[2], (k, k, hidden_c), jnp.float32)
                              / float(k), bits),
        "w_proj": _fake_quant(jax.random.normal(keys[3], (hidden_c, out_c), jnp.float32)
                              / jnp.sqrt(hidden_c), bits),
        # folded BatchNorm affines
        "bn1_scale": bn1_scale, "bn1_bias": bn1_bias,
        "bn2_scale": bn2_scale, "bn2_bias": bn2_bias,
        "bn3_scale": bn3_scale, "bn3_bias": bn3_bias,
        # Squeeze-Excitation (plain nn.Conv2d with bias, not quantized)
        "w_se1": jax.random.normal(keys[7], (hidden_c, reduced_dim), jnp.float32)
                 / jnp.sqrt(hidden_c),
        "b_se1": 0.1 * jax.random.normal(keys[8], (reduced_dim,), jnp.float32),
        "w_se2": jax.random.normal(keys[9], (reduced_dim, hidden_c), jnp.float32)
                 / jnp.sqrt(reduced_dim),
        "b_se2": 0.1 * jax.random.normal(keys[10], (hidden_c,), jnp.float32),
    }

    out = quantized_mbconv(params, x, in_c=in_c, out_c=out_c, k=k, s=s, e_r=e_r)
    out = jax.block_until_ready(out)

    ref = reference(params, x, in_c=in_c, out_c=out_c, k=k, s=s, e_r=e_r)
    # Tolerance reflects the bf16 MXU operands in the fused projection
    # (f32 accumulation); every other op matches the f32 reference to ~1e-6.
    if not jnp.allclose(out, ref, atol=5e-2, rtol=5e-2):
        raise AssertionError("Pallas output does not match reference")
    assert out.shape == (N, out_c, H, W)
    print("KERNEL_OK")
</pallas_src>

<mosaic_0001>
module attributes {stable_mosaic.version = 11 : i64} {
  func.func @_mbconv_kernel(%arg0: i32, %arg1: memref<1x16x16x4xf32, #tpu.memory_space<vmem>>, %arg2: memref<4x16xf32, #tpu.memory_space<vmem>>, %arg3: memref<1x16xf32, #tpu.memory_space<vmem>>, %arg4: memref<3x3x16xf32, #tpu.memory_space<vmem>>, %arg5: memref<1x16xf32, #tpu.memory_space<vmem>>, %arg6: memref<1x16xf32, #tpu.memory_space<vmem>>, %arg7: memref<1x1xf32, #tpu.memory_space<vmem>>, %arg8: memref<1x16xf32, #tpu.memory_space<vmem>>, %arg9: memref<1x16xf32, #tpu.memory_space<vmem>>, %arg10: memref<16x4xbf16, #tpu.memory_space<vmem>>, %arg11: memref<1x4xf32, #tpu.memory_space<vmem>>, %arg12: memref<1x16x16x4xf32, #tpu.memory_space<vmem>>, %arg13: memref<18x32x16xf32, #tpu.memory_space<vmem>>, %arg14: memref<16x16x16xf32, #tpu.memory_space<vmem>>) attributes {dimension_semantics = [#tpu.dimension_semantics<parallel>], iteration_bounds = array<i64: 2>, scalar_prefetch = 0 : i64, scratch_operands = 2 : i64, tpu.core_type = #tpu.core_type<tc>, window_params = [{transform_indices = @transform_0, window_bounds = array<i64: 1, 16, 16, 4>}, {pipeline_mode = #tpu.pipeline_mode<synchronous>, transform_indices = @transform_1, window_bounds = array<i64: 4, 16>}, {pipeline_mode = #tpu.pipeline_mode<synchronous>, transform_indices = @transform_2, window_bounds = array<i64: 1, 16>}, {pipeline_mode = #tpu.pipeline_mode<synchronous>, transform_indices = @transform_3, window_bounds = array<i64: 3, 3, 16>}, {pipeline_mode = #tpu.pipeline_mode<synchronous>, transform_indices = @transform_4, window_bounds = array<i64: 1, 16>}, {pipeline_mode = #tpu.pipeline_mode<synchronous>, transform_indices = @transform_5, window_bounds = array<i64: 1, 16>}, {pipeline_mode = #tpu.pipeline_mode<synchronous>, transform_indices = @transform_6, window_bounds = array<i64: 1, 1>}, {pipeline_mode = #tpu.pipeline_mode<synchronous>, transform_indices = @transform_7, window_bounds = array<i64: 1, 16>}, {pipeline_mode = #tpu.pipeline_mode<synchronous>, transform_indices = @transform_8, window_bounds = array<i64: 1, 16>}, {pipeline_mode = #tpu.pipeline_mode<synchronous>, transform_indices = @transform_9, window_bounds = array<i64: 16, 4>}, {pipeline_mode = #tpu.pipeline_mode<synchronous>, transform_indices = @transform_10, window_bounds = array<i64: 1, 4>}, {transform_indices = @transform_11, window_bounds = array<i64: 1, 16, 16, 4>}]} {
    %cst = arith.constant 0.000000e+00 : f32
    %0 = vector.broadcast %cst : f32 to vector<1x32x16xf32>
    %c0 = arith.constant 0 : index
    %c0_0 = arith.constant 0 : index
    %c0_1 = arith.constant 0 : index
    %1 = vector.load %arg13[%c0, %c0_0, %c0_1] : memref<18x32x16xf32, #tpu.memory_space<vmem>>, vector<1x32x16xf32>
    tpu.vector_store %arg13[%c0, %c0_0, %c0_1], %0 {strides = array<i32>} : memref<18x32x16xf32, #tpu.memory_space<vmem>>, vector<1x32x16xf32>,
    %c17 = arith.constant 17 : index
    %c0_2 = arith.constant 0 : index
    %c0_3 = arith.constant 0 : index
    %2 = vector.load %arg13[%c17, %c0_2, %c0_3] : memref<18x32x16xf32, #tpu.memory_space<vmem>>, vector<1x32x16xf32>
    tpu.vector_store %arg13[%c17, %c0_2, %c0_3], %0 {strides = array<i32>} : memref<18x32x16xf32, #tpu.memory_space<vmem>>, vector<1x32x16xf32>,
    %cst_4 = arith.constant 0.000000e+00 : f32
    %3 = vector.broadcast %cst_4 : f32 to vector<16x1x16xf32>
    %c1 = arith.constant 1 : index
    %c7 = arith.constant 7 : index
    %c0_5 = arith.constant 0 : index
    %4 = vector.load %arg13[%c1, %c7, %c0_5] : memref<18x32x16xf32, #tpu.memory_space<vmem>>, vector<16x1x16xf32>
    tpu.vector_store %arg13[%c1, %c7, %c0_5], %3 {strides = array<i32>} : memref<18x32x16xf32, #tpu.memory_space<vmem>>, vector<16x1x16xf32>,
    %c1_6 = arith.constant 1 : index
    %c24 = arith.constant 24 : index
    %c0_7 = arith.constant 0 : index
    %5 = vector.load %arg13[%c1_6, %c24, %c0_7] : memref<18x32x16xf32, #tpu.memory_space<vmem>>, vector<16x1x16xf32>
    tpu.vector_store %arg13[%c1_6, %c24, %c0_7], %3 {strides = array<i32>} : memref<18x32x16xf32, #tpu.memory_space<vmem>>, vector<16x1x16xf32>,
    %c0_8 = arith.constant 0 : index
    %c0_9 = arith.constant 0 : index
    %c0_10 = arith.constant 0 : index
    %c0_11 = arith.constant 0 : index
    %6 = vector.load %arg1[%c0_8, %c0_9, %c0_10, %c0_11] : memref<1x16x16x4xf32, #tpu.memory_space<vmem>>, vector<1x16x16x4xf32>
    %7 = vector.shape_cast %6 : vector<1x16x16x4xf32> to vector<16x16x4xf32>
    %c0_12 = arith.constant 0 : index
    %c0_13 = arith.constant 0 : index
    %8 = vector.load %arg3[%c0_12, %c0_13] : memref<1x16xf32, #tpu.memory_space<vmem>>, vector<1x16xf32>
    %9 = vector.shape_cast %8 : vector<1x16xf32> to vector<1x1x16xf32>
    %c0_14 = arith.constant 0 : index
    %c0_15 = arith.constant 0 : index
    %10 = vector.load %arg2[%c0_14, %c0_15] : memref<4x16xf32, #tpu.memory_space<vmem>>, vector<4x16xf32>
    %11 = vector.shape_cast %9 : vector<1x1x16xf32> to vector<1x1x16xf32>
    %12 = vector.broadcast %11 : vector<1x1x16xf32> to vector<16x16x16xf32>
    %13 = vector.extract_strided_slice %7 {offsets = [0, 0, 0], sizes = [16, 16, 1], strides = [1, 1, 1]} : vector<16x16x4xf32> to vector<16x16x1xf32>
    %14 = vector.extract_strided_slice %10 {offsets = [0, 0], sizes = [1, 16], strides = [1, 1]} : vector<4x16xf32> to vector<1x16xf32>
    %15 = vector.shape_cast %14 : vector<1x16xf32> to vector<16xf32>
    %16 = vector.shape_cast %15 : vector<16xf32> to vector<1x1x16xf32>
    %17 = vector.broadcast %13 : vector<16x16x1xf32> to vector<16x16x16xf32>
    %18 = vector.broadcast %16 : vector<1x1x16xf32> to vector<16x16x16xf32>
    %19 = arith.mulf %17, %18 : vector<16x16x16xf32>
    %20 = arith.addf %12, %19 : vector<16x16x16xf32>
    %21 = vector.extract_strided_slice %7 {offsets = [0, 0, 1], sizes = [16, 16, 1], strides = [1, 1, 1]} : vector<16x16x4xf32> to vector<16x16x1xf32>
    %22 = vector.extract_strided_slice %10 {offsets = [1, 0], sizes = [1, 16], strides = [1, 1]} : vector<4x16xf32> to vector<1x16xf32>
    %23 = vector.shape_cast %22 : vector<1x16xf32> to vector<16xf32>
    %24 = vector.shape_cast %23 : vector<16xf32> to vector<1x1x16xf32>
    %25 = vector.broadcast %21 : vector<16x16x1xf32> to vector<16x16x16xf32>
    %26 = vector.broadcast %24 : vector<1x1x16xf32> to vector<16x16x16xf32>
    %27 = arith.mulf %25, %26 : vector<16x16x16xf32>
    %28 = arith.addf %20, %27 : vector<16x16x16xf32>
    %29 = vector.extract_strided_slice %7 {offsets = [0, 0, 2], sizes = [16, 16, 1], strides = [1, 1, 1]} : vector<16x16x4xf32> to vector<16x16x1xf32>
    %30 = vector.extract_strided_slice %10 {offsets = [2, 0], sizes = [1, 16], strides = [1, 1]} : vector<4x16xf32> to vector<1x16xf32>
    %31 = vector.shape_cast %30 : vector<1x16xf32> to vector<16xf32>
    %32 = vector.shape_cast %31 : vector<16xf32> to vector<1x1x16xf32>
    %33 = vector.broadcast %29 : vector<16x16x1xf32> to vector<16x16x16xf32>
    %34 = vector.broadcast %32 : vector<1x1x16xf32> to vector<16x16x16xf32>
    %35 = arith.mulf %33, %34 : vector<16x16x16xf32>
    %36 = arith.addf %28, %35 : vector<16x16x16xf32>
    %37 = vector.extract_strided_slice %7 {offsets = [0, 0, 3], sizes = [16, 16, 1], strides = [1, 1, 1]} : vector<16x16x4xf32> to vector<16x16x1xf32>
    %38 = vector.extract_strided_slice %10 {offsets = [3, 0], sizes = [1, 16], strides = [1, 1]} : vector<4x16xf32> to vector<1x16xf32>
    %39 = vector.shape_cast %38 : vector<1x16xf32> to vector<16xf32>
    %40 = vector.shape_cast %39 : vector<16xf32> to vector<1x1x16xf32>
    %41 = vector.broadcast %37 : vector<16x16x1xf32> to vector<16x16x16xf32>
    %42 = vector.broadcast %40 : vector<1x1x16xf32> to vector<16x16x16xf32>
    %43 = arith.mulf %41, %42 : vector<16x16x16xf32>
    %44 = arith.addf %36, %43 : vector<16x16x16xf32>
    %45 = arith.negf %44 : vector<16x16x16xf32>
    %46 = math.exp %45 : vector<16x16x16xf32>
    %cst_16 = arith.constant 1.000000e+00 : f32
    %47 = vector.broadcast %cst_16 : f32 to vector<16x16x16xf32>
    %48 = arith.addf %47, %46 : vector<16x16x16xf32>
    %49 = arith.divf %47, %48 : vector<16x16x16xf32>
    %50 = arith.mulf %44, %49 : vector<16x16x16xf32>
    %c1_17 = arith.constant 1 : index
    %c8 = arith.constant 8 : index
    %c0_18 = arith.constant 0 : index
    %51 = vector.load %arg13[%c1_17, %c8, %c0_18] : memref<18x32x16xf32, #tpu.memory_space<vmem>>, vector<16x16x16xf32>
    tpu.vector_store %arg13[%c1_17, %c8, %c0_18], %50 {strides = array<i32>} : memref<18x32x16xf32, #tpu.memory_space<vmem>>, vector<16x16x16xf32>,
    %c0_19 = arith.constant 0 : index
    %c0_20 = arith.constant 0 : index
    %c0_21 = arith.constant 0 : index
    %52 = vector.load %arg4[%c0_19, %c0_20, %c0_21] : memref<3x3x16xf32, #tpu.memory_space<vmem>>, vector<3x3x16xf32>
    %c0_22 = arith.constant 0 : index
    %c0_23 = arith.constant 0 : index
    %53 = vector.load %arg5[%c0_22, %c0_23] : memref<1x16xf32, #tpu.memory_space<vmem>>, vector<1x16xf32>
    %54 = vector.shape_cast %53 : vector<1x16xf32> to vector<1x1x16xf32>
    %cst_24 = arith.constant 0.000000e+00 : f32
    %55 = vector.broadcast %cst_24 : f32 to vector<1x16xf32>
    %cst_25 = arith.constant 0.000000e+00 : f32
    %56 = vector.broadcast %cst_25 : f32 to vector<8x16x16xf32>
    %c0_26 = arith.constant 0 : index
    %c7_27 = arith.constant 7 : index
    %c0_28 = arith.constant 0 : index
    %57 = vector.load %arg13[%c0_26, %c7_27, %c0_28] : memref<18x32x16xf32, #tpu.memory_space<vmem>>, vector<8x16x16xf32>
    %58 = vector.extract_strided_slice %52 {offsets = [0, 0, 0], sizes = [1, 1, 16], strides = [1, 1, 1]} : vector<3x3x16xf32> to vector<1x1x16xf32>
    %59 = vector.shape_cast %58 : vector<1x1x16xf32> to vector<16xf32>
    %60 = vector.shape_cast %59 : vector<16xf32> to vector<1x1x16xf32>
    %61 = vector.broadcast %60 : vector<1x1x16xf32> to vector<8x16x16xf32>
    %62 = arith.mulf %57, %61 : vector<8x16x16xf32>
    %63 = arith.addf %56, %62 : vector<8x16x16xf32>
    %c0_29 = arith.constant 0 : index
    %c8_30 = arith.constant 8 : index
    %c0_31 = arith.constant 0 : index
    %64 = vector.load %arg13[%c0_29, %c8_30, %c0_31] : memref<18x32x16xf32, #tpu.memory_space<vmem>>, vector<8x16x16xf32>
    %65 = vector.extract_strided_slice %52 {offsets = [0, 1, 0], sizes = [1, 1, 16], strides = [1, 1, 1]} : vector<3x3x16xf32> to vector<1x1x16xf32>
    %66 = vector.shape_cast %65 : vector<1x1x16xf32> to vector<16xf32>
    %67 = vector.shape_cast %66 : vector<16xf32> to vector<1x1x16xf32>
    %68 = vector.broadcast %67 : vector<1x1x16xf32> to vector<8x16x16xf32>
    %69 = arith.mulf %64, %68 : vector<8x16x16xf32>
    %70 = arith.addf %63, %69 : vector<8x16x16xf32>
    %c0_32 = arith.constant 0 : index
    %c9 = arith.constant 9 : index
    %c0_33 = arith.constant 0 : index
    %71 = vector.load %arg13[%c0_32, %c9, %c0_33] : memref<18x32x16xf32, #tpu.memory_space<vmem>>, vector<8x16x16xf32>
    %72 = vector.extract_strided_slice %52 {offsets = [0, 2, 0], sizes = [1, 1, 16], strides = [1, 1, 1]} : vector<3x3x16xf32> to vector<1x1x16xf32>
    %73 = vector.shape_cast %72 : vector<1x1x16xf32> to vector<16xf32>
    %74 = vector.shape_cast %73 : vector<16xf32> to vector<1x1x16xf32>
    %75 = vector.broadcast %74 : vector<1x1x16xf32> to vector<8x16x16xf32>
    %76 = arith.mulf %71, %75 : vector<8x16x16xf32>
    %77 = arith.addf %70, %76 : vector<8x16x16xf32>
    %c1_34 = arith.constant 1 : index
    %c7_35 = arith.constant 7 : index
    %c0_36 = arith.constant 0 : index
    %78 = vector.load %arg13[%c1_34, %c7_35, %c0_36] : memref<18x32x16xf32, #tpu.memory_space<vmem>>, vector<8x16x16xf32>
    %79 = vector.extract_strided_slice %52 {offsets = [1, 0, 0], sizes = [1, 1, 16], strides = [1, 1, 1]} : vector<3x3x16xf32> to vector<1x1x16xf32>
    %80 = vector.shape_cast %79 : vector<1x1x16xf32> to vector<16xf32>
    %81 = vector.shape_cast %80 : vector<16xf32> to vector<1x1x16xf32>
    %82 = vector.broadcast %81 : vector<1x1x16xf32> to vector<8x16x16xf32>
    %83 = arith.mulf %78, %82 : vector<8x16x16xf32>
    %84 = arith.addf %77, %83 : vector<8x16x16xf32>
    %c1_37 = arith.constant 1 : index
    %c8_38 = arith.constant 8 : index
    %c0_39 = arith.constant 0 : index
    %85 = vector.load %arg13[%c1_37, %c8_38, %c0_39] : memref<18x32x16xf32, #tpu.memory_space<vmem>>, vector<8x16x16xf32>
    %86 = vector.extract_strided_slice %52 {offsets = [1, 1, 0], sizes = [1, 1, 16], strides = [1, 1, 1]} : vector<3x3x16xf32> to vector<1x1x16xf32>
    %87 = vector.shape_cast %86 : vector<1x1x16xf32> to vector<16xf32>
    %88 = vector.shape_cast %87 : vector<16xf32> to vector<1x1x16xf32>
    %89 = vector.broadcast %88 : vector<1x1x16xf32> to vector<8x16x16xf32>
    %90 = arith.mulf %85, %89 : vector<8x16x16xf32>
    %91 = arith.addf %84, %90 : vector<8x16x16xf32>
    %c1_40 = arith.constant 1 : index
    %c9_41 = arith.constant 9 : index
    %c0_42 = arith.constant 0 : index
    %92 = vector.load %arg13[%c1_40, %c9_41, %c0_42] : memref<18x32x16xf32, #tpu.memory_space<vmem>>, vector<8x16x16xf32>
    %93 = vector.extract_strided_slice %52 {offsets = [1, 2, 0], sizes = [1, 1, 16], strides = [1, 1, 1]} : vector<3x3x16xf32> to vector<1x1x16xf32>
    %94 = vector.shape_cast %93 : vector<1x1x16xf32> to vector<16xf32>
    %95 = vector.shape_cast %94 : vector<16xf32> to vector<1x1x16xf32>
    %96 = vector.broadcast %95 : vector<1x1x16xf32> to vector<8x16x16xf32>
    %97 = arith.mulf %92, %96 : vector<8x16x16xf32>
    %98 = arith.addf %91, %97 : vector<8x16x16xf32>
    %c2 = arith.constant 2 : index
    %c7_43 = arith.constant 7 : index
    %c0_44 = arith.constant 0 : index
    %99 = vector.load %arg13[%c2, %c7_43, %c0_44] : memref<18x32x16xf32, #tpu.memory_space<vmem>>, vector<8x16x16xf32>
    %100 = vector.extract_strided_slice %52 {offsets = [2, 0, 0], sizes = [1, 1, 16], strides = [1, 1, 1]} : vector<3x3x16xf32> to vector<1x1x16xf32>
    %101 = vector.shape_cast %100 : vector<1x1x16xf32> to vector<16xf32>
    %102 = vector.shape_cast %101 : vector<16xf32> to vector<1x1x16xf32>
    %103 = vector.broadcast %102 : vector<1x1x16xf32> to vector<8x16x16xf32>
    %104 = arith.mulf %99, %103 : vector<8x16x16xf32>
    %105 = arith.addf %98, %104 : vector<8x16x16xf32>
    %c2_45 = arith.constant 2 : index
    %c8_46 = arith.constant 8 : index
    %c0_47 = arith.constant 0 : index
    %106 = vector.load %arg13[%c2_45, %c8_46, %c0_47] : memref<18x32x16xf32, #tpu.memory_space<vmem>>, vector<8x16x16xf32>
    %107 = vector.extract_strided_slice %52 {offsets = [2, 1, 0], sizes = [1, 1, 16], strides = [1, 1, 1]} : vector<3x3x16xf32> to vector<1x1x16xf32>
    %108 = vector.shape_cast %107 : vector<1x1x16xf32> to vector<16xf32>
    %109 = vector.shape_cast %108 : vector<16xf32> to vector<1x1x16xf32>
    %110 = vector.broadcast %109 : vector<1x1x16xf32> to vector<8x16x16xf32>
    %111 = arith.mulf %106, %110 : vector<8x16x16xf32>
    %112 = arith.addf %105, %111 : vector<8x16x16xf32>
    %c2_48 = arith.constant 2 : index
    %c9_49 = arith.constant 9 : index
    %c0_50 = arith.constant 0 : index
    %113 = vector.load %arg13[%c2_48, %c9_49, %c0_50] : memref<18x32x16xf32, #tpu.memory_space<vmem>>, vector<8x16x16xf32>
    %114 = vector.extract_strided_slice %52 {offsets = [2, 2, 0], sizes = [1, 1, 16], strides = [1, 1, 1]} : vector<3x3x16xf32> to vector<1x1x16xf32>
    %115 = vector.shape_cast %114 : vector<1x1x16xf32> to vector<16xf32>
    %116 = vector.shape_cast %115 : vector<16xf32> to vector<1x1x16xf32>
    %117 = vector.broadcast %116 : vector<1x1x16xf32> to vector<8x16x16xf32>
    %118 = arith.mulf %113, %117 : vector<8x16x16xf32>
    %119 = arith.addf %112, %118 : vector<8x16x16xf32>
    %120 = vector.broadcast %54 : vector<1x1x16xf32> to vector<8x16x16xf32>
    %121 = arith.addf %119, %120 : vector<8x16x16xf32>
    %122 = arith.negf %121 : vector<8x16x16xf32>
    %123 = math.exp %122 : vector<8x16x16xf32>
    %cst_51 = arith.constant 1.000000e+00 : f32
    %124 = vector.broadcast %cst_51 : f32 to vector<8x16x16xf32>
    %125 = arith.addf %124, %123 : vector<8x16x16xf32>
    %126 = arith.divf %124, %125 : vector<8x16x16xf32>
    %127 = arith.mulf %121, %126 : vector<8x16x16xf32>
    %c0_52 = arith.constant 0 : index
    %c0_53 = arith.constant 0 : index
    %c0_54 = arith.constant 0 : index
    %128 = vector.load %arg14[%c0_52, %c0_53, %c0_54] : memref<16x16x16xf32, #tpu.memory_space<vmem>>, vector<8x16x16xf32>
    tpu.vector_store %arg14[%c0_52, %c0_53, %c0_54], %127 {strides = array<i32>} : memref<16x16x16xf32, #tpu.memory_space<vmem>>, vector<8x16x16xf32>,
    %cst_55 = arith.constant dense<0.000000e+00> : vector<16xf32>
    %129 = vector.multi_reduction <add>, %127, %cst_55 [0, 1] : vector<8x16x16xf32> to vector<16xf32>
    %130 = vector.shape_cast %129 : vector<16xf32> to vector<1x16xf32>
    %131 = arith.addf %55, %130 : vector<1x16xf32>
    %cst_56 = arith.constant 0.000000e+00 : f32
    %132 = vector.broadcast %cst_56 : f32 to vector<8x16x16xf32>
    %c8_57 = arith.constant 8 : index
    %c7_58 = arith.constant 7 : index
    %c0_59 = arith.constant 0 : index
    %133 = vector.load %arg13[%c8_57, %c7_58, %c0_59] : memref<18x32x16xf32, #tpu.memory_space<vmem>>, vector<8x16x16xf32>
    %134 = vector.extract_strided_slice %52 {offsets = [0, 0, 0], sizes = [1, 1, 16], strides = [1, 1, 1]} : vector<3x3x16xf32> to vector<1x1x16xf32>
    %135 = vector.shape_cast %134 : vector<1x1x16xf32> to vector<16xf32>
    %136 = vector.shape_cast %135 : vector<16xf32> to vector<1x1x16xf32>
    %137 = vector.broadcast %136 : vector<1x1x16xf32> to vector<8x16x16xf32>
    %138 = arith.mulf %133, %137 : vector<8x16x16xf32>
    %139 = arith.addf %132, %138 : vector<8x16x16xf32>
    %c8_60 = arith.constant 8 : index
    %c8_61 = arith.constant 8 : index
    %c0_62 = arith.constant 0 : index
    %140 = vector.load %arg13[%c8_60, %c8_61, %c0_62] : memref<18x32x16xf32, #tpu.memory_space<vmem>>, vector<8x16x16xf32>
    %141 = vector.extract_strided_slice %52 {offsets = [0, 1, 0], sizes = [1, 1, 16], strides = [1, 1, 1]} : vector<3x3x16xf32> to vector<1x1x16xf32>
    %142 = vector.shape_cast %141 : vector<1x1x16xf32> to vector<16xf32>
    %143 = vector.shape_cast %142 : vector<16xf32> to vector<1x1x16xf32>
    %144 = vector.broadcast %143 : vector<1x1x16xf32> to vector<8x16x16xf32>
    %145 = arith.mulf %140, %144 : vector<8x16x16xf32>
    %146 = arith.addf %139, %145 : vector<8x16x16xf32>
    %c8_63 = arith.constant 8 : index
    %c9_64 = arith.constant 9 : index
    %c0_65 = arith.constant 0 : index
    %147 = vector.load %arg13[%c8_63, %c9_64, %c0_65] : memref<18x32x16xf32, #tpu.memory_space<vmem>>, vector<8x16x16xf32>
    %148 = vector.extract_strided_slice %52 {offsets = [0, 2, 0], sizes = [1, 1, 16], strides = [1, 1, 1]} : vector<3x3x16xf32> to vector<1x1x16xf32>
    %149 = vector.shape_cast %148 : vector<1x1x16xf32> to vector<16xf32>
    %150 = vector.shape_cast %149 : vector<16xf32> to vector<1x1x16xf32>
    %151 = vector.broadcast %150 : vector<1x1x16xf32> to vector<8x16x16xf32>
    %152 = arith.mulf %147, %151 : vector<8x16x16xf32>
    %153 = arith.addf %146, %152 : vector<8x16x16xf32>
    %c9_66 = arith.constant 9 : index
    %c7_67 = arith.constant 7 : index
    %c0_68 = arith.constant 0 : index
    %154 = vector.load %arg13[%c9_66, %c7_67, %c0_68] : memref<18x32x16xf32, #tpu.memory_space<vmem>>, vector<8x16x16xf32>
    %155 = vector.extract_strided_slice %52 {offsets = [1, 0, 0], sizes = [1, 1, 16], strides = [1, 1, 1]} : vector<3x3x16xf32> to vector<1x1x16xf32>
    %156 = vector.shape_cast %155 : vector<1x1x16xf32> to vector<16xf32>
    %157 = vector.shape_cast %156 : vector<16xf32> to vector<1x1x16xf32>
    %158 = vector.broadcast %157 : vector<1x1x16xf32> to vector<8x16x16xf32>
    %159 = arith.mulf %154, %158 : vector<8x16x16xf32>
    %160 = arith.addf %153, %159 : vector<8x16x16xf32>
    %c9_69 = arith.constant 9 : index
    %c8_70 = arith.constant 8 : index
    %c0_71 = arith.constant 0 : index
    %161 = vector.load %arg13[%c9_69, %c8_70, %c0_71] : memref<18x32x16xf32, #tpu.memory_space<vmem>>, vector<8x16x16xf32>
    %162 = vector.extract_strided_slice %52 {offsets = [1, 1, 0], sizes = [1, 1, 16], strides = [1, 1, 1]} : vector<3x3x16xf32> to vector<1x1x16xf32>
    %163 = vector.shape_cast %162 : vector<1x1x16xf32> to vector<16xf32>
    %164 = vector.shape_cast %163 : vector<16xf32> to vector<1x1x16xf32>
    %165 = vector.broadcast %164 : vector<1x1x16xf32> to vector<8x16x16xf32>
    %166 = arith.mulf %161, %165 : vector<8x16x16xf32>
    %167 = arith.addf %160, %166 : vector<8x16x16xf32>
    %c9_72 = arith.constant 9 : index
    %c9_73 = arith.constant 9 : index
    %c0_74 = arith.constant 0 : index
    %168 = vector.load %arg13[%c9_72, %c9_73, %c0_74] : memref<18x32x16xf32, #tpu.memory_space<vmem>>, vector<8x16x16xf32>
    %169 = vector.extract_strided_slice %52 {offsets = [1, 2, 0], sizes = [1, 1, 16], strides = [1, 1, 1]} : vector<3x3x16xf32> to vector<1x1x16xf32>
    %170 = vector.shape_cast %169 : vector<1x1x16xf32> to vector<16xf32>
    %171 = vector.shape_cast %170 : vector<16xf32> to vector<1x1x16xf32>
    %172 = vector.broadcast %171 : vector<1x1x16xf32> to vector<8x16x16xf32>
    %173 = arith.mulf %168, %172 : vector<8x16x16xf32>
    %174 = arith.addf %167, %173 : vector<8x16x16xf32>
    %c10 = arith.constant 10 : index
    %c7_75 = arith.constant 7 : index
    %c0_76 = arith.constant 0 : index
    %175 = vector.load %arg13[%c10, %c7_75, %c0_76] : memref<18x32x16xf32, #tpu.memory_space<vmem>>, vector<8x16x16xf32>
    %176 = vector.extract_strided_slice %52 {offsets = [2, 0, 0], sizes = [1, 1, 16], strides = [1, 1, 1]} : vector<3x3x16xf32> to vector<1x1x16xf32>
    %177 = vector.shape_cast %176 : vector<1x1x16xf32> to vector<16xf32>
    %178 = vector.shape_cast %177 : vector<16xf32> to vector<1x1x16xf32>
    %179 = vector.broadcast %178 : vector<1x1x16xf32> to vector<8x16x16xf32>
    %180 = arith.mulf %175, %179 : vector<8x16x16xf32>
    %181 = arith.addf %174, %180 : vector<8x16x16xf32>
    %c10_77 = arith.constant 10 : index
    %c8_78 = arith.constant 8 : index
    %c0_79 = arith.constant 0 : index
    %182 = vector.load %arg13[%c10_77, %c8_78, %c0_79] : memref<18x32x16xf32, #tpu.memory_space<vmem>>, vector<8x16x16xf32>
    %183 = vector.extract_strided_slice %52 {offsets = [2, 1, 0], sizes = [1, 1, 16], strides = [1, 1, 1]} : vector<3x3x16xf32> to vector<1x1x16xf32>
    %184 = vector.shape_cast %183 : vector<1x1x16xf32> to vector<16xf32>
    %185 = vector.shape_cast %184 : vector<16xf32> to vector<1x1x16xf32>
    %186 = vector.broadcast %185 : vector<1x1x16xf32> to vector<8x16x16xf32>
    %187 = arith.mulf %182, %186 : vector<8x16x16xf32>
    %188 = arith.addf %181, %187 : vector<8x16x16xf32>
    %c10_80 = arith.constant 10 : index
    %c9_81 = arith.constant 9 : index
    %c0_82 = arith.constant 0 : index
    %189 = vector.load %arg13[%c10_80, %c9_81, %c0_82] : memref<18x32x16xf32, #tpu.memory_space<vmem>>, vector<8x16x16xf32>
    %190 = vector.extract_strided_slice %52 {offsets = [2, 2, 0], sizes = [1, 1, 16], strides = [1, 1, 1]} : vector<3x3x16xf32> to vector<1x1x16xf32>
    %191 = vector.shape_cast %190 : vector<1x1x16xf32> to vector<16xf32>
    %192 = vector.shape_cast %191 : vector<16xf32> to vector<1x1x16xf32>
    %193 = vector.broadcast %192 : vector<1x1x16xf32> to vector<8x16x16xf32>
    %194 = arith.mulf %189, %193 : vector<8x16x16xf32>
    %195 = arith.addf %188, %194 : vector<8x16x16xf32>
    %196 = vector.broadcast %54 : vector<1x1x16xf32> to vector<8x16x16xf32>
    %197 = arith.addf %195, %196 : vector<8x16x16xf32>
    %198 = arith.negf %197 : vector<8x16x16xf32>
    %199 = math.exp %198 : vector<8x16x16xf32>
    %cst_83 = arith.constant 1.000000e+00 : f32
    %200 = vector.broadcast %cst_83 : f32 to vector<8x16x16xf32>
    %201 = arith.addf %200, %199 : vector<8x16x16xf32>
    %202 = arith.divf %200, %201 : vector<8x16x16xf32>
    %203 = arith.mulf %197, %202 : vector<8x16x16xf32>
    %c8_84 = arith.constant 8 : index
    %c0_85 = arith.constant 0 : index
    %c0_86 = arith.constant 0 : index
    %204 = vector.load %arg14[%c8_84, %c0_85, %c0_86] : memref<16x16x16xf32, #tpu.memory_space<vmem>>, vector<8x16x16xf32>
    tpu.vector_store %arg14[%c8_84, %c0_85, %c0_86], %203 {strides = array<i32>} : memref<16x16x16xf32, #tpu.memory_space<vmem>>, vector<8x16x16xf32>,
    %cst_87 = arith.constant dense<0.000000e+00> : vector<16xf32>
    %205 = vector.multi_reduction <add>, %203, %cst_87 [0, 1] : vector<8x16x16xf32> to vector<16xf32>
    %206 = vector.shape_cast %205 : vector<16xf32> to vector<1x16xf32>
    %207 = arith.addf %131, %206 : vector<1x16xf32>
    %cst_88 = arith.constant 3.906250e-03 : f32
    %208 = vector.broadcast %cst_88 : f32 to vector<1x16xf32>
    %209 = arith.mulf %207, %208 : vector<1x16xf32>
    %c0_89 = arith.constant 0 : index
    %c0_90 = arith.constant 0 : index
    %210 = vector.load %arg6[%c0_89, %c0_90] : memref<1x16xf32, #tpu.memory_space<vmem>>, vector<1x16xf32>
    %211 = arith.mulf %210, %209 : vector<1x16xf32>
    %cst_91 = arith.constant dense<0.000000e+00> : vector<1xf32>
    %212 = vector.multi_reduction <add>, %211, %cst_91 [1] : vector<1x16xf32> to vector<1xf32>
    %213 = vector.shape_cast %212 : vector<1xf32> to vector<1x1xf32>
    %c0_92 = arith.constant 0 : index
    %c0_93 = arith.constant 0 : index
    %214 = vector.load %arg7[%c0_92, %c0_93] : memref<1x1xf32, #tpu.memory_space<vmem>>, vector<1x1xf32>
    %215 = arith.addf %213, %214 : vector<1x1xf32>
    %216 = arith.negf %215 : vector<1x1xf32>
    %217 = math.exp %216 : vector<1x1xf32>
    %cst_94 = arith.constant 1.000000e+00 : f32
    %218 = vector.broadcast %cst_94 : f32 to vector<1x1xf32>
    %219 = arith.addf %218, %217 : vector<1x1xf32>
    %220 = arith.divf %218, %219 : vector<1x1xf32>
    %221 = arith.mulf %215, %220 : vector<1x1xf32>
    %c0_95 = arith.constant 0 : index
    %c0_96 = arith.constant 0 : index
    %222 = vector.load %arg8[%c0_95, %c0_96] : memref<1x16xf32, #tpu.memory_space<vmem>>, vector<1x16xf32>
    %223 = vector.broadcast %221 : vector<1x1xf32> to vector<1x16xf32>
    %224 = arith.mulf %222, %223 : vector<1x16xf32>
    %cst_97 = arith.constant dense<0.000000e+00> : vector<16xf32>
    %225 = vector.multi_reduction <add>, %224, %cst_97 [0] : vector<1x16xf32> to vector<16xf32>
    %226 = vector.shape_cast %225 : vector<16xf32> to vector<1x16xf32>
    %c0_98 = arith.constant 0 : index
    %c0_99 = arith.constant 0 : index
    %227 = vector.load %arg9[%c0_98, %c0_99] : memref<1x16xf32, #tpu.memory_space<vmem>>, vector<1x16xf32>
    %228 = arith.addf %226, %227 : vector<1x16xf32>
    %229 = arith.negf %228 : vector<1x16xf32>
    %230 = math.exp %229 : vector<1x16xf32>
    %cst_100 = arith.constant 1.000000e+00 : f32
    %231 = vector.broadcast %cst_100 : f32 to vector<1x16xf32>
    %232 = arith.addf %231, %230 : vector<1x16xf32>
    %233 = arith.divf %231, %232 : vector<1x16xf32>
    %234 = vector.shape_cast %233 : vector<1x16xf32> to vector<1x1x16xf32>
    %c0_101 = arith.constant 0 : index
    %c0_102 = arith.constant 0 : index
    %235 = vector.load %arg10[%c0_101, %c0_102] : memref<16x4xbf16, #tpu.memory_space<vmem>>, vector<16x4xbf16>
    %c0_103 = arith.constant 0 : index
    %c0_104 = arith.constant 0 : index
    %236 = vector.load %arg11[%c0_103, %c0_104] : memref<1x4xf32, #tpu.memory_space<vmem>>, vector<1x4xf32>
    %c0_105 = arith.constant 0 : index
    %c0_106 = arith.constant 0 : index
    %c0_107 = arith.constant 0 : index
    %237 = vector.load %arg14[%c0_105, %c0_106, %c0_107] : memref<16x16x16xf32, #tpu.memory_space<vmem>>, vector<8x16x16xf32>
    %238 = vector.broadcast %234 : vector<1x1x16xf32> to vector<8x16x16xf32>
    %239 = arith.mulf %237, %238 : vector<8x16x16xf32>
    %240 = vector.shape_cast %239 : vector<8x16x16xf32> to vector<128x16xf32>
    %241 = arith.truncf %240 : vector<128x16xf32> to vector<128x16xbf16>
    %cst_108 = arith.constant dense<0.000000e+00> : vector<128x4xf32>
    %242 = tpu.matmul %241, %235, %cst_108 {dimension_numbers = #tpu.dot_dimension_numbers<[1], [0], [0], [1], [0, 0, 1, 1], [], []>} : vector<128x16xbf16>, vector<16x4xbf16>, vector<128x4xf32> -> vector<128x4xf32>
    %243 = vector.broadcast %236 : vector<1x4xf32> to vector<128x4xf32>
    %244 = arith.addf %242, %243 : vector<128x4xf32>
    %245 = vector.shape_cast %244 : vector<128x4xf32> to vector<8x16x4xf32>
    %246 = vector.extract_strided_slice %7 {offsets = [0, 0, 0], sizes = [8, 16, 4], strides = [1, 1, 1]} : vector<16x16x4xf32> to vector<8x16x4xf32>
    %247 = arith.addf %245, %246 : vector<8x16x4xf32>
    %248 = vector.shape_cast %247 : vector<8x16x4xf32> to vector<1x8x16x4xf32>
    %c0_109 = arith.constant 0 : index
    %c0_110 = arith.constant 0 : index
    %c0_111 = arith.constant 0 : index
    %c0_112 = arith.constant 0 : index
    %249 = vector.load %arg12[%c0_109, %c0_110, %c0_111, %c0_112] : memref<1x16x16x4xf32, #tpu.memory_space<vmem>>, vector<1x8x16x4xf32>
    tpu.vector_store %arg12[%c0_109, %c0_110, %c0_111, %c0_112], %248 {strides = array<i32>} : memref<1x16x16x4xf32, #tpu.memory_space<vmem>>, vector<1x8x16x4xf32>,
    %c8_113 = arith.constant 8 : index
    %c0_114 = arith.constant 0 : index
    %c0_115 = arith.constant 0 : index
    %250 = vector.load %arg14[%c8_113, %c0_114, %c0_115] : memref<16x16x16xf32, #tpu.memory_space<vmem>>, vector<8x16x16xf32>
    %251 = vector.broadcast %234 : vector<1x1x16xf32> to vector<8x16x16xf32>
    %252 = arith.mulf %250, %251 : vector<8x16x16xf32>
    %253 = vector.shape_cast %252 : vector<8x16x16xf32> to vector<128x16xf32>
    %254 = arith.truncf %253 : vector<128x16xf32> to vector<128x16xbf16>
    %cst_116 = arith.constant dense<0.000000e+00> : vector<128x4xf32>
    %255 = tpu.matmul %254, %235, %cst_116 {dimension_numbers = #tpu.dot_dimension_numbers<[1], [0], [0], [1], [0, 0, 1, 1], [], []>} : vector<128x16xbf16>, vector<16x4xbf16>, vector<128x4xf32> -> vector<128x4xf32>
    %256 = vector.broadcast %236 : vector<1x4xf32> to vector<128x4xf32>
    %257 = arith.addf %255, %256 : vector<128x4xf32>
    %258 = vector.shape_cast %257 : vector<128x4xf32> to vector<8x16x4xf32>
    %259 = vector.extract_strided_slice %7 {offsets = [8, 0, 0], sizes = [8, 16, 4], strides = [1, 1, 1]} : vector<16x16x4xf32> to vector<8x16x4xf32>
    %260 = arith.addf %258, %259 : vector<8x16x4xf32>
    %261 = vector.shape_cast %260 : vector<8x16x4xf32> to vector<1x8x16x4xf32>
    %c0_117 = arith.constant 0 : index
    %c8_118 = arith.constant 8 : index
    %c0_119 = arith.constant 0 : index
    %c0_120 = arith.constant 0 : index
    %262 = vector.load %arg12[%c0_117, %c8_118, %c0_119, %c0_120] : memref<1x16x16x4xf32, #tpu.memory_space<vmem>>, vector<1x8x16x4xf32>
    tpu.vector_store %arg12[%c0_117, %c8_118, %c0_119, %c0_120], %261 {strides = array<i32>} : memref<1x16x16x4xf32, #tpu.memory_space<vmem>>, vector<1x8x16x4xf32>,
    return
  }
  func.func @transform_0(%arg0: i32) -> (i32, i32, i32, i32) {
    %c0_i32 = arith.constant 0 : i32
    %c0_i32_0 = arith.constant 0 : i32
    %c0_i32_1 = arith.constant 0 : i32
    %c0_i32_2 = arith.constant 0 : i32
    return %arg0, %c0_i32, %c0_i32_0, %c0_i32_1 : i32, i32, i32, i32
  }
  func.func @transform_1(%arg0: i32) -> (i32, i32) {
    %c0_i32 = arith.constant 0 : i32
    %c0_i32_0 = arith.constant 0 : i32
    %c0_i32_1 = arith.constant 0 : i32
    return %c0_i32, %c0_i32_0 : i32, i32
  }
  func.func @transform_2(%arg0: i32) -> (i32, i32) {
    %c0_i32 = arith.constant 0 : i32
    %c0_i32_0 = arith.constant 0 : i32
    %c0_i32_1 = arith.constant 0 : i32
    return %c0_i32, %c0_i32_0 : i32, i32
  }
  func.func @transform_3(%arg0: i32) -> (i32, i32, i32) {
    %c0_i32 = arith.constant 0 : i32
    %c0_i32_0 = arith.constant 0 : i32
    %c0_i32_1 = arith.constant 0 : i32
    %c0_i32_2 = arith.constant 0 : i32
    return %c0_i32, %c0_i32_0, %c0_i32_1 : i32, i32, i32
  }
  func.func @transform_4(%arg0: i32) -> (i32, i32) {
    %c0_i32 = arith.constant 0 : i32
    %c0_i32_0 = arith.constant 0 : i32
    %c0_i32_1 = arith.constant 0 : i32
    return %c0_i32, %c0_i32_0 : i32, i32
  }
  func.func @transform_5(%arg0: i32) -> (i32, i32) {
    %c0_i32 = arith.constant 0 : i32
    %c0_i32_0 = arith.constant 0 : i32
    %c0_i32_1 = arith.constant 0 : i32
    return %c0_i32, %c0_i32_0 : i32, i32
  }
  func.func @transform_6(%arg0: i32) -> (i32, i32) {
    %c0_i32 = arith.constant 0 : i32
    %c0_i32_0 = arith.constant 0 : i32
    %c0_i32_1 = arith.constant 0 : i32
    return %c0_i32, %c0_i32_0 : i32, i32
  }
  func.func @transform_7(%arg0: i32) -> (i32, i32) {
    %c0_i32 = arith.constant 0 : i32
    %c0_i32_0 = arith.constant 0 : i32
    %c0_i32_1 = arith.constant 0 : i32
    return %c0_i32, %c0_i32_0 : i32, i32
  }
  func.func @transform_8(%arg0: i32) -> (i32, i32) {
    %c0_i32 = arith.constant 0 : i32
    %c0_i32_0 = arith.constant 0 : i32
    %c0_i32_1 = arith.constant 0 : i32
    return %c0_i32, %c0_i32_0 : i32, i32
  }
  func.func @transform_9(%arg0: i32) -> (i32, i32) {
    %c0_i32 = arith.constant 0 : i32
    %c0_i32_0 = arith.constant 0 : i32
    %c0_i32_1 = arith.constant 0 : i32
    return %c0_i32, %c0_i32_0 : i32, i32
  }
  func.func @transform_10(%arg0: i32) -> (i32, i32) {
    %c0_i32 = arith.constant 0 : i32
    %c0_i32_0 = arith.constant 0 : i32
    %c0_i32_1 = arith.constant 0 : i32
    return %c0_i32, %c0_i32_0 : i32, i32
  }
  func.func @transform_11(%arg0: i32) -> (i32, i32, i32, i32) {
    %c0_i32 = arith.constant 0 : i32
    %c0_i32_0 = arith.constant 0 : i32
    %c0_i32_1 = arith.constant 0 : i32
    %c0_i32_2 = arith.constant 0 : i32
    return %arg0, %c0_i32, %c0_i32_0, %c0_i32_1 : i32, i32, i32, i32
  }
}

</mosaic_0001>

<llo_original>
// kernel: tpu_custom_call.1
$region0: #{tpu_custom_call.1}
  #allocation0 [shape = 'u32[]', space=smem, size = 0x4, offset = 0x4, fixed_abs, tag = 'smem constant byte address 0x4 - core index']
  #allocation1 [shape = 'u32[144,128]{1,0:T(1,128)}', space=vmem, size = 0x12000, scoped, tag = 'internal scratch']
  #allocation2 [shape = 'f32[18,32,16]{2,1,0:T(8,128)}', space=vmem, size = 0x48000, scoped, tag = 'scratch operand']
  #allocation3 [shape = 'f32[16,16,16]{2,1,0:T(8,128)}', space=vmem, size = 0x20000, scoped, tag = 'scratch operand']
  #allocation4 [shape = 'f32[1,1]{1,0:T(1,128)S(1)}', space=vmem, size = 0x200, scoped, tag = 'scoped memory for tpu_custom_call.1']
  %s0 = inlined_call_operand.vmem [shape: f32[2,16,16,4], index: 0, kind: input, shape index: {}]
  %s1 = inlined_call_operand.vmem [shape: f32[4,16], index: 1, kind: input, shape index: {}]
  %s2 = inlined_call_operand.vmem [shape: f32[1,16], index: 2, kind: input, shape index: {}]
  %s3 = inlined_call_operand.vmem [shape: f32[3,3,16], index: 3, kind: input, shape index: {}]
  %s4 = inlined_call_operand.vmem [shape: f32[1,16], index: 4, kind: input, shape index: {}]
  %s5 = inlined_call_operand.vmem [shape: f32[1,16], index: 5, kind: input, shape index: {}]
  %s6 = inlined_call_operand.<no memory space> [shape: f32[1,1], index: 6, kind: input, shape index: {}]
  %s7 = inlined_call_operand.vmem [shape: f32[1,16], index: 7, kind: input, shape index: {}]
  %s8 = inlined_call_operand.vmem [shape: f32[1,16], index: 8, kind: input, shape index: {}]
  %s9 = inlined_call_operand.vmem [shape: bf16[16,4], index: 9, kind: input, shape index: {}]
  %s10 = inlined_call_operand.vmem [shape: f32[1,4], index: 10, kind: input, shape index: {}]
  %s11 = inlined_call_operand.vmem [shape: f32[2,16,16,4], index: 11, kind: output, shape index: {}]
  %s12 = sld [smem:[#allocation0]]
  $region77: #{tpu_custom_call.1} parent=0
    _
  %s14 = ssub.s32 1, %s12
  %s15 = scalar_select 0, %s14, %s12
  %v16 = vstv %s6
  %17 = vst [vmem:[#allocation4] sm:$0x1] %v16
  loop: start=0, step=1, limit=4
  $region2: #{tpu_custom_call.1} parent=0 // loop_pre_header
    _
  $region3: #{tpu_custom_call.1} parent=0 // loop_header
    %s19 = sphi 0, %s23
    %p20 = scmp.ge.s32.totalorder %s19, 4
    %s29 = sphi 0, %s31
    %s32 = sphi 0, %s29
    %s33 = sphi 0, %s32
    %s49 = sphi 0, %s33
    %s53 = sphi 0, %s53
    %s55 = sphi 0, %s53
    %s56 = sphi 0, %s55
    %s70 = sphi 0, %s56
    %s74 = sphi 0, %s74
    %s76 = sphi 0, %s74
    %s77 = sphi 0, %s76
    %s91 = sphi 0, %s77
    %s95 = sphi 0, %s95
    %s97 = sphi 0, %s95
    %s98 = sphi 0, %s97
    %s112 = sphi 0, %s98
    %s116 = sphi 0, %s116
    %s118 = sphi 0, %s116
    %s119 = sphi 0, %s118
    %s133 = sphi 0, %s119
    %s137 = sphi 0, %s137
    %s139 = sphi 0, %s137
    %s140 = sphi 0, %s139
    %s154 = sphi 0, %s140
    %s158 = sphi 0, %s158
    %s160 = sphi 0, %s158
    %s161 = sphi 0, %s160
    %s175 = sphi 0, %s161
    %s179 = sphi 0, %s179
    %s181 = sphi 0, %s179
    %s182 = sphi 0, %s181
    %s196 = sphi 0, %s182
    %s200 = sphi 0, %s200
    %s202 = sphi 0, %s200
    %s203 = sphi 0, %s202
    %s217 = sphi 0, %s203
    %s221 = sphi 0, %s221
    %s223 = sphi 0, %s221
    %s224 = sphi 0, %s223
    %s238 = sphi 0, %s224
    %s242 = sphi 0, %s242
    %s244 = sphi 0, %s242
    %s245 = sphi 0, %s244
    %s259 = sphi 0, %s245
    %s265 = sphi 0, %s267
    %s268 = sphi 0, %s265
    %s269 = sphi 0, %s268
    %s285 = sphi 0, %s269
  $region4: #{tpu_custom_call.1} parent=0 // loop_header_branch
    %22 = sbr.rel (%p20) target = $region8
  $region5: #{tpu_custom_call.1} parent=0 // loop_body
    %s24 = ssub.s32 %s19, 1
    %s25 = ssub.s32 %s19, 2
    %s26 = sadd.s32 %s19, 1
    %s27 = ssub.s32 %s19, %s26
    %p28 = scmp.eq.s32.totalorder %s27, 0
    %s30 = sadd.s32 %s29, 1
    %s31 = scalar_select %p28, %s29, %s30
    %p34 = pneg %p28
    %p35 = scmp.eq.s32.totalorder %s19, 1
    %p36 = por %p34, %p35
    %p37 = scmp.ne.s32.totalorder %s29, %s32
    %p38 = scmp.eq.s32.totalorder %s19, 0
    %p39 = por %p37, %p38
    %p40 = scmp.ne.s32.totalorder %s29, %s32
    %p41 = scmp.eq.s32.totalorder %s24, 1
    %p42 = por %p40, %p41
    %p43 = scmp.ne.s32.totalorder %s32, %s33
    %p44 = scmp.eq.s32.totalorder %s24, 0
    %p45 = por %p43, %p44
    %p46 = scmp.ne.s32.totalorder %s32, %s33
    %p47 = scmp.eq.s32.totalorder %s25, 1
    %p48 = por %p46, %p47
    %p50 = scmp.ne.s32.totalorder %s33, %s49
    %p51 = scmp.eq.s32.totalorder %s25, 0
    %p52 = por %p50, %p51
    %s54 = sadd.s32 %s53, 1
    %p57 = scmp.eq.s32.totalorder %s19, 1
    %p58 = scmp.ne.s32.totalorder %s53, %s55
    %p59 = scmp.eq.s32.totalorder %s19, 0
    %p60 = por %p58, %p59
    %p61 = scmp.ne.s32.totalorder %s53, %s55
    %p62 = scmp.eq.s32.totalorder %s24, 1
    %p63 = por %p61, %p62
    %p64 = scmp.ne.s32.totalorder %s55, %s56
    %p65 = scmp.eq.s32.totalorder %s24, 0
    %p66 = por %p64, %p65
    %p67 = scmp.ne.s32.totalorder %s55, %s56
    %p68 = scmp.eq.s32.totalorder %s25, 1
    %p69 = por %p67, %p68
    %p71 = scmp.ne.s32.totalorder %s56, %s70
    %p72 = scmp.eq.s32.totalorder %s25, 0
    %p73 = por %p71, %p72
    %s75 = sadd.s32 %s74, 1
    %p78 = scmp.eq.s32.totalorder %s19, 1
    %p79 = scmp.ne.s32.totalorder %s74, %s76
    %p80 = scmp.eq.s32.totalorder %s19, 0
    %p81 = por %p79, %p80
    %p82 = scmp.ne.s32.totalorder %s74, %s76
    %p83 = scmp.eq.s32.totalorder %s24, 1
    %p84 = por %p82, %p83
    %p85 = scmp.ne.s32.totalorder %s76, %s77
    %p86 = scmp.eq.s32.totalorder %s24, 0
    %p87 = por %p85, %p86
    %p88 = scmp.ne.s32.totalorder %s76, %s77
    %p89 = scmp.eq.s32.totalorder %s25, 1
    %p90 = por %p88, %p89
    %p92 = scmp.ne.s32.totalorder %s77, %s91
    %p93 = scmp.eq.s32.totalorder %s25, 0
    %p94 = por %p92, %p93
    %s96 = sadd.s32 %s95, 1
    %p99 = scmp.eq.s32.totalorder %s19, 1
    %p100 = scmp.ne.s32.totalorder %s95, %s97
    %p101 = scmp.eq.s32.totalorder %s19, 0
    %p102 = por %p100, %p101
    %p103 = scmp.ne.s32.totalorder %s95, %s97
    %p104 = scmp.eq.s32.totalorder %s24, 1
    %p105 = por %p103, %p104
    %p106 = scmp.ne.s32.totalorder %s97, %s98
    %p107 = scmp.eq.s32.totalorder %s24, 0
    %p108 = por %p106, %p107
    %p109 = scmp.ne.s32.totalorder %s97, %s98
    %p110 = scmp.eq.s32.totalorder %s25, 1
    %p111 = por %p109, %p110
    %p113 = scmp.ne.s32.totalorder %s98, %s112
    %p114 = scmp.eq.s32.totalorder %s25, 0
    %p115 = por %p113, %p114
    %s117 = sadd.s32 %s116, 1
    %p120 = scmp.eq.s32.totalorder %s19, 1
    %p121 = scmp.ne.s32.totalorder %s116, %s118
    %p122 = scmp.eq.s32.totalorder %s19, 0
    %p123 = por %p121, %p122
    %p124 = scmp.ne.s32.totalorder %s116, %s118
    %p125 = scmp.eq.s32.totalorder %s24, 1
    %p126 = por %p124, %p125
    %p127 = scmp.ne.s32.totalorder %s118, %s119
    %p128 = scmp.eq.s32.totalorder %s24, 0
    %p129 = por %p127, %p128
    %p130 = scmp.ne.s32.totalorder %s118, %s119
    %p131 = scmp.eq.s32.totalorder %s25, 1
    %p132 = por %p130, %p131
    %p134 = scmp.ne.s32.totalorder %s119, %s133
    %p135 = scmp.eq.s32.totalorder %s25, 0
    %p136 = por %p134, %p135
    %s138 = sadd.s32 %s137, 1
    %p141 = scmp.eq.s32.totalorder %s19, 1
    %p142 = scmp.ne.s32.totalorder %s137, %s139
    %p143 = scmp.eq.s32.totalorder %s19, 0
    %p144 = por %p142, %p143
    %p145 = scmp.ne.s32.totalorder %s137, %s139
    %p146 = scmp.eq.s32.totalorder %s24, 1
    %p147 = por %p145, %p146
    %p148 = scmp.ne.s32.totalorder %s139, %s140
    %p149 = scmp.eq.s32.totalorder %s24, 0
    %p150 = por %p148, %p149
    %p151 = scmp.ne.s32.totalorder %s139, %s140
    %p152 = scmp.eq.s32.totalorder %s25, 1
    %p153 = por %p151, %p152
    %p155 = scmp.ne.s32.totalorder %s140, %s154
    %p156 = scmp.eq.s32.totalorder %s25, 0
    %p157 = por %p155, %p156
    %s159 = sadd.s32 %s158, 1
    %p162 = scmp.eq.s32.totalorder %s19, 1
    %p163 = scmp.ne.s32.totalorder %s158, %s160
    %p164 = scmp.eq.s32.totalorder %s19, 0
    %p165 = por %p163, %p164
    %p166 = scmp.ne.s32.totalorder %s158, %s160
    %p167 = scmp.eq.s32.totalorder %s24, 1
    %p168 = por %p166, %p167
    %p169 = scmp.ne.s32.totalorder %s160, %s161
    %p170 = scmp.eq.s32.totalorder %s24, 0
    %p171 = por %p169, %p170
    %p172 = scmp.ne.s32.totalorder %s160, %s161
    %p173 = scmp.eq.s32.totalorder %s25, 1
    %p174 = por %p172, %p173
    %p176 = scmp.ne.s32.totalorder %s161, %s175
    %p177 = scmp.eq.s32.totalorder %s25, 0
    %p178 = por %p176, %p177
    %s180 = sadd.s32 %s179, 1
    %p183 = scmp.eq.s32.totalorder %s19, 1
    %p184 = scmp.ne.s32.totalorder %s179, %s181
    %p185 = scmp.eq.s32.totalorder %s19, 0
    %p186 = por %p184, %p185
    %p187 = scmp.ne.s32.totalorder %s179, %s181
    %p188 = scmp.eq.s32.totalorder %s24, 1
    %p189 = por %p187, %p188
    %p190 = scmp.ne.s32.totalorder %s181, %s182
    %p191 = scmp.eq.s32.totalorder %s24, 0
    %p192 = por %p190, %p191
    %p193 = scmp.ne.s32.totalorder %s181, %s182
    %p194 = scmp.eq.s32.totalorder %s25, 1
    %p195 = por %p193, %p194
    %p197 = scmp.ne.s32.totalorder %s182, %s196
    %p198 = scmp.eq.s32.totalorder %s25, 0
    %p199 = por %p197, %p198
    %s201 = sadd.s32 %s200, 1
    %p204 = scmp.eq.s32.totalorder %s19, 1
    %p205 = scmp.ne.s32.totalorder %s200, %s202
    %p206 = scmp.eq.s32.totalorder %s19, 0
    %p207 = por %p205, %p206
    %p208 = scmp.ne.s32.totalorder %s200, %s202
    %p209 = scmp.eq.s32.totalorder %s24, 1
    %p210 = por %p208, %p209
    %p211 = scmp.ne.s32.totalorder %s202, %s203
    %p212 = scmp.eq.s32.totalorder %s24, 0
    %p213 = por %p211, %p212
    %p214 = scmp.ne.s32.totalorder %s202, %s203
    %p215 = scmp.eq.s32.totalorder %s25, 1
    %p216 = por %p214, %p215
    %p218 = scmp.ne.s32.totalorder %s203, %s217
    %p219 = scmp.eq.s32.totalorder %s25, 0
    %p220 = por %p218, %p219
    %s222 = sadd.s32 %s221, 1
    %p225 = scmp.eq.s32.totalorder %s19, 1
    %p226 = scmp.ne.s32.totalorder %s221, %s223
    %p227 = scmp.eq.s32.totalorder %s19, 0
    %p228 = por %p226, %p227
    %p229 = scmp.ne.s32.totalorder %s221, %s223
    %p230 = scmp.eq.s32.totalorder %s24, 1
    %p231 = por %p229, %p230
    %p232 = scmp.ne.s32.totalorder %s223, %s224
    %p233 = scmp.eq.s32.totalorder %s24, 0
    %p234 = por %p232, %p233
    %p235 = scmp.ne.s32.totalorder %s223, %s224
    %p236 = scmp.eq.s32.totalorder %s25, 1
    %p237 = por %p235, %p236
    %p239 = scmp.ne.s32.totalorder %s224, %s238
    %p240 = scmp.eq.s32.totalorder %s25, 0
    %p241 = por %p239, %p240
    %s243 = sadd.s32 %s242, 1
    %p246 = scmp.eq.s32.totalorder %s19, 1
    %p247 = scmp.ne.s32.totalorder %s242, %s244
    %p248 = scmp.eq.s32.totalorder %s19, 0
    %p249 = por %p247, %p248
    %p250 = scmp.ne.s32.totalorder %s242, %s244
    %p251 = scmp.eq.s32.totalorder %s24, 1
    %p252 = por %p250, %p251
    %p253 = scmp.ne.s32.totalorder %s244, %s245
    %p254 = scmp.eq.s32.totalorder %s24, 0
    %p255 = por %p253, %p254
    %p256 = scmp.ne.s32.totalorder %s244, %s245
    %p257 = scmp.eq.s32.totalorder %s25, 1
    %p258 = por %p256, %p257
    %p260 = scmp.ne.s32.totalorder %s245, %s259
    %p261 = scmp.eq.s32.totalorder %s25, 0
    %p262 = por %p260, %p261
    %s263 = ssub.s32 %s19, %s26
    %p264 = scmp.eq.s32.totalorder %s263, 0
    %s266 = sadd.s32 %s265, 1
    %s267 = scalar_select %p264, %s265, %s266
    %p270 = pneg %p264
    %p271 = scmp.eq.s32.totalorder %s19, 1
    %p272 = por %p270, %p271
    %p273 = scmp.ne.s32.totalorder %s265, %s268
    %p274 = scmp.eq.s32.totalorder %s19, 0
    %p275 = por %p273, %p274
    %p276 = scmp.ne.s32.totalorder %s265, %s268
    %p277 = scmp.eq.s32.totalorder %s24, 1
    %p278 = por %p276, %p277
    %p279 = scmp.ne.s32.totalorder %s268, %s269
    %p280 = scmp.eq.s32.totalorder %s24, 0
    %p281 = por %p279, %p280
    %p282 = scmp.ne.s32.totalorder %s268, %s269
    %p283 = scmp.eq.s32.totalorder %s25, 1
    %p284 = por %p282, %p283
    %p286 = scmp.ne.s32.totalorder %s269, %s285
    %p287 = scmp.eq.s32.totalorder %s25, 0
    %p288 = por %p286, %p287
    %p289 = scmp.le.s32.totalorder 1, %s19
    %p290 = scmp.lt.s32.totalorder %s19, 3
    %p291 = pnand %p289, %p290
    %p292 = pneg %p291
    // Predicated region
    $region9: #{tpu_custom_call.1} parent=5 // pred_check
      _
    $region10: #{tpu_custom_call.1} parent=5 // pred_check_branch
      %294 = sbr.rel (%p291) target = $region12
    $region11: #{tpu_custom_call.1} parent=5 // pred_region
      %s295 = ssub.s32 %s19, 1
      // Predicated region
      $region13: #{tpu_custom_call.1} parent=11 // pred_check
        %p296 = pneg %p66
      $region14: #{tpu_custom_call.1} parent=11 // pred_check_branch
        %298 = sbr.rel (%p296) target = $region16
      $region15: #{tpu_custom_call.1} parent=11 // pred_region
        _
      $region16: #{tpu_custom_call.1} parent=11 // pred_fallthru
        _
      // Predicated region
      $region17: #{tpu_custom_call.1} parent=11 // pred_check
        %p299 = pneg %p87
      $region18: #{tpu_custom_call.1} parent=11 // pred_check_branch
        %301 = sbr.rel (%p299) target = $region20
      $region19: #{tpu_custom_call.1} parent=11 // pred_region
        _
      $region20: #{tpu_custom_call.1} parent=11 // pred_fallthru
        _
      // Predicated region
      $region21: #{tpu_custom_call.1} parent=11 // pred_check
        %p302 = pneg %p108
      $region22: #{tpu_custom_call.1} parent=11 // pred_check_branch
        %304 = sbr.rel (%p302) target = $region24
      $region23: #{tpu_custom_call.1} parent=11 // pred_region
        _
      $region24: #{tpu_custom_call.1} parent=11 // pred_fallthru
        _
      // Predicated region
      $region25: #{tpu_custom_call.1} parent=11 // pred_check
        %p305 = pneg %p129
      $region26: #{tpu_custom_call.1} parent=11 // pred_check_branch
        %307 = sbr.rel (%p305) target = $region28
      $region27: #{tpu_custom_call.1} parent=11 // pred_region
        _
      $region28: #{tpu_custom_call.1} parent=11 // pred_fallthru
        _
      // Predicated region
      $region29: #{tpu_custom_call.1} parent=11 // pred_check
        %p308 = pneg %p150
      $region30: #{tpu_custom_call.1} parent=11 // pred_check_branch
        %310 = sbr.rel (%p308) target = $region32
      $region31: #{tpu_custom_call.1} parent=11 // pred_region
        _
      $region32: #{tpu_custom_call.1} parent=11 // pred_fallthru
        _
      // Predicated region
      $region33: #{tpu_custom_call.1} parent=11 // pred_check
        %p311 = pneg %p171
      $region34: #{tpu_custom_call.1} parent=11 // pred_check_branch
        %313 = sbr.rel (%p311) target = $region36
      $region35: #{tpu_custom_call.1} parent=11 // pred_region
        _
      $region36: #{tpu_custom_call.1} parent=11 // pred_fallthru
        _
      // Predicated region
      $region37: #{tpu_custom_call.1} parent=11 // pred_check
        %p314 = pneg %p192
      $region38: #{tpu_custom_call.1} parent=11 // pred_check_branch
        %316 = sbr.rel (%p314) target = $region40
      $region39: #{tpu_custom_call.1} parent=11 // pred_region
        _
      $region40: #{tpu_custom_call.1} parent=11 // pred_fallthru
        _
      // Predicated region
      $region41: #{tpu_custom_call.1} parent=11 // pred_check
        %p317 = pneg %p213
      $region42: #{tpu_custom_call.1} parent=11 // pred_check_branch
        %319 = sbr.rel (%p317) target = $region44
      $region43: #{tpu_custom_call.1} parent=11 // pred_region
        _
      $region44: #{tpu_custom_call.1} parent=11 // pred_fallthru
        _
      // Predicated region
      $region45: #{tpu_custom_call.1} parent=11 // pred_check
        %p320 = pneg %p234
      $region46: #{tpu_custom_call.1} parent=11 // pred_check_branch
        %322 = sbr.rel (%p320) target = $region48
      $region47: #{tpu_custom_call.1} parent=11 // pred_region
        _
      $region48: #{tpu_custom_call.1} parent=11 // pred_fallthru
        _
      // Predicated region
      $region49: #{tpu_custom_call.1} parent=11 // pred_check
        %p323 = pneg %p255
      $region50: #{tpu_custom_call.1} parent=11 // pred_check_branch
        %325 = sbr.rel (%p323) target = $region52
      $region51: #{tpu_custom_call.1} parent=11 // pred_region
        _
      $region52: #{tpu_custom_call.1} parent=11 // pred_fallthru
        _
    $region12: #{tpu_custom_call.1} parent=5 // pred_fallthru
      _
    %p326 = scmp.lt.s32.totalorder %s19, 2
    // Predicated region
    $region53: #{tpu_custom_call.1} parent=5 // pred_check
      %p327 = pneg %p326
    $region54: #{tpu_custom_call.1} parent=5 // pred_check_branch
      %329 = sbr.rel (%p327) target = $region56
    $region55: #{tpu_custom_call.1} parent=5 // pred_region
      // Predicated region
      $region57: #{tpu_custom_call.1} parent=55 // pred_check
        %p330 = pneg %p39
      $region58: #{tpu_custom_call.1} parent=55 // pred_check_branch
        %332 = sbr.rel (%p330) target = $region60
      $region59: #{tpu_custom_call.1} parent=55 // pred_region
        %p333 = scmp.lt.s32.totalorder %s19, 1
        %s334 = scalar_select %p333, %s19, 1
        %s335 = smul.addr %s334, 32
        %s336 = smul.addr %s335, 8
        %s337 = scalar_lea.vmem %s0, %s336
      $region60: #{tpu_custom_call.1} parent=55 // pred_fallthru
        _
    $region56: #{tpu_custom_call.1} parent=5 // pred_fallthru
      _
    %p338 = scmp.le.s32.totalorder 1, %s19
    %p339 = scmp.lt.s32.totalorder %s19, 3
    %p340 = pnand %p338, %p339
    %p341 = pneg %p340
    // Predicated region
    $region61: #{tpu_custom_call.1} parent=5 // pred_check
      _
    $region62: #{tpu_custom_call.1} parent=5 // pred_check_branch
      %343 = sbr.rel (%p340) target = $region64
    $region63: #{tpu_custom_call.1} parent=5 // pred_region
      %s344 = ssub.s32 %s19, 1
      %p345 = scmp.lt.s32.totalorder %s24, 1
      %s346 = scalar_select %p345, %s24, 1
      %s347 = smul.addr %s346, 32
      %s348 = smul.addr %s347, 8
      %s349 = scalar_lea.vmem %s0, %s348
      %p350 = pneg %p45
      %p351 = pneg %p42
      %p352 = pneg %p66
      %p353 = pneg %p63
      %p354 = pneg %p87
      %p355 = pneg %p84
      %p356 = pneg %p108
      %p357 = pneg %p105
      %p358 = pneg %p129
      %p359 = pneg %p126
      %p360 = pneg %p150
      %p361 = pneg %p147
      %p362 = pneg %p171
      %p363 = pneg %p168
      %p364 = pneg %p192
      %p365 = pneg %p189
      %p366 = pneg %p213
      %p367 = pneg %p210
      %p368 = pneg %p234
      %p369 = pneg %p231
      %p370 = pneg %p255
      %p371 = pneg %p252
      %p372 = pneg %p281
      %p373 = pneg %p278
      %p374 = scmp.lt.s32.totalorder %s24, 1
      %s375 = scalar_select %p374, %s24, 1
      %s376 = smul.addr %s375, 32
      %s377 = smul.addr %s376, 8
      %s378 = scalar_lea.vmem %s11, %s377
      %p379 = scmp.lt.s32.totalorder %s24, 1
      %s380 = scalar_select %p379, %s24, 1
      %s381 = smul.addr %s380, 32
      %s382 = smul.addr %s381, 8
      %s383 = scalar_lea.vmem %s0, %s382
      %p384 = scmp.lt.s32.totalorder %s24, 1
      %s385 = scalar_select %p384, %s24, 1
      %s386 = smul.addr %s385, 32
      %s387 = smul.addr %s386, 8
      %s388 = scalar_lea.vmem %s11, %s387
      %vm390 = vcmask 130048
      %391 = vst.msk [vmem:[#allocation2] sm:$0xff] %vm390, 0.0
      %392 = vst.msk [vmem:[#allocation2 + $0x8] sm:$0xff] %vm390, 0.0
      %393 = vst.msk [vmem:[#allocation2 + $0x10] sm:$0xff] %vm390, 0.0
      %394 = vst.msk [vmem:[#allocation2 + $0x18] sm:$0xff] %vm390, 0.0
      %s395 = scalar_lea.vmem [#allocation2], 544
      %396 = vst.msk [vmem:[%s395] sm:$0xff] %vm390, 0.0
      %397 = vst.msk [vmem:[%s395 + $0x8] sm:$0xff] %vm390, 0.0
      %398 = vst.msk [vmem:[%s395 + $0x10] sm:$0xff] %vm390, 0.0
      %399 = vst.msk [vmem:[%s395 + $0x18] sm:$0xff] %vm390, 0.0
      %s400 = scalar_lea.vmem [#allocation2], 32
      %vm401 = vcmask 122880
      %402 = vst.msk [vmem:[%s400 + $0x7] sm:$0x1] %vm401, 0.0
      %403 = vst.msk [vmem:[%s400 + $0x27] sm:$0x1] %vm401, 0.0
      %404 = vst.msk [vmem:[%s400 + $0x47] sm:$0x1] %vm401, 0.0
      %405 = vst.msk [vmem:[%s400 + $0x67] sm:$0x1] %vm401, 0.0
      %406 = vst.msk [vmem:[%s400 + $0x87] sm:$0x1] %vm401, 0.0
      %407 = vst.msk [vmem:[%s400 + $0xa7] sm:$0x1] %vm401, 0.0
      %408 = vst.msk [vmem:[%s400 + $0xc7] sm:$0x1] %vm401, 0.0
      %409 = vst.msk [vmem:[%s400 + $0xe7] sm:$0x1] %vm401, 0.0
      %410 = vst.msk [vmem:[%s400 + $0x107] sm:$0x1] %vm401, 0.0
      %411 = vst.msk [vmem:[%s400 + $0x127] sm:$0x1] %vm401, 0.0
      %412 = vst.msk [vmem:[%s400 + $0x147] sm:$0x1] %vm401, 0.0
      %413 = vst.msk [vmem:[%s400 + $0x167] sm:$0x1] %vm401, 0.0
      %414 = vst.msk [vmem:[%s400 + $0x187] sm:$0x1] %vm401, 0.0
      %415 = vst.msk [vmem:[%s400 + $0x1a7] sm:$0x1] %vm401, 0.0
      %416 = vst.msk [vmem:[%s400 + $0x1c7] sm:$0x1] %vm401, 0.0
      %417 = vst.msk [vmem:[%s400 + $0x1e7] sm:$0x1] %vm401, 0.0
      %418 = vst.msk [vmem:[%s400 + $0x18] sm:$0x1] %vm401, 0.0
      %419 = vst.msk [vmem:[%s400 + $0x38] sm:$0x1] %vm401, 0.0
      %420 = vst.msk [vmem:[%s400 + $0x58] sm:$0x1] %vm401, 0.0
      %421 = vst.msk [vmem:[%s400 + $0x78] sm:$0x1] %vm401, 0.0
      %422 = vst.msk [vmem:[%s400 + $0x98] sm:$0x1] %vm401, 0.0
      %423 = vst.msk [vmem:[%s400 + $0xb8] sm:$0x1] %vm401, 0.0
      %424 = vst.msk [vmem:[%s400 + $0xd8] sm:$0x1] %vm401, 0.0
      %425 = vst.msk [vmem:[%s400 + $0xf8] sm:$0x1] %vm401, 0.0
      %426 = vst.msk [vmem:[%s400 + $0x118] sm:$0x1] %vm401, 0.0
      %427 = vst.msk [vmem:[%s400 + $0x138] sm:$0x1] %vm401, 0.0
      %428 = vst.msk [vmem:[%s400 + $0x158] sm:$0x1] %vm401, 0.0
      %429 = vst.msk [vmem:[%s400 + $0x178] sm:$0x1] %vm401, 0.0
      %430 = vst.msk [vmem:[%s400 + $0x198] sm:$0x1] %vm401, 0.0
      %431 = vst.msk [vmem:[%s400 + $0x1b8] sm:$0x1] %vm401, 0.0
      %432 = vst.msk [vmem:[%s400 + $0x1d8] sm:$0x1] %vm401, 0.0
      %433 = vst.msk [vmem:[%s400 + $0x1f8] sm:$0x1] %vm401, 0.0
      %v434 = vld [vmem:[%s383] sm:$0xff]
      %v435 = vld [vmem:[%s383 + $0x8] sm:$0xff]
      %v436 = vld [vmem:[%s383 + $0x10] sm:$0xff]
      %v437 = vld [vmem:[%s383 + $0x18] sm:$0xff]
      %v438 = vld [vmem:[%s383 + $0x20] sm:$0xff]
      %v439 = vld [vmem:[%s383 + $0x28] sm:$0xff]
      %v440 = vld [vmem:[%s383 + $0x30] sm:$0xff]
      %v441 = vld [vmem:[%s383 + $0x38] sm:$0xff]
      %v442 = vld [vmem:[%s383 + $0x40] sm:$0xff]
      %v443 = vld [vmem:[%s383 + $0x48] sm:$0xff]
      %v444 = vld [vmem:[%s383 + $0x50] sm:$0xff]
      %v445 = vld [vmem:[%s383 + $0x58] sm:$0xff]
      %v446 = vld [vmem:[%s383 + $0x60] sm:$0xff]
      %v447 = vld [vmem:[%s383 + $0x68] sm:$0xff]
      %v448 = vld [vmem:[%s383 + $0x70] sm:$0xff]
      %v449 = vld [vmem:[%s383 + $0x78] sm:$0xff]
      %v450 = vld [vmem:[%s383 + $0x80] sm:$0xff]
      %v451 = vld [vmem:[%s383 + $0x88] sm:$0xff]
      %v452 = vld [vmem:[%s383 + $0x90] sm:$0xff]
      %v453 = vld [vmem:[%s383 + $0x98] sm:$0xff]
      %v454 = vld [vmem:[%s383 + $0xa0] sm:$0xff]
      %v455 = vld [vmem:[%s383 + $0xa8] sm:$0xff]
      %v456 = vld [vmem:[%s383 + $0xb0] sm:$0xff]
      %v457 = vld [vmem:[%s383 + $0xb8] sm:$0xff]
      %v458 = vld [vmem:[%s383 + $0xc0] sm:$0xff]
      %v459 = vld [vmem:[%s383 + $0xc8] sm:$0xff]
      %v460 = vld [vmem:[%s383 + $0xd0] sm:$0xff]
      %v461 = vld [vmem:[%s383 + $0xd8] sm:$0xff]
      %v462 = vld [vmem:[%s383 + $0xe0] sm:$0xff]
      %v463 = vld [vmem:[%s383 + $0xe8] sm:$0xff]
      %v464 = vld [vmem:[%s383 + $0xf0] sm:$0xff]
      %v465 = vld [vmem:[%s383 + $0xf8] sm:$0xff]
      %v466 = vld [vmem:[%s2] sm:$0x1]
      %v467 = vld [vmem:[%s1] sm:$0xf]
      %v469 = vlaneseq
      %v470 = vshrl.u32 %v469, 7
      %v471 = vsub.s32 0, %v470
      %v472 = vrot.slane %v466, %v471
      %475 = vset.pattern.permute.xlu0 0
      %476 = vperm.xlu0 %475, %v434
      %v477 = vpop.permute.xlu0 %476
      %480 = vset.pattern.permute.xlu0 0
      %481 = vperm.xlu0 %480, %v435
      %v482 = vpop.permute.xlu0 %481
      %485 = vset.pattern.permute.xlu0 0
      %486 = vperm.xlu0 %485, %v436
      %v487 = vpop.permute.xlu0 %486
      %490 = vset.pattern.permute.xlu0 0
      %491 = vperm.xlu0 %490, %v437
      %v492 = vpop.permute.xlu0 %491
      %495 = vset.pattern.permute.xlu0 0
      %496 = vperm.xlu0 %495, %v438
      %v497 = vpop.permute.xlu0 %496
      %500 = vset.pattern.permute.xlu0 0
      %501 = vperm.xlu0 %500, %v439
      %v502 = vpop.permute.xlu0 %501
      %505 = vset.pattern.permute.xlu0 0
      %506 = vperm.xlu0 %505, %v440
      %v507 = vpop.permute.xlu0 %506
      %510 = vset.pattern.permute.xlu0 0
      %511 = vperm.xlu0 %510, %v441
      %v512 = vpop.permute.xlu0 %511
      %515 = vset.pattern.permute.xlu0 0
      %516 = vperm.xlu0 %515, %v442
      %v517 = vpop.permute.xlu0 %516
      %520 = vset.pattern.permute.xlu0 0
      %521 = vperm.xlu0 %520, %v443
      %v522 = vpop.permute.xlu0 %521
      %525 = vset.pattern.permute.xlu0 0
      %526 = vperm.xlu0 %525, %v444
      %v527 = vpop.permute.xlu0 %526
      %530 = vset.pattern.permute.xlu0 0
      %531 = vperm.xlu0 %530, %v445
      %v532 = vpop.permute.xlu0 %531
      %535 = vset.pattern.permute.xlu0 0
      %536 = vperm.xlu0 %535, %v446
      %v537 = vpop.permute.xlu0 %536
      %540 = vset.pattern.permute.xlu0 0
      %541 = vperm.xlu0 %540, %v447
      %v542 = vpop.permute.xlu0 %541
      %545 = vset.pattern.permute.xlu0 0
      %546 = vperm.xlu0 %545, %v448
      %v547 = vpop.permute.xlu0 %546
      %550 = vset.pattern.permute.xlu0 0
      %551 = vperm.xlu0 %550, %v449
      %v552 = vpop.permute.xlu0 %551
      %555 = vset.pattern.permute.xlu0 0
      %556 = vperm.xlu0 %555, %v450
      %v557 = vpop.permute.xlu0 %556
      %560 = vset.pattern.permute.xlu0 0
      %561 = vperm.xlu0 %560, %v451
      %v562 = vpop.permute.xlu0 %561
      %565 = vset.pattern.permute.xlu0 0
      %566 = vperm.xlu0 %565, %v452
      %v567 = vpop.permute.xlu0 %566
      %570 = vset.pattern.permute.xlu0 0
      %571 = vperm.xlu0 %570, %v453
      %v572 = vpop.permute.xlu0 %571
      %575 = vset.pattern.permute.xlu0 0
      %576 = vperm.xlu0 %575, %v454
      %v577 = vpop.permute.xlu0 %576
      %580 = vset.pattern.permute.xlu0 0
      %581 = vperm.xlu0 %580, %v455
      %v582 = vpop.permute.xlu0 %581
      %585 = vset.pattern.permute.xlu0 0
      %586 = vperm.xlu0 %585, %v456
      %v587 = vpop.permute.xlu0 %586
      %590 = vset.pattern.permute.xlu0 0
      %591 = vperm.xlu0 %590, %v457
      %v592 = vpop.permute.xlu0 %591
      %595 = vset.pattern.permute.xlu0 0
      %596 = vperm.xlu0 %595, %v458
      %v597 = vpop.permute.xlu0 %596
      %600 = vset.pattern.permute.xlu0 0
      %601 = vperm.xlu0 %600, %v459
      %v602 = vpop.permute.xlu0 %601
      %605 = vset.pattern.permute.xlu0 0
      %606 = vperm.xlu0 %605, %v460
      %v607 = vpop.permute.xlu0 %606
      %610 = vset.pattern.permute.xlu0 0
      %611 = vperm.xlu0 %610, %v461
      %v612 = vpop.permute.xlu0 %611
      %615 = vset.pattern.permute.xlu0 0
      %616 = vperm.xlu0 %615, %v462
      %v617 = vpop.permute.xlu0 %616
      %620 = vset.pattern.permute.xlu0 0
      %621 = vperm.xlu0 %620, %v463
      %v622 = vpop.permute.xlu0 %621
      %625 = vset.pattern.permute.xlu0 0
      %626 = vperm.xlu0 %625, %v464
      %v627 = vpop.permute.xlu0 %626
      %630 = vset.pattern.permute.xlu0 0
      %631 = vperm.xlu0 %630, %v465
      %v632 = vpop.permute.xlu0 %631
      %v634 = vlaneseq
      %v635 = vshrl.u32 %v634, 7
      %v636 = vsub.s32 0, %v635
      %v637 = vrot.slane %v467, %v636
      %v638 = vmul.f32 %v477, %v637
      %v639 = vmul.f32 %v482, %v637
      %v640 = vmul.f32 %v487, %v637
      %v641 = vmul.f32 %v492, %v637
      %v642 = vmul.f32 %v497, %v637
      %v643 = vmul.f32 %v502, %v637
      %v644 = vmul.f32 %v507, %v637
      %v645 = vmul.f32 %v512, %v637
      %v646 = vmul.f32 %v517, %v637
      %v647 = vmul.f32 %v522, %v637
      %v648 = vmul.f32 %v527, %v637
      %v649 = vmul.f32 %v532, %v637
      %v650 = vmul.f32 %v537, %v637
      %v651 = vmul.f32 %v542, %v637
      %v652 = vmul.f32 %v547, %v637
      %v653 = vmul.f32 %v552, %v637
      %v654 = vmul.f32 %v557, %v637
      %v655 = vmul.f32 %v562, %v637
      %v656 = vmul.f32 %v567, %v637
      %v657 = vmul.f32 %v572, %v637
      %v658 = vmul.f32 %v577, %v637
      %v659 = vmul.f32 %v582, %v637
      %v660 = vmul.f32 %v587, %v637
      %v661 = vmul.f32 %v592, %v637
      %v662 = vmul.f32 %v597, %v637
      %v663 = vmul.f32 %v602, %v637
      %v664 = vmul.f32 %v607, %v637
      %v665 = vmul.f32 %v612, %v637
      %v666 = vmul.f32 %v617, %v637
      %v667 = vmul.f32 %v622, %v637
      %v668 = vmul.f32 %v627, %v637
      %v669 = vmul.f32 %v632, %v637
      %v670 = vadd.f32 %v472, %v638
      %v671 = vadd.f32 %v472, %v639
      %v672 = vadd.f32 %v472, %v640
      %v673 = vadd.f32 %v472, %v641
      %v674 = vadd.f32 %v472, %v642
      %v675 = vadd.f32 %v472, %v643
      %v676 = vadd.f32 %v472, %v644
      %v677 = vadd.f32 %v472, %v645
      %v678 = vadd.f32 %v472, %v646
      %v679 = vadd.f32 %v472, %v647
      %v680 = vadd.f32 %v472, %v648
      %v681 = vadd.f32 %v472, %v649
      %v682 = vadd.f32 %v472, %v650
      %v683 = vadd.f32 %v472, %v651
      %v684 = vadd.f32 %v472, %v652
      %v685 = vadd.f32 %v472, %v653
      %v686 = vadd.f32 %v472, %v654
      %v687 = vadd.f32 %v472, %v655
      %v688 = vadd.f32 %v472, %v656
      %v689 = vadd.f32 %v472, %v657
      %v690 = vadd.f32 %v472, %v658
      %v691 = vadd.f32 %v472, %v659
      %v692 = vadd.f32 %v472, %v660
      %v693 = vadd.f32 %v472, %v661
      %v694 = vadd.f32 %v472, %v662
      %v695 = vadd.f32 %v472, %v663
      %v696 = vadd.f32 %v472, %v664
      %v697 = vadd.f32 %v472, %v665
      %v698 = vadd.f32 %v472, %v666
      %v699 = vadd.f32 %v472, %v667
      %v700 = vadd.f32 %v472, %v668
      %v701 = vadd.f32 %v472, %v669
      %702 = vset.pattern.permute.xlu0 1
      %703 = vperm.xlu0 %702, %v434
      %v704 = vpop.permute.xlu0 %703
      %706 = vset.pattern.permute.xlu0 1
      %707 = vperm.xlu0 %706, %v435
      %v708 = vpop.permute.xlu0 %707
      %710 = vset.pattern.permute.xlu0 1
      %711 = vperm.xlu0 %710, %v436
      %v712 = vpop.permute.xlu0 %711
      %714 = vset.pattern.permute.xlu0 1
      %715 = vperm.xlu0 %714, %v437
      %v716 = vpop.permute.xlu0 %715
      %718 = vset.pattern.permute.xlu0 1
      %719 = vperm.xlu0 %718, %v438
      %v720 = vpop.permute.xlu0 %719
      %722 = vset.pattern.permute.xlu0 1
      %723 = vperm.xlu0 %722, %v439
      %v724 = vpop.permute.xlu0 %723
      %726 = vset.pattern.permute.xlu0 1
      %727 = vperm.xlu0 %726, %v440
      %v728 = vpop.permute.xlu0 %727
      %730 = vset.pattern.permute.xlu0 1
      %731 = vperm.xlu0 %730, %v441
      %v732 = vpop.permute.xlu0 %731
      %734 = vset.pattern.permute.xlu0 1
      %735 = vperm.xlu0 %734, %v442
      %v736 = vpop.permute.xlu0 %735
      %738 = vset.pattern.permute.xlu0 1
      %739 = vperm.xlu0 %738, %v443
      %v740 = vpop.permute.xlu0 %739
      %742 = vset.pattern.permute.xlu0 1
      %743 = vperm.xlu0 %742, %v444
      %v744 = vpop.permute.xlu0 %743
      %746 = vset.pattern.permute.xlu0 1
      %747 = vperm.xlu0 %746, %v445
      %v748 = vpop.permute.xlu0 %747
      %750 = vset.pattern.permute.xlu0 1
      %751 = vperm.xlu0 %750, %v446
      %v752 = vpop.permute.xlu0 %751
      %754 = vset.pattern.permute.xlu0 1
      %755 = vperm.xlu0 %754, %v447
      %v756 = vpop.permute.xlu0 %755
      %758 = vset.pattern.permute.xlu0 1
      %759 = vperm.xlu0 %758, %v448
      %v760 = vpop.permute.xlu0 %759
      %762 = vset.pattern.permute.xlu0 1
      %763 = vperm.xlu0 %762, %v449
      %v764 = vpop.permute.xlu0 %763
      %766 = vset.pattern.permute.xlu0 1
      %767 = vperm.xlu0 %766, %v450
      %v768 = vpop.permute.xlu0 %767
      %770 = vset.pattern.permute.xlu0 1
      %771 = vperm.xlu0 %770, %v451
      %v772 = vpop.permute.xlu0 %771
      %774 = vset.pattern.permute.xlu0 1
      %775 = vperm.xlu0 %774, %v452
      %v776 = vpop.permute.xlu0 %775
      %778 = vset.pattern.permute.xlu0 1
      %779 = vperm.xlu0 %778, %v453
      %v780 = vpop.permute.xlu0 %779
      %782 = vset.pattern.permute.xlu0 1
      %783 = vperm.xlu0 %782, %v454
      %v784 = vpop.permute.xlu0 %783
      %786 = vset.pattern.permute.xlu0 1
      %787 = vperm.xlu0 %786, %v455
      %v788 = vpop.permute.xlu0 %787
      %790 = vset.pattern.permute.xlu0 1
      %791 = vperm.xlu0 %790, %v456
      %v792 = vpop.permute.xlu0 %791
      %794 = vset.pattern.permute.xlu0 1
      %795 = vperm.xlu0 %794, %v457
      %v796 = vpop.permute.xlu0 %795
      %798 = vset.pattern.permute.xlu0 1
      %799 = vperm.xlu0 %798, %v458
      %v800 = vpop.permute.xlu0 %799
      %802 = vset.pattern.permute.xlu0 1
      %803 = vperm.xlu0 %802, %v459
      %v804 = vpop.permute.xlu0 %803
      %806 = vset.pattern.permute.xlu0 1
      %807 = vperm.xlu0 %806, %v460
      %v808 = vpop.permute.xlu0 %807
      %810 = vset.pattern.permute.xlu0 1
      %811 = vperm.xlu0 %810, %v461
      %v812 = vpop.permute.xlu0 %811
      %814 = vset.pattern.permute.xlu0 1
      %815 = vperm.xlu0 %814, %v462
      %v816 = vpop.permute.xlu0 %815
      %818 = vset.pattern.permute.xlu0 1
      %819 = vperm.xlu0 %818, %v463
      %v820 = vpop.permute.xlu0 %819
      %822 = vset.pattern.permute.xlu0 1
      %823 = vperm.xlu0 %822, %v464
      %v824 = vpop.permute.xlu0 %823
      %826 = vset.pattern.permute.xlu0 1
      %827 = vperm.xlu0 %826, %v465
      %v828 = vpop.permute.xlu0 %827
      %v830 = vlaneseq
      %v831 = vshrl.u32 %v830, 7
      %v832 = vsub.s32 1, %v831
      %v833 = vrot.slane %v467, %v832
      %v834 = vmul.f32 %v704, %v833
      %v835 = vmul.f32 %v708, %v833
      %v836 = vmul.f32 %v712, %v833
      %v837 = vmul.f32 %v716, %v833
      %v838 = vmul.f32 %v720, %v833
      %v839 = vmul.f32 %v724, %v833
      %v840 = vmul.f32 %v728, %v833
      %v841 = vmul.f32 %v732, %v833
      %v842 = vmul.f32 %v736, %v833
      %v843 = vmul.f32 %v740, %v833
      %v844 = vmul.f32 %v744, %v833
      %v845 = vmul.f32 %v748, %v833
      %v846 = vmul.f32 %v752, %v833
      %v847 = vmul.f32 %v756, %v833
      %v848 = vmul.f32 %v760, %v833
      %v849 = vmul.f32 %v764, %v833
      %v850 = vmul.f32 %v768, %v833
      %v851 = vmul.f32 %v772, %v833
      %v852 = vmul.f32 %v776, %v833
      %v853 = vmul.f32 %v780, %v833
      %v854 = vmul.f32 %v784, %v833
      %v855 = vmul.f32 %v788, %v833
      %v856 = vmul.f32 %v792, %v833
      %v857 = vmul.f32 %v796, %v833
      %v858 = vmul.f32 %v800, %v833
      %v859 = vmul.f32 %v804, %v833
      %v860 = vmul.f32 %v808, %v833
      %v861 = vmul.f32 %v812, %v833
      %v862 = vmul.f32 %v816, %v833
      %v863 = vmul.f32 %v820, %v833
      %v864 = vmul.f32 %v824, %v833
      %v865 = vmul.f32 %v828, %v833
      %v866 = vadd.f32 %v670, %v834
      %v867 = vadd.f32 %v671, %v835
      %v868 = vadd.f32 %v672, %v836
      %v869 = vadd.f32 %v673, %v837
      %v870 = vadd.f32 %v674, %v838
      %v871 = vadd.f32 %v675, %v839
      %v872 = vadd.f32 %v676, %v840
      %v873 = vadd.f32 %v677, %v841
      %v874 = vadd.f32 %v678, %v842
      %v875 = vadd.f32 %v679, %v843
      %v876 = vadd.f32 %v680, %v844
      %v877 = vadd.f32 %v681, %v845
      %v878 = vadd.f32 %v682, %v846
      %v879 = vadd.f32 %v683, %v847
      %v880 = vadd.f32 %v684, %v848
      %v881 = vadd.f32 %v685, %v849
      %v882 = vadd.f32 %v686, %v850
      %v883 = vadd.f32 %v687, %v851
      %v884 = vadd.f32 %v688, %v852
      %v885 = vadd.f32 %v689, %v853
      %v886 = vadd.f32 %v690, %v854
      %v887 = vadd.f32 %v691, %v855
      %v888 = vadd.f32 %v692, %v856
      %v889 = vadd.f32 %v693, %v857
      %v890 = vadd.f32 %v694, %v858
      %v891 = vadd.f32 %v695, %v859
      %v892 = vadd.f32 %v696, %v860
      %v893 = vadd.f32 %v697, %v861
      %v894 = vadd.f32 %v698, %v862
      %v895 = vadd.f32 %v699, %v863
      %v896 = vadd.f32 %v700, %v864
      %v897 = vadd.f32 %v701, %v865
      %898 = vset.pattern.permute.xlu0 2
      %899 = vperm.xlu0 %898, %v434
      %v900 = vpop.permute.xlu0 %899
      %902 = vset.pattern.permute.xlu0 2
      %903 = vperm.xlu0 %902, %v435
      %v904 = vpop.permute.xlu0 %903
      %906 = vset.pattern.permute.xlu0 2
      %907 = vperm.xlu0 %906, %v436
      %v908 = vpop.permute.xlu0 %907
      %910 = vset.pattern.permute.xlu0 2
      %911 = vperm.xlu0 %910, %v437
      %v912 = vpop.permute.xlu0 %911
      %914 = vset.pattern.permute.xlu0 2
      %915 = vperm.xlu0 %914, %v438
      %v916 = vpop.permute.xlu0 %915
      %918 = vset.pattern.permute.xlu0 2
      %919 = vperm.xlu0 %918, %v439
      %v920 = vpop.permute.xlu0 %919
      %922 = vset.pattern.permute.xlu0 2
      %923 = vperm.xlu0 %922, %v440
      %v924 = vpop.permute.xlu0 %923
      %926 = vset.pattern.permute.xlu0 2
      %927 = vperm.xlu0 %926, %v441
      %v928 = vpop.permute.xlu0 %927
      %930 = vset.pattern.permute.xlu0 2
      %931 = vperm.xlu0 %930, %v442
      %v932 = vpop.permute.xlu0 %931
      %934 = vset.pattern.permute.xlu0 2
      %935 = vperm.xlu0 %934, %v443
      %v936 = vpop.permute.xlu0 %935
      %938 = vset.pattern.permute.xlu0 2
      %939 = vperm.xlu0 %938, %v444
      %v940 = vpop.permute.xlu0 %939
      %942 = vset.pattern.permute.xlu0 2
      %943 = vperm.xlu0 %942, %v445
      %v944 = vpop.permute.xlu0 %943
      %946 = vset.pattern.permute.xlu0 2
      %947 = vperm.xlu0 %946, %v446
      %v948 = vpop.permute.xlu0 %947
      %950 = vset.pattern.permute.xlu0 2
      %951 = vperm.xlu0 %950, %v447
      %v952 = vpop.permute.xlu0 %951
      %954 = vset.pattern.permute.xlu0 2
      %955 = vperm.xlu0 %954, %v448
      %v956 = vpop.permute.xlu0 %955
      %958 = vset.pattern.permute.xlu0 2
      %959 = vperm.xlu0 %958, %v449
      %v960 = vpop.permute.xlu0 %959
      %962 = vset.pattern.permute.xlu0 2
      %963 = vperm.xlu0 %962, %v450
      %v964 = vpop.permute.xlu0 %963
      %966 = vset.pattern.permute.xlu0 2
      %967 = vperm.xlu0 %966, %v451
      %v968 = vpop.permute.xlu0 %967
      %970 = vset.pattern.permute.xlu0 2
      %971 = vperm.xlu0 %970, %v452
      %v972 = vpop.permute.xlu0 %971
      %974 = vset.pattern.permute.xlu0 2
      %975 = vperm.xlu0 %974, %v453
      %v976 = vpop.permute.xlu0 %975
      %978 = vset.pattern.permute.xlu0 2
      %979 = vperm.xlu0 %978, %v454
      %v980 = vpop.permute.xlu0 %979
      %982 = vset.pattern.permute.xlu0 2
      %983 = vperm.xlu0 %982, %v455
      %v984 = vpop.permute.xlu0 %983
      %986 = vset.pattern.permute.xlu0 2
      %987 = vperm.xlu0 %986, %v456
      %v988 = vpop.permute.xlu0 %987
      %990 = vset.pattern.permute.xlu0 2
      %991 = vperm.xlu0 %990, %v457
      %v992 = vpop.permute.xlu0 %991
      %994 = vset.pattern.permute.xlu0 2
      %995 = vperm.xlu0 %994, %v458
      %v996 = vpop.permute.xlu0 %995
      %998 = vset.pattern.permute.xlu0 2
      %999 = vperm.xlu0 %998, %v459
      %v1000 = vpop.permute.xlu0 %999
      %1002 = vset.pattern.permute.xlu0 2
      %1003 = vperm.xlu0 %1002, %v460
      %v1004 = vpop.permute.xlu0 %1003
      %1006 = vset.pattern.permute.xlu0 2
      %1007 = vperm.xlu0 %1006, %v461
      %v1008 = vpop.permute.xlu0 %1007
      %1010 = vset.pattern.permute.xlu0 2
      %1011 = vperm.xlu0 %1010, %v462
      %v1012 = vpop.permute.xlu0 %1011
      %1014 = vset.pattern.permute.xlu0 2
      %1015 = vperm.xlu0 %1014, %v463
      %v1016 = vpop.permute.xlu0 %1015
      %1018 = vset.pattern.permute.xlu0 2
      %1019 = vperm.xlu0 %1018, %v464
      %v1020 = vpop.permute.xlu0 %1019
      %1022 = vset.pattern.permute.xlu0 2
      %1023 = vperm.xlu0 %1022, %v465
      %v1024 = vpop.permute.xlu0 %1023
      %v1026 = vlaneseq
      %v1027 = vshrl.u32 %v1026, 7
      %v1028 = vsub.s32 2, %v1027
      %v1029 = vrot.slane %v467, %v1028
      %v1030 = vmul.f32 %v900, %v1029
      %v1031 = vmul.f32 %v904, %v1029
      %v1032 = vmul.f32 %v908, %v1029
      %v1033 = vmul.f32 %v912, %v1029
      %v1034 = vmul.f32 %v916, %v1029
      %v1035 = vmul.f32 %v920, %v1029
      %v1036 = vmul.f32 %v924, %v1029
      %v1037 = vmul.f32 %v928, %v1029
      %v1038 = vmul.f32 %v932, %v1029
      %v1039 = vmul.f32 %v936, %v1029
      %v1040 = vmul.f32 %v940, %v1029
      %v1041 = vmul.f32 %v944, %v1029
      %v1042 = vmul.f32 %v948, %v1029
      %v1043 = vmul.f32 %v952, %v1029
      %v1044 = vmul.f32 %v956, %v1029
      %v1045 = vmul.f32 %v960, %v1029
      %v1046 = vmul.f32 %v964, %v1029
      %v1047 = vmul.f32 %v968, %v1029
      %v1048 = vmul.f32 %v972, %v1029
      %v1049 = vmul.f32 %v976, %v1029
      %v1050 = vmul.f32 %v980, %v1029
      %v1051 = vmul.f32 %v984, %v1029
      %v1052 = vmul.f32 %v988, %v1029
      %v1053 = vmul.f32 %v992, %v1029
      %v1054 = vmul.f32 %v996, %v1029
      %v1055 = vmul.f32 %v1000, %v1029
      %v1056 = vmul.f32 %v1004, %v1029
      %v1057 = vmul.f32 %v1008, %v1029
      %v1058 = vmul.f32 %v1012, %v1029
      %v1059 = vmul.f32 %v1016, %v1029
      %v1060 = vmul.f32 %v1020, %v1029
      %v1061 = vmul.f32 %v1024, %v1029
      %v1062 = vadd.f32 %v866, %v1030
      %v1063 = vadd.f32 %v867, %v1031
      %v1064 = vadd.f32 %v868, %v1032
      %v1065 = vadd.f32 %v869, %v1033
      %v1066 = vadd.f32 %v870, %v1034
      %v1067 = vadd.f32 %v871, %v1035
      %v1068 = vadd.f32 %v872, %v1036
      %v1069 = vadd.f32 %v873, %v1037
      %v1070 = vadd.f32 %v874, %v1038
      %v1071 = vadd.f32 %v875, %v1039
      %v1072 = vadd.f32 %v876, %v1040
      %v1073 = vadd.f32 %v877, %v1041
      %v1074 = vadd.f32 %v878, %v1042
      %v1075 = vadd.f32 %v879, %v1043
      %v1076 = vadd.f32 %v880, %v1044
      %v1077 = vadd.f32 %v881, %v1045
      %v1078 = vadd.f32 %v882, %v1046
      %v1079 = vadd.f32 %v883, %v1047
      %v1080 = vadd.f32 %v884, %v1048
      %v1081 = vadd.f32 %v885, %v1049
      %v1082 = vadd.f32 %v886, %v1050
      %v1083 = vadd.f32 %v887, %v1051
      %v1084 = vadd.f32 %v888, %v1052
      %v1085 = vadd.f32 %v889, %v1053
      %v1086 = vadd.f32 %v890, %v1054
      %v1087 = vadd.f32 %v891, %v1055
      %v1088 = vadd.f32 %v892, %v1056
      %v1089 = vadd.f32 %v893, %v1057
      %v1090 = vadd.f32 %v894, %v1058
      %v1091 = vadd.f32 %v895, %v1059
      %v1092 = vadd.f32 %v896, %v1060
      %v1093 = vadd.f32 %v897, %v1061
      %1094 = vset.pattern.permute.xlu0 3
      %1095 = vperm.xlu0 %1094, %v434
      %v1096 = vpop.permute.xlu0 %1095
      %1098 = vset.pattern.permute.xlu0 3
      %1099 = vperm.xlu0 %1098, %v435
      %v1100 = vpop.permute.xlu0 %1099
      %1102 = vset.pattern.permute.xlu0 3
      %1103 = vperm.xlu0 %1102, %v436
      %v1104 = vpop.permute.xlu0 %1103
      %1106 = vset.pattern.permute.xlu0 3
      %1107 = vperm.xlu0 %1106, %v437
      %v1108 = vpop.permute.xlu0 %1107
      %1110 = vset.pattern.permute.xlu0 3
      %1111 = vperm.xlu0 %1110, %v438
      %v1112 = vpop.permute.xlu0 %1111
      %1114 = vset.pattern.permute.xlu0 3
      %1115 = vperm.xlu0 %1114, %v439
      %v1116 = vpop.permute.xlu0 %1115
      %1118 = vset.pattern.permute.xlu0 3
      %1119 = vperm.xlu0 %1118, %v440
      %v1120 = vpop.permute.xlu0 %1119
      %1122 = vset.pattern.permute.xlu0 3
      %1123 = vperm.xlu0 %1122, %v441
      %v1124 = vpop.permute.xlu0 %1123
      %1126 = vset.pattern.permute.xlu0 3
      %1127 = vperm.xlu0 %1126, %v442
      %v1128 = vpop.permute.xlu0 %1127
      %1130 = vset.pattern.permute.xlu0 3
      %1131 = vperm.xlu0 %1130, %v443
      %v1132 = vpop.permute.xlu0 %1131
      %1134 = vset.pattern.permute.xlu0 3
      %1135 = vperm.xlu0 %1134, %v444
      %v1136 = vpop.permute.xlu0 %1135
      %1138 = vset.pattern.permute.xlu0 3
      %1139 = vperm.xlu0 %1138, %v445
      %v1140 = vpop.permute.xlu0 %1139
      %1142 = vset.pattern.permute.xlu0 3
      %1143 = vperm.xlu0 %1142, %v446
      %v1144 = vpop.permute.xlu0 %1143
      %1146 = vset.pattern.permute.xlu0 3
      %1147 = vperm.xlu0 %1146, %v447
      %v1148 = vpop.permute.xlu0 %1147
      %1150 = vset.pattern.permute.xlu0 3
      %1151 = vperm.xlu0 %1150, %v448
      %v1152 = vpop.permute.xlu0 %1151
      %1154 = vset.pattern.permute.xlu0 3
      %1155 = vperm.xlu0 %1154, %v449
      %v1156 = vpop.permute.xlu0 %1155
      %1158 = vset.pattern.permute.xlu0 3
      %1159 = vperm.xlu0 %1158, %v450
      %v1160 = vpop.permute.xlu0 %1159
      %1162 = vset.pattern.permute.xlu0 3
      %1163 = vperm.xlu0 %1162, %v451
      %v1164 = vpop.permute.xlu0 %1163
      %1166 = vset.pattern.permute.xlu0 3
      %1167 = vperm.xlu0 %1166, %v452
      %v1168 = vpop.permute.xlu0 %1167
      %1170 = vset.pattern.permute.xlu0 3
      %1171 = vperm.xlu0 %1170, %v453
      %v1172 = vpop.permute.xlu0 %1171
      %1174 = vset.pattern.permute.xlu0 3
      %1175 = vperm.xlu0 %1174, %v454
      %v1176 = vpop.permute.xlu0 %1175
      %1178 = vset.pattern.permute.xlu0 3
      %1179 = vperm.xlu0 %1178, %v455
      %v1180 = vpop.permute.xlu0 %1179
      %1182 = vset.pattern.permute.xlu0 3
      %1183 = vperm.xlu0 %1182, %v456
      %v1184 = vpop.permute.xlu0 %1183
      %1186 = vset.pattern.permute.xlu0 3
      %1187 = vperm.xlu0 %1186, %v457
      %v1188 = vpop.permute.xlu0 %1187
      %1190 = vset.pattern.permute.xlu0 3
      %1191 = vperm.xlu0 %1190, %v458
      %v1192 = vpop.permute.xlu0 %1191
      %1194 = vset.pattern.permute.xlu0 3
      %1195 = vperm.xlu0 %1194, %v459
      %v1196 = vpop.permute.xlu0 %1195
      %1198 = vset.pattern.permute.xlu0 3
      %1199 = vperm.xlu0 %1198, %v460
      %v1200 = vpop.permute.xlu0 %1199
      %1202 = vset.pattern.permute.xlu0 3
      %1203 = vperm.xlu0 %1202, %v461
      %v1204 = vpop.permute.xlu0 %1203
      %1206 = vset.pattern.permute.xlu0 3
      %1207 = vperm.xlu0 %1206, %v462
      %v1208 = vpop.permute.xlu0 %1207
      %1210 = vset.pattern.permute.xlu0 3
      %1211 = vperm.xlu0 %1210, %v463
      %v1212 = vpop.permute.xlu0 %1211
      %1214 = vset.pattern.permute.xlu0 3
      %1215 = vperm.xlu0 %1214, %v464
      %v1216 = vpop.permute.xlu0 %1215
      %1218 = vset.pattern.permute.xlu0 3
      %1219 = vperm.xlu0 %1218, %v465
      %v1220 = vpop.permute.xlu0 %1219
      %v1222 = vlaneseq
      %v1223 = vshrl.u32 %v1222, 7
      %v1224 = vsub.s32 3, %v1223
      %v1225 = vrot.slane %v467, %v1224
      %v1226 = vmul.f32 %v1096, %v1225
      %v1227 = vmul.f32 %v1100, %v1225
      %v1228 = vmul.f32 %v1104, %v1225
      %v1229 = vmul.f32 %v1108, %v1225
      %v1230 = vmul.f32 %v1112, %v1225
      %v1231 = vmul.f32 %v1116, %v1225
      %v1232 = vmul.f32 %v1120, %v1225
      %v1233 = vmul.f32 %v1124, %v1225
      %v1234 = vmul.f32 %v1128, %v1225
      %v1235 = vmul.f32 %v1132, %v1225
      %v1236 = vmul.f32 %v1136, %v1225
      %v1237 = vmul.f32 %v1140, %v1225
      %v1238 = vmul.f32 %v1144, %v1225
      %v1239 = vmul.f32 %v1148, %v1225
      %v1240 = vmul.f32 %v1152, %v1225
      %v1241 = vmul.f32 %v1156, %v1225
      %v1242 = vmul.f32 %v1160, %v1225
      %v1243 = vmul.f32 %v1164, %v1225
      %v1244 = vmul.f32 %v1168, %v1225
      %v1245 = vmul.f32 %v1172, %v1225
      %v1246 = vmul.f32 %v1176, %v1225
      %v1247 = vmul.f32 %v1180, %v1225
      %v1248 = vmul.f32 %v1184, %v1225
      %v1249 = vmul.f32 %v1188, %v1225
      %v1250 = vmul.f32 %v1192, %v1225
      %v1251 = vmul.f32 %v1196, %v1225
      %v1252 = vmul.f32 %v1200, %v1225
      %v1253 = vmul.f32 %v1204, %v1225
      %v1254 = vmul.f32 %v1208, %v1225
      %v1255 = vmul.f32 %v1212, %v1225
      %v1256 = vmul.f32 %v1216, %v1225
      %v1257 = vmul.f32 %v1220, %v1225
      %v1258 = vadd.f32 %v1062, %v1226
      %v1259 = vadd.f32 %v1063, %v1227
      %v1260 = vadd.f32 %v1064, %v1228
      %v1261 = vadd.f32 %v1065, %v1229
      %v1262 = vadd.f32 %v1066, %v1230
      %v1263 = vadd.f32 %v1067, %v1231
      %v1264 = vadd.f32 %v1068, %v1232
      %v1265 = vadd.f32 %v1069, %v1233
      %v1266 = vadd.f32 %v1070, %v1234
      %v1267 = vadd.f32 %v1071, %v1235
      %v1268 = vadd.f32 %v1072, %v1236
      %v1269 = vadd.f32 %v1073, %v1237
      %v1270 = vadd.f32 %v1074, %v1238
      %v1271 = vadd.f32 %v1075, %v1239
      %v1272 = vadd.f32 %v1076, %v1240
      %v1273 = vadd.f32 %v1077, %v1241
      %v1274 = vadd.f32 %v1078, %v1242
      %v1275 = vadd.f32 %v1079, %v1243
      %v1276 = vadd.f32 %v1080, %v1244
      %v1277 = vadd.f32 %v1081, %v1245
      %v1278 = vadd.f32 %v1082, %v1246
      %v1279 = vadd.f32 %v1083, %v1247
      %v1280 = vadd.f32 %v1084, %v1248
      %v1281 = vadd.f32 %v1085, %v1249
      %v1282 = vadd.f32 %v1086, %v1250
      %v1283 = vadd.f32 %v1087, %v1251
      %v1284 = vadd.f32 %v1088, %v1252
      %v1285 = vadd.f32 %v1089, %v1253
      %v1286 = vadd.f32 %v1090, %v1254
      %v1287 = vadd.f32 %v1091, %v1255
      %v1288 = vadd.f32 %v1092, %v1256
      %v1289 = vadd.f32 %v1093, %v1257
      %v1290 = vxor.u32 %v1258, 2147483648
      %v1291 = vxor.u32 %v1259, 2147483648
      %v1292 = vxor.u32 %v1260, 2147483648
      %v1293 = vxor.u32 %v1261, 2147483648
      %v1294 = vxor.u32 %v1262, 2147483648
      %v1295 = vxor.u32 %v1263, 2147483648
      %v1296 = vxor.u32 %v1264, 2147483648
      %v1297 = vxor.u32 %v1265, 2147483648
      %v1298 = vxor.u32 %v1266, 2147483648
      %v1299 = vxor.u32 %v1267, 2147483648
      %v1300 = vxor.u32 %v1268, 2147483648
      %v1301 = vxor.u32 %v1269, 2147483648
      %v1302 = vxor.u32 %v1270, 2147483648
      %v1303 = vxor.u32 %v1271, 2147483648
      %v1304 = vxor.u32 %v1272, 2147483648
      %v1305 = vxor.u32 %v1273, 2147483648
      %v1306 = vxor.u32 %v1274, 2147483648
      %v1307 = vxor.u32 %v1275, 2147483648
      %v1308 = vxor.u32 %v1276, 2147483648
      %v1309 = vxor.u32 %v1277, 2147483648
      %v1310 = vxor.u32 %v1278, 2147483648
      %v1311 = vxor.u32 %v1279, 2147483648
      %v1312 = vxor.u32 %v1280, 2147483648
      %v1313 = vxor.u32 %v1281, 2147483648
      %v1314 = vxor.u32 %v1282, 2147483648
      %v1315 = vxor.u32 %v1283, 2147483648
      %v1316 = vxor.u32 %v1284, 2147483648
      %v1317 = vxor.u32 %v1285, 2147483648
      %v1318 = vxor.u32 %v1286, 2147483648
      %v1319 = vxor.u32 %v1287, 2147483648
      %v1320 = vxor.u32 %v1288, 2147483648
      %v1321 = vxor.u32 %v1289, 2147483648
      %v1322 = vmul.f32 %v1290, 1.442695
      %v1323 = vpow.pop %v1322
      %v1324 = vmul.f32 %v1291, 1.442695
      %v1325 = vpow.pop %v1324
      %v1326 = vmul.f32 %v1292, 1.442695
      %v1327 = vpow.pop %v1326
      %v1328 = vmul.f32 %v1293, 1.442695
      %v1329 = vpow.pop %v1328
      %v1330 = vmul.f32 %v1294, 1.442695
      %v1331 = vpow.pop %v1330
      %v1332 = vmul.f32 %v1295, 1.442695
      %v1333 = vpow.pop %v1332
      %v1334 = vmul.f32 %v1296, 1.442695
      %v1335 = vpow.pop %v1334
      %v1336 = vmul.f32 %v1297, 1.442695
      %v1337 = vpow.pop %v1336
      %v1338 = vmul.f32 %v1298, 1.442695
      %v1339 = vpow.pop %v1338
      %v1340 = vmul.f32 %v1299, 1.442695
      %v1341 = vpow.pop %v1340
      %v1342 = vmul.f32 %v1300, 1.442695
      %v1343 = vpow.pop %v1342
      %v1344 = vmul.f32 %v1301, 1.442695
      %v1345 = vpow.pop %v1344
      %v1346 = vmul.f32 %v1302, 1.442695
      %v1347 = vpow.pop %v1346
      %v1348 = vmul.f32 %v1303, 1.442695
      %v1349 = vpow.pop %v1348
      %v1350 = vmul.f32 %v1304, 1.442695
      %v1351 = vpow.pop %v1350
      %v1352 = vmul.f32 %v1305, 1.442695
      %v1353 = vpow.pop %v1352
      %v1354 = vmul.f32 %v1306, 1.442695
      %v1355 = vpow.pop %v1354
      %v1356 = vmul.f32 %v1307, 1.442695
      %v1357 = vpow.pop %v1356
      %v1358 = vmul.f32 %v1308, 1.442695
      %v1359 = vpow.pop %v1358
      %v1360 = vmul.f32 %v1309, 1.442695
      %v1361 = vpow.pop %v1360
      %v1362 = vmul.f32 %v1310, 1.442695
      %v1363 = vpow.pop %v1362
      %v1364 = vmul.f32 %v1311, 1.442695
      %v1365 = vpow.pop %v1364
      %v1366 = vmul.f32 %v1312, 1.442695
      %v1367 = vpow.pop %v1366
      %v1368 = vmul.f32 %v1313, 1.442695
      %v1369 = vpow.pop %v1368
      %v1370 = vmul.f32 %v1314, 1.442695
      %v1371 = vpow.pop %v1370
      %v1372 = vmul.f32 %v1315, 1.442695
      %v1373 = vpow.pop %v1372
      %v1374 = vmul.f32 %v1316, 1.442695
      %v1375 = vpow.pop %v1374
      %v1376 = vmul.f32 %v1317, 1.442695
      %v1377 = vpow.pop %v1376
      %v1378 = vmul.f32 %v1318, 1.442695
      %v1379 = vpow.pop %v1378
      %v1380 = vmul.f32 %v1319, 1.442695
      %v1381 = vpow.pop %v1380
      %v1382 = vmul.f32 %v1320, 1.442695
      %v1383 = vpow.pop %v1382
      %v1384 = vmul.f32 %v1321, 1.442695
      %v1385 = vpow.pop %v1384
      %v1386 = vadd.f32 %v1323, 1.0
      %v1387 = vadd.f32 %v1325, 1.0
      %v1388 = vadd.f32 %v1327, 1.0
      %v1389 = vadd.f32 %v1329, 1.0
      %v1390 = vadd.f32 %v1331, 1.0
      %v1391 = vadd.f32 %v1333, 1.0
      %v1392 = vadd.f32 %v1335, 1.0
      %v1393 = vadd.f32 %v1337, 1.0
      %v1394 = vadd.f32 %v1339, 1.0
      %v1395 = vadd.f32 %v1341, 1.0
      %v1396 = vadd.f32 %v1343, 1.0
      %v1397 = vadd.f32 %v1345, 1.0
      %v1398 = vadd.f32 %v1347, 1.0
      %v1399 = vadd.f32 %v1349, 1.0
      %v1400 = vadd.f32 %v1351, 1.0
      %v1401 = vadd.f32 %v1353, 1.0
      %v1402 = vadd.f32 %v1355, 1.0
      %v1403 = vadd.f32 %v1357, 1.0
      %v1404 = vadd.f32 %v1359, 1.0
      %v1405 = vadd.f32 %v1361, 1.0
      %v1406 = vadd.f32 %v1363, 1.0
      %v1407 = vadd.f32 %v1365, 1.0
      %v1408 = vadd.f32 %v1367, 1.0
      %v1409 = vadd.f32 %v1369, 1.0
      %v1410 = vadd.f32 %v1371, 1.0
      %v1411 = vadd.f32 %v1373, 1.0
      %v1412 = vadd.f32 %v1375, 1.0
      %v1413 = vadd.f32 %v1377, 1.0
      %v1414 = vadd.f32 %v1379, 1.0
      %v1415 = vadd.f32 %v1381, 1.0
      %v1416 = vadd.f32 %v1383, 1.0
      %v1417 = vadd.f32 %v1385, 1.0
      %v1418 = vrcp.pop %v1386
      %v1419 = vmul.f32 1.0, %v1418
      %v1420 = vrcp.pop %v1387
      %v1421 = vmul.f32 1.0, %v1420
      %v1422 = vrcp.pop %v1388
      %v1423 = vmul.f32 1.0, %v1422
      %v1424 = vrcp.pop %v1389
      %v1425 = vmul.f32 1.0, %v1424
      %v1426 = vrcp.pop %v1390
      %v1427 = vmul.f32 1.0, %v1426
      %v1428 = vrcp.pop %v1391
      %v1429 = vmul.f32 1.0, %v1428
      %v1430 = vrcp.pop %v1392
      %v1431 = vmul.f32 1.0, %v1430
      %v1432 = vrcp.pop %v1393
      %v1433 = vmul.f32 1.0, %v1432
      %v1434 = vrcp.pop %v1394
      %v1435 = vmul.f32 1.0, %v1434
      %v1436 = vrcp.pop %v1395
      %v1437 = vmul.f32 1.0, %v1436
      %v1438 = vrcp.pop %v1396
      %v1439 = vmul.f32 1.0, %v1438
      %v1440 = vrcp.pop %v1397
      %v1441 = vmul.f32 1.0, %v1440
      %v1442 = vrcp.pop %v1398
      %v1443 = vmul.f32 1.0, %v1442
      %v1444 = vrcp.pop %v1399
      %v1445 = vmul.f32 1.0, %v1444
      %v1446 = vrcp.pop %v1400
      %v1447 = vmul.f32 1.0, %v1446
      %v1448 = vrcp.pop %v1401
      %v1449 = vmul.f32 1.0, %v1448
      %v1450 = vrcp.pop %v1402
      %v1451 = vmul.f32 1.0, %v1450
      %v1452 = vrcp.pop %v1403
      %v1453 = vmul.f32 1.0, %v1452
      %v1454 = vrcp.pop %v1404
      %v1455 = vmul.f32 1.0, %v1454
      %v1456 = vrcp.pop %v1405
      %v1457 = vmul.f32 1.0, %v1456
      %v1458 = vrcp.pop %v1406
      %v1459 = vmul.f32 1.0, %v1458
      %v1460 = vrcp.pop %v1407
      %v1461 = vmul.f32 1.0, %v1460
      %v1462 = vrcp.pop %v1408
      %v1463 = vmul.f32 1.0, %v1462
      %v1464 = vrcp.pop %v1409
      %v1465 = vmul.f32 1.0, %v1464
      %v1466 = vrcp.pop %v1410
      %v1467 = vmul.f32 1.0, %v1466
      %v1468 = vrcp.pop %v1411
      %v1469 = vmul.f32 1.0, %v1468
      %v1470 = vrcp.pop %v1412
      %v1471 = vmul.f32 1.0, %v1470
      %v1472 = vrcp.pop %v1413
      %v1473 = vmul.f32 1.0, %v1472
      %v1474 = vrcp.pop %v1414
      %v1475 = vmul.f32 1.0, %v1474
      %v1476 = vrcp.pop %v1415
      %v1477 = vmul.f32 1.0, %v1476
      %v1478 = vrcp.pop %v1416
      %v1479 = vmul.f32 1.0, %v1478
      %v1480 = vrcp.pop %v1417
      %v1481 = vmul.f32 1.0, %v1480
      %v1482 = vmul.f32 %v1258, %v1419
      %v1483 = vmul.f32 %v1259, %v1421
      %v1484 = vmul.f32 %v1260, %v1423
      %v1485 = vmul.f32 %v1261, %v1425
      %v1486 = vmul.f32 %v1262, %v1427
      %v1487 = vmul.f32 %v1263, %v1429
      %v1488 = vmul.f32 %v1264, %v1431
      %v1489 = vmul.f32 %v1265, %v1433
      %v1490 = vmul.f32 %v1266, %v1435
      %v1491 = vmul.f32 %v1267, %v1437
      %v1492 = vmul.f32 %v1268, %v1439
      %v1493 = vmul.f32 %v1269, %v1441
      %v1494 = vmul.f32 %v1270, %v1443
      %v1495 = vmul.f32 %v1271, %v1445
      %v1496 = vmul.f32 %v1272, %v1447
      %v1497 = vmul.f32 %v1273, %v1449
      %v1498 = vmul.f32 %v1274, %v1451
      %v1499 = vmul.f32 %v1275, %v1453
      %v1500 = vmul.f32 %v1276, %v1455
      %v1501 = vmul.f32 %v1277, %v1457
      %v1502 = vmul.f32 %v1278, %v1459
      %v1503 = vmul.f32 %v1279, %v1461
      %v1504 = vmul.f32 %v1280, %v1463
      %v1505 = vmul.f32 %v1281, %v1465
      %v1506 = vmul.f32 %v1282, %v1467
      %v1507 = vmul.f32 %v1283, %v1469
      %v1508 = vmul.f32 %v1284, %v1471
      %v1509 = vmul.f32 %v1285, %v1473
      %v1510 = vmul.f32 %v1286, %v1475
      %v1511 = vmul.f32 %v1287, %v1477
      %v1512 = vmul.f32 %v1288, %v1479
      %v1513 = vmul.f32 %v1289, %v1481
      %1514 = vst.msk [vmem:[%s400 + $0x8] sm:$0xff] %vm390, %v1482
      %1515 = vst.msk [vmem:[%s400 + $0x10] sm:$0xff] %vm390, %v1483
      %1516 = vst.msk [vmem:[%s400 + $0x28] sm:$0xff] %vm390, %v1484
      %1517 = vst.msk [vmem:[%s400 + $0x30] sm:$0xff] %vm390, %v1485
      %1518 = vst.msk [vmem:[%s400 + $0x48] sm:$0xff] %vm390, %v1486
      %1519 = vst.msk [vmem:[%s400 + $0x50] sm:$0xff] %vm390, %v1487
      %1520 = vst.msk [vmem:[%s400 + $0x68] sm:$0xff] %vm390, %v1488
      %1521 = vst.msk [vmem:[%s400 + $0x70] sm:$0xff] %vm390, %v1489
      %1522 = vst.msk [vmem:[%s400 + $0x88] sm:$0xff] %vm390, %v1490
      %1523 = vst.msk [vmem:[%s400 + $0x90] sm:$0xff] %vm390, %v1491
      %1524 = vst.msk [vmem:[%s400 + $0xa8] sm:$0xff] %vm390, %v1492
      %1525 = vst.msk [vmem:[%s400 + $0xb0] sm:$0xff] %vm390, %v1493
      %1526 = vst.msk [vmem:[%s400 + $0xc8] sm:$0xff] %vm390, %v1494
      %1527 = vst.msk [vmem:[%s400 + $0xd0] sm:$0xff] %vm390, %v1495
      %1528 = vst.msk [vmem:[%s400 + $0xe8] sm:$0xff] %vm390, %v1496
      %1529 = vst.msk [vmem:[%s400 + $0xf0] sm:$0xff] %vm390, %v1497
      %1530 = vst.msk [vmem:[%s400 + $0x108] sm:$0xff] %vm390, %v1498
      %1531 = vst.msk [vmem:[%s400 + $0x110] sm:$0xff] %vm390, %v1499
      %1532 = vst.msk [vmem:[%s400 + $0x128] sm:$0xff] %vm390, %v1500
      %1533 = vst.msk [vmem:[%s400 + $0x130] sm:$0xff] %vm390, %v1501
      %1534 = vst.msk [vmem:[%s400 + $0x148] sm:$0xff] %vm390, %v1502
      %1535 = vst.msk [vmem:[%s400 + $0x150] sm:$0xff] %vm390, %v1503
      %1536 = vst.msk [vmem:[%s400 + $0x168] sm:$0xff] %vm390, %v1504
      %1537 = vst.msk [vmem:[%s400 + $0x170] sm:$0xff] %vm390, %v1505
      %1538 = vst.msk [vmem:[%s400 + $0x188] sm:$0xff] %vm390, %v1506
      %1539 = vst.msk [vmem:[%s400 + $0x190] sm:$0xff] %vm390, %v1507
      %1540 = vst.msk [vmem:[%s400 + $0x1a8] sm:$0xff] %vm390, %v1508
      %1541 = vst.msk [vmem:[%s400 + $0x1b0] sm:$0xff] %vm390, %v1509
      %1542 = vst.msk [vmem:[%s400 + $0x1c8] sm:$0xff] %vm390, %v1510
      %1543 = vst.msk [vmem:[%s400 + $0x1d0] sm:$0xff] %vm390, %v1511
      %1544 = vst.msk [vmem:[%s400 + $0x1e8] sm:$0xff] %vm390, %v1512
      %1545 = vst.msk [vmem:[%s400 + $0x1f0] sm:$0xff] %vm390, %v1513
      %v1546 = vld [vmem:[%s3] sm:$0x7]
      %v1547 = vld [vmem:[%s3 + $0x4] sm:$0x7]
      %v1548 = vld [vmem:[%s3 + $0x8] sm:$0x7]
      %v1549 = vld [vmem:[%s4] sm:$0x1]
      %v1550 = vld [vmem:[#allocation2 + $0x7] sm:$0xff]
      %v1551 = vld [vmem:[#allocation2 + $0xf] sm:$0xff]
      %v1552 = vld [vmem:[#allocation2 + $0x27] sm:$0xff]
      %v1553 = vld [vmem:[#allocation2 + $0x2f] sm:$0xff]
      %v1554 = vld [vmem:[#allocation2 + $0x47] sm:$0xff]
      %v1555 = vld [vmem:[#allocation2 + $0x4f] sm:$0xff]
      %v1556 = vld [vmem:[#allocation2 + $0x67] sm:$0xff]
      %v1557 = vld [vmem:[#allocation2 + $0x6f] sm:$0xff]
      %v1558 = vld [vmem:[#allocation2 + $0x87] sm:$0xff]
      %v1559 = vld [vmem:[#allocation2 + $0x8f] sm:$0xff]
      %v1560 = vld [vmem:[#allocation2 + $0xa7] sm:$0xff]
      %v1561 = vld [vmem:[#allocation2 + $0xaf] sm:$0xff]
      %v1562 = vld [vmem:[#allocation2 + $0xc7] sm:$0xff]
      %v1563 = vld [vmem:[#allocation2 + $0xcf] sm:$0xff]
      %v1564 = vld [vmem:[#allocation2 + $0xe7] sm:$0xff]
      %v1565 = vld [vmem:[#allocation2 + $0xef] sm:$0xff]
      %v1566 = vlaneseq
      %v1567 = vshrl.u32 %v1566, 7
      %v1568 = vsub.s32 0, %v1567
      %v1569 = vrot.slane %v1546, %v1568
      %v1570 = vmul.f32 %v1550, %v1569
      %v1571 = vmul.f32 %v1551, %v1569
      %v1572 = vmul.f32 %v1552, %v1569
      %v1573 = vmul.f32 %v1553, %v1569
      %v1574 = vmul.f32 %v1554, %v1569
      %v1575 = vmul.f32 %v1555, %v1569
      %v1576 = vmul.f32 %v1556, %v1569
      %v1577 = vmul.f32 %v1557, %v1569
      %v1578 = vmul.f32 %v1558, %v1569
      %v1579 = vmul.f32 %v1559, %v1569
      %v1580 = vmul.f32 %v1560, %v1569
      %v1581 = vmul.f32 %v1561, %v1569
      %v1582 = vmul.f32 %v1562, %v1569
      %v1583 = vmul.f32 %v1563, %v1569
      %v1584 = vmul.f32 %v1564, %v1569
      %v1585 = vmul.f32 %v1565, %v1569
      %v1586 = vadd.f32 %v1570, 0.0
      %v1587 = vadd.f32 %v1571, 0.0
      %v1588 = vadd.f32 %v1572, 0.0
      %v1589 = vadd.f32 %v1573, 0.0
      %v1590 = vadd.f32 %v1574, 0.0
      %v1591 = vadd.f32 %v1575, 0.0
      %v1592 = vadd.f32 %v1576, 0.0
      %v1593 = vadd.f32 %v1577, 0.0
      %v1594 = vadd.f32 %v1578, 0.0
      %v1595 = vadd.f32 %v1579, 0.0
      %v1596 = vadd.f32 %v1580, 0.0
      %v1597 = vadd.f32 %v1581, 0.0
      %v1598 = vadd.f32 %v1582, 0.0
      %v1599 = vadd.f32 %v1583, 0.0
      %v1600 = vadd.f32 %v1584, 0.0
      %v1601 = vadd.f32 %v1585, 0.0
      %v1602 = vld [vmem:[#allocation2 + $0x8] sm:$0xff]
      %v1603 = vld [vmem:[#allocation2 + $0x10] sm:$0xff]
      %v1604 = vld [vmem:[#allocation2 + $0x28] sm:$0xff]
      %v1605 = vld [vmem:[#allocation2 + $0x30] sm:$0xff]
      %v1606 = vld [vmem:[#allocation2 + $0x48] sm:$0xff]
      %v1607 = vld [vmem:[#allocation2 + $0x50] sm:$0xff]
      %v1608 = vld [vmem:[#allocation2 + $0x68] sm:$0xff]
      %v1609 = vld [vmem:[#allocation2 + $0x70] sm:$0xff]
      %v1610 = vld [vmem:[#allocation2 + $0x88] sm:$0xff]
      %v1611 = vld [vmem:[#allocation2 + $0x90] sm:$0xff]
      %v1612 = vld [vmem:[#allocation2 + $0xa8] sm:$0xff]
      %v1613 = vld [vmem:[#allocation2 + $0xb0] sm:$0xff]
      %v1614 = vld [vmem:[#allocation2 + $0xc8] sm:$0xff]
      %v1615 = vld [vmem:[#allocation2 + $0xd0] sm:$0xff]
      %v1616 = vld [vmem:[#allocation2 + $0xe8] sm:$0xff]
      %v1617 = vld [vmem:[#allocation2 + $0xf0] sm:$0xff]
      %v1618 = vlaneseq
      %v1619 = vshrl.u32 %v1618, 7
      %v1620 = vsub.s32 1, %v1619
      %v1621 = vrot.slane %v1546, %v1620
      %v1622 = vmul.f32 %v1602, %v1621
      %v1623 = vmul.f32 %v1603, %v1621
      %v1624 = vmul.f32 %v1604, %v1621
      %v1625 = vmul.f32 %v1605, %v1621
      %v1626 = vmul.f32 %v1606, %v1621
      %v1627 = vmul.f32 %v1607, %v1621
      %v1628 = vmul.f32 %v1608, %v1621
      %v1629 = vmul.f32 %v1609, %v1621
      %v1630 = vmul.f32 %v1610, %v1621
      %v1631 = vmul.f32 %v1611, %v1621
      %v1632 = vmul.f32 %v1612, %v1621
      %v1633 = vmul.f32 %v1613, %v1621
      %v1634 = vmul.f32 %v1614, %v1621
      %v1635 = vmul.f32 %v1615, %v1621
      %v1636 = vmul.f32 %v1616, %v1621
      %v1637 = vmul.f32 %v1617, %v1621
      %v1638 = vadd.f32 %v1586, %v1622
      %v1639 = vadd.f32 %v1587, %v1623
      %v1640 = vadd.f32 %v1588, %v1624
      %v1641 = vadd.f32 %v1589, %v1625
      %v1642 = vadd.f32 %v1590, %v1626
      %v1643 = vadd.f32 %v1591, %v1627
      %v1644 = vadd.f32 %v1592, %v1628
      %v1645 = vadd.f32 %v1593, %v1629
      %v1646 = vadd.f32 %v1594, %v1630
      %v1647 = vadd.f32 %v1595, %v1631
      %v1648 = vadd.f32 %v1596, %v1632
      %v1649 = vadd.f32 %v1597, %v1633
      %v1650 = vadd.f32 %v1598, %v1634
      %v1651 = vadd.f32 %v1599, %v1635
      %v1652 = vadd.f32 %v1600, %v1636
      %v1653 = vadd.f32 %v1601, %v1637
      %v1654 = vld [vmem:[#allocation2 + $0x9] sm:$0xff]
      %v1655 = vld [vmem:[#allocation2 + $0x11] sm:$0xff]
      %v1656 = vld [vmem:[#allocation2 + $0x29] sm:$0xff]
      %v1657 = vld [vmem:[#allocation2 + $0x31] sm:$0xff]
      %v1658 = vld [vmem:[#allocation2 + $0x49] sm:$0xff]
      %v1659 = vld [vmem:[#allocation2 + $0x51] sm:$0xff]
      %v1660 = vld [vmem:[#allocation2 + $0x69] sm:$0xff]
      %v1661 = vld [vmem:[#allocation2 + $0x71] sm:$0xff]
      %v1662 = vld [vmem:[#allocation2 + $0x89] sm:$0xff]
      %v1663 = vld [vmem:[#allocation2 + $0x91] sm:$0xff]
      %v1664 = vld [vmem:[#allocation2 + $0xa9] sm:$0xff]
      %v1665 = vld [vmem:[#allocation2 + $0xb1] sm:$0xff]
      %v1666 = vld [vmem:[#allocation2 + $0xc9] sm:$0xff]
      %v1667 = vld [vmem:[#allocation2 + $0xd1] sm:$0xff]
      %v1668 = vld [vmem:[#allocation2 + $0xe9] sm:$0xff]
      %v1669 = vld [vmem:[#allocation2 + $0xf1] sm:$0xff]
      %v1670 = vlaneseq
      %v1671 = vshrl.u32 %v1670, 7
      %v1672 = vsub.s32 2, %v1671
      %v1673 = vrot.slane %v1546, %v1672
      %v1674 = vmul.f32 %v1654, %v1673
      %v1675 = vmul.f32 %v1655, %v1673
      %v1676 = vmul.f32 %v1656, %v1673
      %v1677 = vmul.f32 %v1657, %v1673
      %v1678 = vmul.f32 %v1658, %v1673
      %v1679 = vmul.f32 %v1659, %v1673
      %v1680 = vmul.f32 %v1660, %v1673
      %v1681 = vmul.f32 %v1661, %v1673
      %v1682 = vmul.f32 %v1662, %v1673
      %v1683 = vmul.f32 %v1663, %v1673
      %v1684 = vmul.f32 %v1664, %v1673
      %v1685 = vmul.f32 %v1665, %v1673
      %v1686 = vmul.f32 %v1666, %v1673
      %v1687 = vmul.f32 %v1667, %v1673
      %v1688 = vmul.f32 %v1668, %v1673
      %v1689 = vmul.f32 %v1669, %v1673
      %v1690 = vadd.f32 %v1638, %v1674
      %v1691 = vadd.f32 %v1639, %v1675
      %v1692 = vadd.f32 %v1640, %v1676
      %v1693 = vadd.f32 %v1641, %v1677
      %v1694 = vadd.f32 %v1642, %v1678
      %v1695 = vadd.f32 %v1643, %v1679
      %v1696 = vadd.f32 %v1644, %v1680
      %v1697 = vadd.f32 %v1645, %v1681
      %v1698 = vadd.f32 %v1646, %v1682
      %v1699 = vadd.f32 %v1647, %v1683
      %v1700 = vadd.f32 %v1648, %v1684
      %v1701 = vadd.f32 %v1649, %v1685
      %v1702 = vadd.f32 %v1650, %v1686
      %v1703 = vadd.f32 %v1651, %v1687
      %v1704 = vadd.f32 %v1652, %v1688
      %v1705 = vadd.f32 %v1653, %v1689
      %v1706 = vld [vmem:[%s400 + $0x7] sm:$0xff]
      %v1707 = vld [vmem:[%s400 + $0xf] sm:$0xff]
      %v1708 = vld [vmem:[%s400 + $0x27] sm:$0xff]
      %v1709 = vld [vmem:[%s400 + $0x2f] sm:$0xff]
      %v1710 = vld [vmem:[%s400 + $0x47] sm:$0xff]
      %v1711 = vld [vmem:[%s400 + $0x4f] sm:$0xff]
      %v1712 = vld [vmem:[%s400 + $0x67] sm:$0xff]
      %v1713 = vld [vmem:[%s400 + $0x6f] sm:$0xff]
      %v1714 = vld [vmem:[%s400 + $0x87] sm:$0xff]
      %v1715 = vld [vmem:[%s400 + $0x8f] sm:$0xff]
      %v1716 = vld [vmem:[%s400 + $0xa7] sm:$0xff]
      %v1717 = vld [vmem:[%s400 + $0xaf] sm:$0xff]
      %v1718 = vld [vmem:[%s400 + $0xc7] sm:$0xff]
      %v1719 = vld [vmem:[%s400 + $0xcf] sm:$0xff]
      %v1720 = vld [vmem:[%s400 + $0xe7] sm:$0xff]
      %v1721 = vld [vmem:[%s400 + $0xef] sm:$0xff]
      %v1722 = vlaneseq
      %v1723 = vshrl.u32 %v1722, 7
      %v1724 = vsub.s32 0, %v1723
      %v1725 = vrot.slane %v1547, %v1724
      %v1726 = vmul.f32 %v1706, %v1725
      %v1727 = vmul.f32 %v1707, %v1725
      %v1728 = vmul.f32 %v1708, %v1725
      %v1729 = vmul.f32 %v1709, %v1725
      %v1730 = vmul.f32 %v1710, %v1725
      %v1731 = vmul.f32 %v1711, %v1725
      %v1732 = vmul.f32 %v1712, %v1725
      %v1733 = vmul.f32 %v1713, %v1725
      %v1734 = vmul.f32 %v1714, %v1725
      %v1735 = vmul.f32 %v1715, %v1725
      %v1736 = vmul.f32 %v1716, %v1725
      %v1737 = vmul.f32 %v1717, %v1725
      %v1738 = vmul.f32 %v1718, %v1725
      %v1739 = vmul.f32 %v1719, %v1725
      %v1740 = vmul.f32 %v1720, %v1725
      %v1741 = vmul.f32 %v1721, %v1725
      %v1742 = vadd.f32 %v1690, %v1726
      %v1743 = vadd.f32 %v1691, %v1727
      %v1744 = vadd.f32 %v1692, %v1728
      %v1745 = vadd.f32 %v1693, %v1729
      %v1746 = vadd.f32 %v1694, %v1730
      %v1747 = vadd.f32 %v1695, %v1731
      %v1748 = vadd.f32 %v1696, %v1732
      %v1749 = vadd.f32 %v1697, %v1733
      %v1750 = vadd.f32 %v1698, %v1734
      %v1751 = vadd.f32 %v1699, %v1735
      %v1752 = vadd.f32 %v1700, %v1736
      %v1753 = vadd.f32 %v1701, %v1737
      %v1754 = vadd.f32 %v1702, %v1738
      %v1755 = vadd.f32 %v1703, %v1739
      %v1756 = vadd.f32 %v1704, %v1740
      %v1757 = vadd.f32 %v1705, %v1741
      %v1758 = vld [vmem:[%s400 + $0x8] sm:$0xff]
      %v1759 = vld [vmem:[%s400 + $0x10] sm:$0xff]
      %v1760 = vld [vmem:[%s400 + $0x28] sm:$0xff]
      %v1761 = vld [vmem:[%s400 + $0x30] sm:$0xff]
      %v1762 = vld [vmem:[%s400 + $0x48] sm:$0xff]
      %v1763 = vld [vmem:[%s400 + $0x50] sm:$0xff]
      %v1764 = vld [vmem:[%s400 + $0x68] sm:$0xff]
      %v1765 = vld [vmem:[%s400 + $0x70] sm:$0xff]
      %v1766 = vld [vmem:[%s400 + $0x88] sm:$0xff]
      %v1767 = vld [vmem:[%s400 + $0x90] sm:$0xff]
      %v1768 = vld [vmem:[%s400 + $0xa8] sm:$0xff]
      %v1769 = vld [vmem:[%s400 + $0xb0] sm:$0xff]
      %v1770 = vld [vmem:[%s400 + $0xc8] sm:$0xff]
      %v1771 = vld [vmem:[%s400 + $0xd0] sm:$0xff]
      %v1772 = vld [vmem:[%s400 + $0xe8] sm:$0xff]
      %v1773 = vld [vmem:[%s400 + $0xf0] sm:$0xff]
      %v1774 = vlaneseq
      %v1775 = vshrl.u32 %v1774, 7
      %v1776 = vsub.s32 1, %v1775
      %v1777 = vrot.slane %v1547, %v1776
      %v1778 = vmul.f32 %v1758, %v1777
      %v1779 = vmul.f32 %v1759, %v1777
      %v1780 = vmul.f32 %v1760, %v1777
      %v1781 = vmul.f32 %v1761, %v1777
      %v1782 = vmul.f32 %v1762, %v1777
      %v1783 = vmul.f32 %v1763, %v1777
      %v1784 = vmul.f32 %v1764, %v1777
      %v1785 = vmul.f32 %v1765, %v1777
      %v1786 = vmul.f32 %v1766, %v1777
      %v1787 = vmul.f32 %v1767, %v1777
      %v1788 = vmul.f32 %v1768, %v1777
      %v1789 = vmul.f32 %v1769, %v1777
      %v1790 = vmul.f32 %v1770, %v1777
      %v1791 = vmul.f32 %v1771, %v1777
      %v1792 = vmul.f32 %v1772, %v1777
      %v1793 = vmul.f32 %v1773, %v1777
      %v1794 = vadd.f32 %v1742, %v1778
      %v1795 = vadd.f32 %v1743, %v1779
      %v1796 = vadd.f32 %v1744, %v1780
      %v1797 = vadd.f32 %v1745, %v1781
      %v1798 = vadd.f32 %v1746, %v1782
      %v1799 = vadd.f32 %v1747, %v1783
      %v1800 = vadd.f32 %v1748, %v1784
      %v1801 = vadd.f32 %v1749, %v1785
      %v1802 = vadd.f32 %v1750, %v1786
      %v1803 = vadd.f32 %v1751, %v1787
      %v1804 = vadd.f32 %v1752, %v1788
      %v1805 = vadd.f32 %v1753, %v1789
      %v1806 = vadd.f32 %v1754, %v1790
      %v1807 = vadd.f32 %v1755, %v1791
      %v1808 = vadd.f32 %v1756, %v1792
      %v1809 = vadd.f32 %v1757, %v1793
      %v1810 = vld [vmem:[%s400 + $0x9] sm:$0xff]
      %v1811 = vld [vmem:[%s400 + $0x11] sm:$0xff]
      %v1812 = vld [vmem:[%s400 + $0x29] sm:$0xff]
      %v1813 = vld [vmem:[%s400 + $0x31] sm:$0xff]
      %v1814 = vld [vmem:[%s400 + $0x49] sm:$0xff]
      %v1815 = vld [vmem:[%s400 + $0x51] sm:$0xff]
      %v1816 = vld [vmem:[%s400 + $0x69] sm:$0xff]
      %v1817 = vld [vmem:[%s400 + $0x71] sm:$0xff]
      %v1818 = vld [vmem:[%s400 + $0x89] sm:$0xff]
      %v1819 = vld [vmem:[%s400 + $0x91] sm:$0xff]
      %v1820 = vld [vmem:[%s400 + $0xa9] sm:$0xff]
      %v1821 = vld [vmem:[%s400 + $0xb1] sm:$0xff]
      %v1822 = vld [vmem:[%s400 + $0xc9] sm:$0xff]
      %v1823 = vld [vmem:[%s400 + $0xd1] sm:$0xff]
      %v1824 = vld [vmem:[%s400 + $0xe9] sm:$0xff]
      %v1825 = vld [vmem:[%s400 + $0xf1] sm:$0xff]
      %v1826 = vlaneseq
      %v1827 = vshrl.u32 %v1826, 7
      %v1828 = vsub.s32 2, %v1827
      %v1829 = vrot.slane %v1547, %v1828
      %v1830 = vmul.f32 %v1810, %v1829
      %v1831 = vmul.f32 %v1811, %v1829
      %v1832 = vmul.f32 %v1812, %v1829
      %v1833 = vmul.f32 %v1813, %v1829
      %v1834 = vmul.f32 %v1814, %v1829
      %v1835 = vmul.f32 %v1815, %v1829
      %v1836 = vmul.f32 %v1816, %v1829
      %v1837 = vmul.f32 %v1817, %v1829
      %v1838 = vmul.f32 %v1818, %v1829
      %v1839 = vmul.f32 %v1819, %v1829
      %v1840 = vmul.f32 %v1820, %v1829
      %v1841 = vmul.f32 %v1821, %v1829
      %v1842 = vmul.f32 %v1822, %v1829
      %v1843 = vmul.f32 %v1823, %v1829
      %v1844 = vmul.f32 %v1824, %v1829
      %v1845 = vmul.f32 %v1825, %v1829
      %v1846 = vadd.f32 %v1794, %v1830
      %v1847 = vadd.f32 %v1795, %v1831
      %v1848 = vadd.f32 %v1796, %v1832
      %v1849 = vadd.f32 %v1797, %v1833
      %v1850 = vadd.f32 %v1798, %v1834
      %v1851 = vadd.f32 %v1799, %v1835
      %v1852 = vadd.f32 %v1800, %v1836
      %v1853 = vadd.f32 %v1801, %v1837
      %v1854 = vadd.f32 %v1802, %v1838
      %v1855 = vadd.f32 %v1803, %v1839
      %v1856 = vadd.f32 %v1804, %v1840
      %v1857 = vadd.f32 %v1805, %v1841
      %v1858 = vadd.f32 %v1806, %v1842
      %v1859 = vadd.f32 %v1807, %v1843
      %v1860 = vadd.f32 %v1808, %v1844
      %v1861 = vadd.f32 %v1809, %v1845
      %s1862 = scalar_lea.vmem [#allocation2], 64
      %v1863 = vld [vmem:[%s1862 + $0x7] sm:$0xff]
      %v1864 = vld [vmem:[%s1862 + $0xf] sm:$0xff]
      %v1865 = vld [vmem:[%s1862 + $0x27] sm:$0xff]
      %v1866 = vld [vmem:[%s1862 + $0x2f] sm:$0xff]
      %v1867 = vld [vmem:[%s1862 + $0x47] sm:$0xff]
      %v1868 = vld [vmem:[%s1862 + $0x4f] sm:$0xff]
      %v1869 = vld [vmem:[%s1862 + $0x67] sm:$0xff]
      %v1870 = vld [vmem:[%s1862 + $0x6f] sm:$0xff]
      %v1871 = vld [vmem:[%s1862 + $0x87] sm:$0xff]
      %v1872 = vld [vmem:[%s1862 + $0x8f] sm:$0xff]
      %v1873 = vld [vmem:[%s1862 + $0xa7] sm:$0xff]
      %v1874 = vld [vmem:[%s1862 + $0xaf] sm:$0xff]
      %v1875 = vld [vmem:[%s1862 + $0xc7] sm:$0xff]
      %v1876 = vld [vmem:[%s1862 + $0xcf] sm:$0xff]
      %v1877 = vld [vmem:[%s1862 + $0xe7] sm:$0xff]
      %v1878 = vld [vmem:[%s1862 + $0xef] sm:$0xff]
      %v1879 = vlaneseq
      %v1880 = vshrl.u32 %v1879, 7
      %v1881 = vsub.s32 0, %v1880
      %v1882 = vrot.slane %v1548, %v1881
      %v1883 = vmul.f32 %v1863, %v1882
      %v1884 = vmul.f32 %v1864, %v1882
      %v1885 = vmul.f32 %v1865, %v1882
      %v1886 = vmul.f32 %v1866, %v1882
      %v1887 = vmul.f32 %v1867, %v1882
      %v1888 = vmul.f32 %v1868, %v1882
      %v1889 = vmul.f32 %v1869, %v1882
      %v1890 = vmul.f32 %v1870, %v1882
      %v1891 = vmul.f32 %v1871, %v1882
      %v1892 = vmul.f32 %v1872, %v1882
      %v1893 = vmul.f32 %v1873, %v1882
      %v1894 = vmul.f32 %v1874, %v1882
      %v1895 = vmul.f32 %v1875, %v1882
      %v1896 = vmul.f32 %v1876, %v1882
      %v1897 = vmul.f32 %v1877, %v1882
      %v1898 = vmul.f32 %v1878, %v1882
      %v1899 = vadd.f32 %v1846, %v1883
      %v1900 = vadd.f32 %v1847, %v1884
      %v1901 = vadd.f32 %v1848, %v1885
      %v1902 = vadd.f32 %v1849, %v1886
      %v1903 = vadd.f32 %v1850, %v1887
      %v1904 = vadd.f32 %v1851, %v1888
      %v1905 = vadd.f32 %v1852, %v1889
      %v1906 = vadd.f32 %v1853, %v1890
      %v1907 = vadd.f32 %v1854, %v1891
      %v1908 = vadd.f32 %v1855, %v1892
      %v1909 = vadd.f32 %v1856, %v1893
      %v1910 = vadd.f32 %v1857, %v1894
      %v1911 = vadd.f32 %v1858, %v1895
      %v1912 = vadd.f32 %v1859, %v1896
      %v1913 = vadd.f32 %v1860, %v1897
      %v1914 = vadd.f32 %v1861, %v1898
      %v1915 = vld [vmem:[%s1862 + $0x8] sm:$0xff]
      %v1916 = vld [vmem:[%s1862 + $0x10] sm:$0xff]
      %v1917 = vld [vmem:[%s1862 + $0x28] sm:$0xff]
      %v1918 = vld [vmem:[%s1862 + $0x30] sm:$0xff]
      %v1919 = vld [vmem:[%s1862 + $0x48] sm:$0xff]
      %v1920 = vld [vmem:[%s1862 + $0x50] sm:$0xff]
      %v1921 = vld [vmem:[%s1862 + $0x68] sm:$0xff]
      %v1922 = vld [vmem:[%s1862 + $0x70] sm:$0xff]
      %v1923 = vld [vmem:[%s1862 + $0x88] sm:$0xff]
      %v1924 = vld [vmem:[%s1862 + $0x90] sm:$0xff]
      %v1925 = vld [vmem:[%s1862 + $0xa8] sm:$0xff]
      %v1926 = vld [vmem:[%s1862 + $0xb0] sm:$0xff]
      %v1927 = vld [vmem:[%s1862 + $0xc8] sm:$0xff]
      %v1928 = vld [vmem:[%s1862 + $0xd0] sm:$0xff]
      %v1929 = vld [vmem:[%s1862 + $0xe8] sm:$0xff]
      %v1930 = vld [vmem:[%s1862 + $0xf0] sm:$0xff]
      %v1931 = vlaneseq
      %v1932 = vshrl.u32 %v1931, 7
      %v1933 = vsub.s32 1, %v1932
      %v1934 = vrot.slane %v1548, %v1933
      %v1935 = vmul.f32 %v1915, %v1934
      %v1936 = vmul.f32 %v1916, %v1934
      %v1937 = vmul.f32 %v1917, %v1934
      %v1938 = vmul.f32 %v1918, %v1934
      %v1939 = vmul.f32 %v1919, %v1934
      %v1940 = vmul.f32 %v1920, %v1934
      %v1941 = vmul.f32 %v1921, %v1934
      %v1942 = vmul.f32 %v1922, %v1934
      %v1943 = vmul.f32 %v1923, %v1934
      %v1944 = vmul.f32 %v1924, %v1934
      %v1945 = vmul.f32 %v1925, %v1934
      %v1946 = vmul.f32 %v1926, %v1934
      %v1947 = vmul.f32 %v1927, %v1934
      %v1948 = vmul.f32 %v1928, %v1934
      %v1949 = vmul.f32 %v1929, %v1934
      %v1950 = vmul.f32 %v1930, %v1934
      %v1951 = vadd.f32 %v1899, %v1935
      %v1952 = vadd.f32 %v1900, %v1936
      %v1953 = vadd.f32 %v1901, %v1937
      %v1954 = vadd.f32 %v1902, %v1938
      %v1955 = vadd.f32 %v1903, %v1939
      %v1956 = vadd.f32 %v1904, %v1940
      %v1957 = vadd.f32 %v1905, %v1941
      %v1958 = vadd.f32 %v1906, %v1942
      %v1959 = vadd.f32 %v1907, %v1943
      %v1960 = vadd.f32 %v1908, %v1944
      %v1961 = vadd.f32 %v1909, %v1945
      %v1962 = vadd.f32 %v1910, %v1946
      %v1963 = vadd.f32 %v1911, %v1947
      %v1964 = vadd.f32 %v1912, %v1948
      %v1965 = vadd.f32 %v1913, %v1949
      %v1966 = vadd.f32 %v1914, %v1950
      %v1967 = vld [vmem:[%s1862 + $0x9] sm:$0xff]
      %v1968 = vld [vmem:[%s1862 + $0x11] sm:$0xff]
      %v1969 = vld [vmem:[%s1862 + $0x29] sm:$0xff]
      %v1970 = vld [vmem:[%s1862 + $0x31] sm:$0xff]
      %v1971 = vld [vmem:[%s1862 + $0x49] sm:$0xff]
      %v1972 = vld [vmem:[%s1862 + $0x51] sm:$0xff]
      %v1973 = vld [vmem:[%s1862 + $0x69] sm:$0xff]
      %v1974 = vld [vmem:[%s1862 + $0x71] sm:$0xff]
      %v1975 = vld [vmem:[%s1862 + $0x89] sm:$0xff]
      %v1976 = vld [vmem:[%s1862 + $0x91] sm:$0xff]
      %v1977 = vld [vmem:[%s1862 + $0xa9] sm:$0xff]
      %v1978 = vld [vmem:[%s1862 + $0xb1] sm:$0xff]
      %v1979 = vld [vmem:[%s1862 + $0xc9] sm:$0xff]
      %v1980 = vld [vmem:[%s1862 + $0xd1] sm:$0xff]
      %v1981 = vld [vmem:[%s1862 + $0xe9] sm:$0xff]
      %v1982 = vld [vmem:[%s1862 + $0xf1] sm:$0xff]
      %v1983 = vlaneseq
      %v1984 = vshrl.u32 %v1983, 7
      %v1985 = vsub.s32 2, %v1984
      %v1986 = vrot.slane %v1548, %v1985
      %v1987 = vmul.f32 %v1967, %v1986
      %v1988 = vmul.f32 %v1968, %v1986
      %v1989 = vmul.f32 %v1969, %v1986
      %v1990 = vmul.f32 %v1970, %v1986
      %v1991 = vmul.f32 %v1971, %v1986
      %v1992 = vmul.f32 %v1972, %v1986
      %v1993 = vmul.f32 %v1973, %v1986
      %v1994 = vmul.f32 %v1974, %v1986
      %v1995 = vmul.f32 %v1975, %v1986
      %v1996 = vmul.f32 %v1976, %v1986
      %v1997 = vmul.f32 %v1977, %v1986
      %v1998 = vmul.f32 %v1978, %v1986
      %v1999 = vmul.f32 %v1979, %v1986
      %v2000 = vmul.f32 %v1980, %v1986
      %v2001 = vmul.f32 %v1981, %v1986
      %v2002 = vmul.f32 %v1982, %v1986
      %v2003 = vadd.f32 %v1951, %v1987
      %v2004 = vadd.f32 %v1952, %v1988
      %v2005 = vadd.f32 %v1953, %v1989
      %v2006 = vadd.f32 %v1954, %v1990
      %v2007 = vadd.f32 %v1955, %v1991
      %v2008 = vadd.f32 %v1956, %v1992
      %v2009 = vadd.f32 %v1957, %v1993
      %v2010 = vadd.f32 %v1958, %v1994
      %v2011 = vadd.f32 %v1959, %v1995
      %v2012 = vadd.f32 %v1960, %v1996
      %v2013 = vadd.f32 %v1961, %v1997
      %v2014 = vadd.f32 %v1962, %v1998
      %v2015 = vadd.f32 %v1963, %v1999
      %v2016 = vadd.f32 %v1964, %v2000
      %v2017 = vadd.f32 %v1965, %v2001
      %v2018 = vadd.f32 %v1966, %v2002
      %v2020 = vlaneseq
      %v2021 = vshrl.u32 %v2020, 7
      %v2022 = vsub.s32 0, %v2021
      %v2023 = vrot.slane %v1549, %v2022
      %v2025 = vadd.f32 %v2003, %v2023
      %v2026 = vadd.f32 %v2004, %v2023
      %v2027 = vadd.f32 %v2005, %v2023
      %v2028 = vadd.f32 %v2006, %v2023
      %v2029 = vadd.f32 %v2007, %v2023
      %v2030 = vadd.f32 %v2008, %v2023
      %v2031 = vadd.f32 %v2009, %v2023
      %v2032 = vadd.f32 %v2010, %v2023
      %v2033 = vadd.f32 %v2011, %v2023
      %v2034 = vadd.f32 %v2012, %v2023
      %v2035 = vadd.f32 %v2013, %v2023
      %v2036 = vadd.f32 %v2014, %v2023
      %v2037 = vadd.f32 %v2015, %v2023
      %v2038 = vadd.f32 %v2016, %v2023
      %v2039 = vadd.f32 %v2017, %v2023
      %v2040 = vadd.f32 %v2018, %v2023
      %v2041 = vxor.u32 %v2025, 2147483648
      %v2042 = vxor.u32 %v2026, 2147483648
      %v2043 = vxor.u32 %v2027, 2147483648
      %v2044 = vxor.u32 %v2028, 2147483648
      %v2045 = vxor.u32 %v2029, 2147483648
      %v2046 = vxor.u32 %v2030, 2147483648
      %v2047 = vxor.u32 %v2031, 2147483648
      %v2048 = vxor.u32 %v2032, 2147483648
      %v2049 = vxor.u32 %v2033, 2147483648
      %v2050 = vxor.u32 %v2034, 2147483648
      %v2051 = vxor.u32 %v2035, 2147483648
      %v2052 = vxor.u32 %v2036, 2147483648
      %v2053 = vxor.u32 %v2037, 2147483648
      %v2054 = vxor.u32 %v2038, 2147483648
      %v2055 = vxor.u32 %v2039, 2147483648
      %v2056 = vxor.u32 %v2040, 2147483648
      %v2057 = vmul.f32 %v2041, 1.442695
      %v2058 = vpow.pop %v2057
      %v2059 = vmul.f32 %v2042, 1.442695
      %v2060 = vpow.pop %v2059
      %v2061 = vmul.f32 %v2043, 1.442695
      %v2062 = vpow.pop %v2061
      %v2063 = vmul.f32 %v2044, 1.442695
      %v2064 = vpow.pop %v2063
      %v2065 = vmul.f32 %v2045, 1.442695
      %v2066 = vpow.pop %v2065
      %v2067 = vmul.f32 %v2046, 1.442695
      %v2068 = vpow.pop %v2067
      %v2069 = vmul.f32 %v2047, 1.442695
      %v2070 = vpow.pop %v2069
      %v2071 = vmul.f32 %v2048, 1.442695
      %v2072 = vpow.pop %v2071
      %v2073 = vmul.f32 %v2049, 1.442695
      %v2074 = vpow.pop %v2073
      %v2075 = vmul.f32 %v2050, 1.442695
      %v2076 = vpow.pop %v2075
      %v2077 = vmul.f32 %v2051, 1.442695
      %v2078 = vpow.pop %v2077
      %v2079 = vmul.f32 %v2052, 1.442695
      %v2080 = vpow.pop %v2079
      %v2081 = vmul.f32 %v2053, 1.442695
      %v2082 = vpow.pop %v2081
      %v2083 = vmul.f32 %v2054, 1.442695
      %v2084 = vpow.pop %v2083
      %v2085 = vmul.f32 %v2055, 1.442695
      %v2086 = vpow.pop %v2085
      %v2087 = vmul.f32 %v2056, 1.442695
      %v2088 = vpow.pop %v2087
      %v2089 = vadd.f32 %v2058, 1.0
      %v2090 = vadd.f32 %v2060, 1.0
      %v2091 = vadd.f32 %v2062, 1.0
      %v2092 = vadd.f32 %v2064, 1.0
      %v2093 = vadd.f32 %v2066, 1.0
      %v2094 = vadd.f32 %v2068, 1.0
      %v2095 = vadd.f32 %v2070, 1.0
      %v2096 = vadd.f32 %v2072, 1.0
      %v2097 = vadd.f32 %v2074, 1.0
      %v2098 = vadd.f32 %v2076, 1.0
      %v2099 = vadd.f32 %v2078, 1.0
      %v2100 = vadd.f32 %v2080, 1.0
      %v2101 = vadd.f32 %v2082, 1.0
      %v2102 = vadd.f32 %v2084, 1.0
      %v2103 = vadd.f32 %v2086, 1.0
      %v2104 = vadd.f32 %v2088, 1.0
      %v2105 = vrcp.pop %v2089
      %v2106 = vmul.f32 1.0, %v2105
      %v2107 = vrcp.pop %v2090
      %v2108 = vmul.f32 1.0, %v2107
      %v2109 = vrcp.pop %v2091
      %v2110 = vmul.f32 1.0, %v2109
      %v2111 = vrcp.pop %v2092
      %v2112 = vmul.f32 1.0, %v2111
      %v2113 = vrcp.pop %v2093
      %v2114 = vmul.f32 1.0, %v2113
      %v2115 = vrcp.pop %v2094
      %v2116 = vmul.f32 1.0, %v2115
      %v2117 = vrcp.pop %v2095
      %v2118 = vmul.f32 1.0, %v2117
      %v2119 = vrcp.pop %v2096
      %v2120 = vmul.f32 1.0, %v2119
      %v2121 = vrcp.pop %v2097
      %v2122 = vmul.f32 1.0, %v2121
      %v2123 = vrcp.pop %v2098
      %v2124 = vmul.f32 1.0, %v2123
      %v2125 = vrcp.pop %v2099
      %v2126 = vmul.f32 1.0, %v2125
      %v2127 = vrcp.pop %v2100
      %v2128 = vmul.f32 1.0, %v2127
      %v2129 = vrcp.pop %v2101
      %v2130 = vmul.f32 1.0, %v2129
      %v2131 = vrcp.pop %v2102
      %v2132 = vmul.f32 1.0, %v2131
      %v2133 = vrcp.pop %v2103
      %v2134 = vmul.f32 1.0, %v2133
      %v2135 = vrcp.pop %v2104
      %v2136 = vmul.f32 1.0, %v2135
      %v2137 = vmul.f32 %v2025, %v2106
      %v2138 = vmul.f32 %v2026, %v2108
      %v2139 = vmul.f32 %v2027, %v2110
      %v2140 = vmul.f32 %v2028, %v2112
      %v2141 = vmul.f32 %v2029, %v2114
      %v2142 = vmul.f32 %v2030, %v2116
      %v2143 = vmul.f32 %v2031, %v2118
      %v2144 = vmul.f32 %v2032, %v2120
      %v2145 = vmul.f32 %v2033, %v2122
      %v2146 = vmul.f32 %v2034, %v2124
      %v2147 = vmul.f32 %v2035, %v2126
      %v2148 = vmul.f32 %v2036, %v2128
      %v2149 = vmul.f32 %v2037, %v2130
      %v2150 = vmul.f32 %v2038, %v2132
      %v2151 = vmul.f32 %v2039, %v2134
      %v2152 = vmul.f32 %v2040, %v2136
      %2153 = vst.msk [vmem:[#allocation3] sm:$0xff] %vm390, %v2137
      %2154 = vst.msk [vmem:[#allocation3 + $0x8] sm:$0xff] %vm390, %v2138
      %2155 = vst.msk [vmem:[#allocation3 + $0x10] sm:$0xff] %vm390, %v2139
      %2156 = vst.msk [vmem:[#allocation3 + $0x18] sm:$0xff] %vm390, %v2140
      %2157 = vst.msk [vmem:[#allocation3 + $0x20] sm:$0xff] %vm390, %v2141
      %2158 = vst.msk [vmem:[#allocation3 + $0x28] sm:$0xff] %vm390, %v2142
      %2159 = vst.msk [vmem:[#allocation3 + $0x30] sm:$0xff] %vm390, %v2143
      %2160 = vst.msk [vmem:[#allocation3 + $0x38] sm:$0xff] %vm390, %v2144
      %2161 = vst.msk [vmem:[#allocation3 + $0x40] sm:$0xff] %vm390, %v2145
      %2162 = vst.msk [vmem:[#allocation3 + $0x48] sm:$0xff] %vm390, %v2146
      %2163 = vst.msk [vmem:[#allocation3 + $0x50] sm:$0xff] %vm390, %v2147
      %2164 = vst.msk [vmem:[#allocation3 + $0x58] sm:$0xff] %vm390, %v2148
      %2165 = vst.msk [vmem:[#allocation3 + $0x60] sm:$0xff] %vm390, %v2149
      %2166 = vst.msk [vmem:[#allocation3 + $0x68] sm:$0xff] %vm390, %v2150
      %2167 = vst.msk [vmem:[#allocation3 + $0x70] sm:$0xff] %vm390, %v2151
      %2168 = vst.msk [vmem:[#allocation3 + $0x78] sm:$0xff] %vm390, %v2152
      %v2169 = vsel %vm390, %v2137, 0.0
      %v2170 = vsel %vm390, %v2138, 0.0
      %v2171 = vadd.f32 %v2169, %v2170
      %v2172 = vsel %vm390, %v2139, 0.0
      %v2173 = vadd.f32 %v2171, %v2172
      %v2174 = vsel %vm390, %v2140, 0.0
      %v2175 = vadd.f32 %v2173, %v2174
      %v2176 = vsel %vm390, %v2141, 0.0
      %v2177 = vadd.f32 %v2175, %v2176
      %v2178 = vsel %vm390, %v2142, 0.0
      %v2179 = vadd.f32 %v2177, %v2178
      %v2180 = vsel %vm390, %v2143, 0.0
      %v2181 = vadd.f32 %v2179, %v2180
      %v2182 = vsel %vm390, %v2144, 0.0
      %v2183 = vadd.f32 %v2181, %v2182
      %v2184 = vsel %vm390, %v2145, 0.0
      %v2185 = vadd.f32 %v2183, %v2184
      %v2186 = vsel %vm390, %v2146, 0.0
      %v2187 = vadd.f32 %v2185, %v2186
      %v2188 = vsel %vm390, %v2147, 0.0
      %v2189 = vadd.f32 %v2187, %v2188
      %v2190 = vsel %vm390, %v2148, 0.0
      %v2191 = vadd.f32 %v2189, %v2190
      %v2192 = vsel %vm390, %v2149, 0.0
      %v2193 = vadd.f32 %v2191, %v2192
      %v2194 = vsel %vm390, %v2150, 0.0
      %v2195 = vadd.f32 %v2193, %v2194
      %v2196 = vsel %vm390, %v2151, 0.0
      %v2197 = vadd.f32 %v2195, %v2196
      %v2198 = vsel %vm390, %v2152, 0.0
      %v2199 = vadd.f32 %v2197, %v2198
      %v2200 = vrot.slane %v2199, 4
      %v2201 = vadd.f32 %v2199, %v2200
      %v2202 = vrot.slane %v2201, 2
      %v2203 = vadd.f32 %v2201, %v2202
      %v2204 = vrot.slane %v2203, 1
      %v2205 = vadd.f32 %v2203, %v2204
      %v2206 = vadd.f32 %v2205, 0.0
      %s2207 = scalar_lea.vmem [#allocation2], 256
      %v2208 = vld [vmem:[%s2207 + $0x7] sm:$0xff]
      %v2209 = vld [vmem:[%s2207 + $0xf] sm:$0xff]
      %v2210 = vld [vmem:[%s2207 + $0x27] sm:$0xff]
      %v2211 = vld [vmem:[%s2207 + $0x2f] sm:$0xff]
      %v2212 = vld [vmem:[%s2207 + $0x47] sm:$0xff]
      %v2213 = vld [vmem:[%s2207 + $0x4f] sm:$0xff]
      %v2214 = vld [vmem:[%s2207 + $0x67] sm:$0xff]
      %v2215 = vld [vmem:[%s2207 + $0x6f] sm:$0xff]
      %v2216 = vld [vmem:[%s2207 + $0x87] sm:$0xff]
      %v2217 = vld [vmem:[%s2207 + $0x8f] sm:$0xff]
      %v2218 = vld [vmem:[%s2207 + $0xa7] sm:$0xff]
      %v2219 = vld [vmem:[%s2207 + $0xaf] sm:$0xff]
      %v2220 = vld [vmem:[%s2207 + $0xc7] sm:$0xff]
      %v2221 = vld [vmem:[%s2207 + $0xcf] sm:$0xff]
      %v2222 = vld [vmem:[%s2207 + $0xe7] sm:$0xff]
      %v2223 = vld [vmem:[%s2207 + $0xef] sm:$0xff]
      %v2224 = vmul.f32 %v2208, %v1569
      %v2225 = vmul.f32 %v2209, %v1569
      %v2226 = vmul.f32 %v2210, %v1569
      %v2227 = vmul.f32 %v2211, %v1569
      %v2228 = vmul.f32 %v2212, %v1569
      %v2229 = vmul.f32 %v2213, %v1569
      %v2230 = vmul.f32 %v2214, %v1569
      %v2231 = vmul.f32 %v2215, %v1569
      %v2232 = vmul.f32 %v2216, %v1569
      %v2233 = vmul.f32 %v2217, %v1569
      %v2234 = vmul.f32 %v2218, %v1569
      %v2235 = vmul.f32 %v2219, %v1569
      %v2236 = vmul.f32 %v2220, %v1569
      %v2237 = vmul.f32 %v2221, %v1569
      %v2238 = vmul.f32 %v2222, %v1569
      %v2239 = vmul.f32 %v2223, %v1569
      %v2240 = vadd.f32 %v2224, 0.0
      %v2241 = vadd.f32 %v2225, 0.0
      %v2242 = vadd.f32 %v2226, 0.0
      %v2243 = vadd.f32 %v2227, 0.0
      %v2244 = vadd.f32 %v2228, 0.0
      %v2245 = vadd.f32 %v2229, 0.0
      %v2246 = vadd.f32 %v2230, 0.0
      %v2247 = vadd.f32 %v2231, 0.0
      %v2248 = vadd.f32 %v2232, 0.0
      %v2249 = vadd.f32 %v2233, 0.0
      %v2250 = vadd.f32 %v2234, 0.0
      %v2251 = vadd.f32 %v2235, 0.0
      %v2252 = vadd.f32 %v2236, 0.0
      %v2253 = vadd.f32 %v2237, 0.0
      %v2254 = vadd.f32 %v2238, 0.0
      %v2255 = vadd.f32 %v2239, 0.0
      %v2256 = vld [vmem:[%s2207 + $0x8] sm:$0xff]
      %v2257 = vld [vmem:[%s2207 + $0x10] sm:$0xff]
      %v2258 = vld [vmem:[%s2207 + $0x28] sm:$0xff]
      %v2259 = vld [vmem:[%s2207 + $0x30] sm:$0xff]
      %v2260 = vld [vmem:[%s2207 + $0x48] sm:$0xff]
      %v2261 = vld [vmem:[%s2207 + $0x50] sm:$0xff]
      %v2262 = vld [vmem:[%s2207 + $0x68] sm:$0xff]
      %v2263 = vld [vmem:[%s2207 + $0x70] sm:$0xff]
      %v2264 = vld [vmem:[%s2207 + $0x88] sm:$0xff]
      %v2265 = vld [vmem:[%s2207 + $0x90] sm:$0xff]
      %v2266 = vld [vmem:[%s2207 + $0xa8] sm:$0xff]
      %v2267 = vld [vmem:[%s2207 + $0xb0] sm:$0xff]
      %v2268 = vld [vmem:[%s2207 + $0xc8] sm:$0xff]
      %v2269 = vld [vmem:[%s2207 + $0xd0] sm:$0xff]
      %v2270 = vld [vmem:[%s2207 + $0xe8] sm:$0xff]
      %v2271 = vld [vmem:[%s2207 + $0xf0] sm:$0xff]
      %v2272 = vmul.f32 %v2256, %v1621
      %v2273 = vmul.f32 %v2257, %v1621
      %v2274 = vmul.f32 %v2258, %v1621
      %v2275 = vmul.f32 %v2259, %v1621
      %v2276 = vmul.f32 %v2260, %v1621
      %v2277 = vmul.f32 %v2261, %v1621
      %v2278 = vmul.f32 %v2262, %v1621
      %v2279 = vmul.f32 %v2263, %v1621
      %v2280 = vmul.f32 %v2264, %v1621
      %v2281 = vmul.f32 %v2265, %v1621
      %v2282 = vmul.f32 %v2266, %v1621
      %v2283 = vmul.f32 %v2267, %v1621
      %v2284 = vmul.f32 %v2268, %v1621
      %v2285 = vmul.f32 %v2269, %v1621
      %v2286 = vmul.f32 %v2270, %v1621
      %v2287 = vmul.f32 %v2271, %v1621
      %v2288 = vadd.f32 %v2240, %v2272
      %v2289 = vadd.f32 %v2241, %v2273
      %v2290 = vadd.f32 %v2242, %v2274
      %v2291 = vadd.f32 %v2243, %v2275
      %v2292 = vadd.f32 %v2244, %v2276
      %v2293 = vadd.f32 %v2245, %v2277
      %v2294 = vadd.f32 %v2246, %v2278
      %v2295 = vadd.f32 %v2247, %v2279
      %v2296 = vadd.f32 %v2248, %v2280
      %v2297 = vadd.f32 %v2249, %v2281
      %v2298 = vadd.f32 %v2250, %v2282
      %v2299 = vadd.f32 %v2251, %v2283
      %v2300 = vadd.f32 %v2252, %v2284
      %v2301 = vadd.f32 %v2253, %v2285
      %v2302 = vadd.f32 %v2254, %v2286
      %v2303 = vadd.f32 %v2255, %v2287
      %v2304 = vld [vmem:[%s2207 + $0x9] sm:$0xff]
      %v2305 = vld [vmem:[%s2207 + $0x11] sm:$0xff]
      %v2306 = vld [vmem:[%s2207 + $0x29] sm:$0xff]
      %v2307 = vld [vmem:[%s2207 + $0x31] sm:$0xff]
      %v2308 = vld [vmem:[%s2207 + $0x49] sm:$0xff]
      %v2309 = vld [vmem:[%s2207 + $0x51] sm:$0xff]
      %v2310 = vld [vmem:[%s2207 + $0x69] sm:$0xff]
      %v2311 = vld [vmem:[%s2207 + $0x71] sm:$0xff]
      %v2312 = vld [vmem:[%s2207 + $0x89] sm:$0xff]
      %v2313 = vld [vmem:[%s2207 + $0x91] sm:$0xff]
      %v2314 = vld [vmem:[%s2207 + $0xa9] sm:$0xff]
      %v2315 = vld [vmem:[%s2207 + $0xb1] sm:$0xff]
      %v2316 = vld [vmem:[%s2207 + $0xc9] sm:$0xff]
      %v2317 = vld [vmem:[%s2207 + $0xd1] sm:$0xff]
      %v2318 = vld [vmem:[%s2207 + $0xe9] sm:$0xff]
      %v2319 = vld [vmem:[%s2207 + $0xf1] sm:$0xff]
      %v2320 = vmul.f32 %v2304, %v1673
      %v2321 = vmul.f32 %v2305, %v1673
      %v2322 = vmul.f32 %v2306, %v1673
      %v2323 = vmul.f32 %v2307, %v1673
      %v2324 = vmul.f32 %v2308, %v1673
      %v2325 = vmul.f32 %v2309, %v1673
      %v2326 = vmul.f32 %v2310, %v1673
      %v2327 = vmul.f32 %v2311, %v1673
      %v2328 = vmul.f32 %v2312, %v1673
      %v2329 = vmul.f32 %v2313, %v1673
      %v2330 = vmul.f32 %v2314, %v1673
      %v2331 = vmul.f32 %v2315, %v1673
      %v2332 = vmul.f32 %v2316, %v1673
      %v2333 = vmul.f32 %v2317, %v1673
      %v2334 = vmul.f32 %v2318, %v1673
      %v2335 = vmul.f32 %v2319, %v1673
      %v2336 = vadd.f32 %v2288, %v2320
      %v2337 = vadd.f32 %v2289, %v2321
      %v2338 = vadd.f32 %v2290, %v2322
      %v2339 = vadd.f32 %v2291, %v2323
      %v2340 = vadd.f32 %v2292, %v2324
      %v2341 = vadd.f32 %v2293, %v2325
      %v2342 = vadd.f32 %v2294, %v2326
      %v2343 = vadd.f32 %v2295, %v2327
      %v2344 = vadd.f32 %v2296, %v2328
      %v2345 = vadd.f32 %v2297, %v2329
      %v2346 = vadd.f32 %v2298, %v2330
      %v2347 = vadd.f32 %v2299, %v2331
      %v2348 = vadd.f32 %v2300, %v2332
      %v2349 = vadd.f32 %v2301, %v2333
      %v2350 = vadd.f32 %v2302, %v2334
      %v2351 = vadd.f32 %v2303, %v2335
      %s2352 = scalar_lea.vmem [#allocation2], 288
      %v2353 = vld [vmem:[%s2352 + $0x7] sm:$0xff]
      %v2354 = vld [vmem:[%s2352 + $0xf] sm:$0xff]
      %v2355 = vld [vmem:[%s2352 + $0x27] sm:$0xff]
      %v2356 = vld [vmem:[%s2352 + $0x2f] sm:$0xff]
      %v2357 = vld [vmem:[%s2352 + $0x47] sm:$0xff]
      %v2358 = vld [vmem:[%s2352 + $0x4f] sm:$0xff]
      %v2359 = vld [vmem:[%s2352 + $0x67] sm:$0xff]
      %v2360 = vld [vmem:[%s2352 + $0x6f] sm:$0xff]
      %v2361 = vld [vmem:[%s2352 + $0x87] sm:$0xff]
      %v2362 = vld [vmem:[%s2352 + $0x8f] sm:$0xff]
      %v2363 = vld [vmem:[%s2352 + $0xa7] sm:$0xff]
      %v2364 = vld [vmem:[%s2352 + $0xaf] sm:$0xff]
      %v2365 = vld [vmem:[%s2352 + $0xc7] sm:$0xff]
      %v2366 = vld [vmem:[%s2352 + $0xcf] sm:$0xff]
      %v2367 = vld [vmem:[%s2352 + $0xe7] sm:$0xff]
      %v2368 = vld [vmem:[%s2352 + $0xef] sm:$0xff]
      %v2369 = vmul.f32 %v2353, %v1725
      %v2370 = vmul.f32 %v2354, %v1725
      %v2371 = vmul.f32 %v2355, %v1725
      %v2372 = vmul.f32 %v2356, %v1725
      %v2373 = vmul.f32 %v2357, %v1725
      %v2374 = vmul.f32 %v2358, %v1725
      %v2375 = vmul.f32 %v2359, %v1725
      %v2376 = vmul.f32 %v2360, %v1725
      %v2377 = vmul.f32 %v2361, %v1725
      %v2378 = vmul.f32 %v2362, %v1725
      %v2379 = vmul.f32 %v2363, %v1725
      %v2380 = vmul.f32 %v2364, %v1725
      %v2381 = vmul.f32 %v2365, %v1725
      %v2382 = vmul.f32 %v2366, %v1725
      %v2383 = vmul.f32 %v2367, %v1725
      %v2384 = vmul.f32 %v2368, %v1725
      %v2385 = vadd.f32 %v2336, %v2369
      %v2386 = vadd.f32 %v2337, %v2370
      %v2387 = vadd.f32 %v2338, %v2371
      %v2388 = vadd.f32 %v2339, %v2372
      %v2389 = vadd.f32 %v2340, %v2373
      %v2390 = vadd.f32 %v2341, %v2374
      %v2391 = vadd.f32 %v2342, %v2375
      %v2392 = vadd.f32 %v2343, %v2376
      %v2393 = vadd.f32 %v2344, %v2377
      %v2394 = vadd.f32 %v2345, %v2378
      %v2395 = vadd.f32 %v2346, %v2379
      %v2396 = vadd.f32 %v2347, %v2380
      %v2397 = vadd.f32 %v2348, %v2381
      %v2398 = vadd.f32 %v2349, %v2382
      %v2399 = vadd.f32 %v2350, %v2383
      %v2400 = vadd.f32 %v2351, %v2384
      %v2401 = vld [vmem:[%s2352 + $0x8] sm:$0xff]
      %v2402 = vld [vmem:[%s2352 + $0x10] sm:$0xff]
      %v2403 = vld [vmem:[%s2352 + $0x28] sm:$0xff]
      %v2404 = vld [vmem:[%s2352 + $0x30] sm:$0xff]
      %v2405 = vld [vmem:[%s2352 + $0x48] sm:$0xff]
      %v2406 = vld [vmem:[%s2352 + $0x50] sm:$0xff]
      %v2407 = vld [vmem:[%s2352 + $0x68] sm:$0xff]
      %v2408 = vld [vmem:[%s2352 + $0x70] sm:$0xff]
      %v2409 = vld [vmem:[%s2352 + $0x88] sm:$0xff]
      %v2410 = vld [vmem:[%s2352 + $0x90] sm:$0xff]
      %v2411 = vld [vmem:[%s2352 + $0xa8] sm:$0xff]
      %v2412 = vld [vmem:[%s2352 + $0xb0] sm:$0xff]
      %v2413 = vld [vmem:[%s2352 + $0xc8] sm:$0xff]
      %v2414 = vld [vmem:[%s2352 + $0xd0] sm:$0xff]
      %v2415 = vld [vmem:[%s2352 + $0xe8] sm:$0xff]
      %v2416 = vld [vmem:[%s2352 + $0xf0] sm:$0xff]
      %v2417 = vmul.f32 %v2401, %v1777
      %v2418 = vmul.f32 %v2402, %v1777
      %v2419 = vmul.f32 %v2403, %v1777
      %v2420 = vmul.f32 %v2404, %v1777
      %v2421 = vmul.f32 %v2405, %v1777
      %v2422 = vmul.f32 %v2406, %v1777
      %v2423 = vmul.f32 %v2407, %v1777
      %v2424 = vmul.f32 %v2408, %v1777
      %v2425 = vmul.f32 %v2409, %v1777
      %v2426 = vmul.f32 %v2410, %v1777
      %v2427 = vmul.f32 %v2411, %v1777
      %v2428 = vmul.f32 %v2412, %v1777
      %v2429 = vmul.f32 %v2413, %v1777
      %v2430 = vmul.f32 %v2414, %v1777
      %v2431 = vmul.f32 %v2415, %v1777
      %v2432 = vmul.f32 %v2416, %v1777
      %v2433 = vadd.f32 %v2385, %v2417
      %v2434 = vadd.f32 %v2386, %v2418
      %v2435 = vadd.f32 %v2387, %v2419
      %v2436 = vadd.f32 %v2388, %v2420
      %v2437 = vadd.f32 %v2389, %v2421
      %v2438 = vadd.f32 %v2390, %v2422
      %v2439 = vadd.f32 %v2391, %v2423
      %v2440 = vadd.f32 %v2392, %v2424
      %v2441 = vadd.f32 %v2393, %v2425
      %v2442 = vadd.f32 %v2394, %v2426
      %v2443 = vadd.f32 %v2395, %v2427
      %v2444 = vadd.f32 %v2396, %v2428
      %v2445 = vadd.f32 %v2397, %v2429
      %v2446 = vadd.f32 %v2398, %v2430
      %v2447 = vadd.f32 %v2399, %v2431
      %v2448 = vadd.f32 %v2400, %v2432
      %v2449 = vld [vmem:[%s2352 + $0x9] sm:$0xff]
      %v2450 = vld [vmem:[%s2352 + $0x11] sm:$0xff]
      %v2451 = vld [vmem:[%s2352 + $0x29] sm:$0xff]
      %v2452 = vld [vmem:[%s2352 + $0x31] sm:$0xff]
      %v2453 = vld [vmem:[%s2352 + $0x49] sm:$0xff]
      %v2454 = vld [vmem:[%s2352 + $0x51] sm:$0xff]
      %v2455 = vld [vmem:[%s2352 + $0x69] sm:$0xff]
      %v2456 = vld [vmem:[%s2352 + $0x71] sm:$0xff]
      %v2457 = vld [vmem:[%s2352 + $0x89] sm:$0xff]
      %v2458 = vld [vmem:[%s2352 + $0x91] sm:$0xff]
      %v2459 = vld [vmem:[%s2352 + $0xa9] sm:$0xff]
      %v2460 = vld [vmem:[%s2352 + $0xb1] sm:$0xff]
      %v2461 = vld [vmem:[%s2352 + $0xc9] sm:$0xff]
      %v2462 = vld [vmem:[%s2352 + $0xd1] sm:$0xff]
      %v2463 = vld [vmem:[%s2352 + $0xe9] sm:$0xff]
      %v2464 = vld [vmem:[%s2352 + $0xf1] sm:$0xff]
      %v2465 = vmul.f32 %v2449, %v1829
      %v2466 = vmul.f32 %v2450, %v1829
      %v2467 = vmul.f32 %v2451, %v1829
      %v2468 = vmul.f32 %v2452, %v1829
      %v2469 = vmul.f32 %v2453, %v1829
      %v2470 = vmul.f32 %v2454, %v1829
      %v2471 = vmul.f32 %v2455, %v1829
      %v2472 = vmul.f32 %v2456, %v1829
      %v2473 = vmul.f32 %v2457, %v1829
      %v2474 = vmul.f32 %v2458, %v1829
      %v2475 = vmul.f32 %v2459, %v1829
      %v2476 = vmul.f32 %v2460, %v1829
      %v2477 = vmul.f32 %v2461, %v1829
      %v2478 = vmul.f32 %v2462, %v1829
      %v2479 = vmul.f32 %v2463, %v1829
      %v2480 = vmul.f32 %v2464, %v1829
      %v2481 = vadd.f32 %v2433, %v2465
      %v2482 = vadd.f32 %v2434, %v2466
      %v2483 = vadd.f32 %v2435, %v2467
      %v2484 = vadd.f32 %v2436, %v2468
      %v2485 = vadd.f32 %v2437, %v2469
      %v2486 = vadd.f32 %v2438, %v2470
      %v2487 = vadd.f32 %v2439, %v2471
      %v2488 = vadd.f32 %v2440, %v2472
      %v2489 = vadd.f32 %v2441, %v2473
      %v2490 = vadd.f32 %v2442, %v2474
      %v2491 = vadd.f32 %v2443, %v2475
      %v2492 = vadd.f32 %v2444, %v2476
      %v2493 = vadd.f32 %v2445, %v2477
      %v2494 = vadd.f32 %v2446, %v2478
      %v2495 = vadd.f32 %v2447, %v2479
      %v2496 = vadd.f32 %v2448, %v2480
      %s2497 = scalar_lea.vmem [#allocation2], 320
      %v2498 = vld [vmem:[%s2497 + $0x7] sm:$0xff]
      %v2499 = vld [vmem:[%s2497 + $0xf] sm:$0xff]
      %v2500 = vld [vmem:[%s2497 + $0x27] sm:$0xff]
      %v2501 = vld [vmem:[%s2497 + $0x2f] sm:$0xff]
      %v2502 = vld [vmem:[%s2497 + $0x47] sm:$0xff]
      %v2503 = vld [vmem:[%s2497 + $0x4f] sm:$0xff]
      %v2504 = vld [vmem:[%s2497 + $0x67] sm:$0xff]
      %v2505 = vld [vmem:[%s2497 + $0x6f] sm:$0xff]
      %v2506 = vld [vmem:[%s2497 + $0x87] sm:$0xff]
      %v2507 = vld [vmem:[%s2497 + $0x8f] sm:$0xff]
      %v2508 = vld [vmem:[%s2497 + $0xa7] sm:$0xff]
      %v2509 = vld [vmem:[%s2497 + $0xaf] sm:$0xff]
      %v2510 = vld [vmem:[%s2497 + $0xc7] sm:$0xff]
      %v2511 = vld [vmem:[%s2497 + $0xcf] sm:$0xff]
      %v2512 = vld [vmem:[%s2497 + $0xe7] sm:$0xff]
      %v2513 = vld [vmem:[%s2497 + $0xef] sm:$0xff]
      %v2514 = vmul.f32 %v2498, %v1882
      %v2515 = vmul.f32 %v2499, %v1882
      %v2516 = vmul.f32 %v2500, %v1882
      %v2517 = vmul.f32 %v2501, %v1882
      %v2518 = vmul.f32 %v2502, %v1882
      %v2519 = vmul.f32 %v2503, %v1882
      %v2520 = vmul.f32 %v2504, %v1882
      %v2521 = vmul.f32 %v2505, %v1882
      %v2522 = vmul.f32 %v2506, %v1882
      %v2523 = vmul.f32 %v2507, %v1882
      %v2524 = vmul.f32 %v2508, %v1882
      %v2525 = vmul.f32 %v2509, %v1882
      %v2526 = vmul.f32 %v2510, %v1882
      %v2527 = vmul.f32 %v2511, %v1882
      %v2528 = vmul.f32 %v2512, %v1882
      %v2529 = vmul.f32 %v2513, %v1882
      %v2530 = vadd.f32 %v2481, %v2514
      %v2531 = vadd.f32 %v2482, %v2515
      %v2532 = vadd.f32 %v2483, %v2516
      %v2533 = vadd.f32 %v2484, %v2517
      %v2534 = vadd.f32 %v2485, %v2518
      %v2535 = vadd.f32 %v2486, %v2519
      %v2536 = vadd.f32 %v2487, %v2520
      %v2537 = vadd.f32 %v2488, %v2521
      %v2538 = vadd.f32 %v2489, %v2522
      %v2539 = vadd.f32 %v2490, %v2523
      %v2540 = vadd.f32 %v2491, %v2524
      %v2541 = vadd.f32 %v2492, %v2525
      %v2542 = vadd.f32 %v2493, %v2526
      %v2543 = vadd.f32 %v2494, %v2527
      %v2544 = vadd.f32 %v2495, %v2528
      %v2545 = vadd.f32 %v2496, %v2529
      %v2546 = vld [vmem:[%s2497 + $0x8] sm:$0xff]
      %v2547 = vld [vmem:[%s2497 + $0x10] sm:$0xff]
      %v2548 = vld [vmem:[%s2497 + $0x28] sm:$0xff]
      %v2549 = vld [vmem:[%s2497 + $0x30] sm:$0xff]
      %v2550 = vld [vmem:[%s2497 + $0x48] sm:$0xff]
      %v2551 = vld [vmem:[%s2497 + $0x50] sm:$0xff]
      %v2552 = vld [vmem:[%s2497 + $0x68] sm:$0xff]
      %v2553 = vld [vmem:[%s2497 + $0x70] sm:$0xff]
      %v2554 = vld [vmem:[%s2497 + $0x88] sm:$0xff]
      %v2555 = vld [vmem:[%s2497 + $0x90] sm:$0xff]
      %v2556 = vld [vmem:[%s2497 + $0xa8] sm:$0xff]
      %v2557 = vld [vmem:[%s2497 + $0xb0] sm:$0xff]
      %v2558 = vld [vmem:[%s2497 + $0xc8] sm:$0xff]
      %v2559 = vld [vmem:[%s2497 + $0xd0] sm:$0xff]
      %v2560 = vld [vmem:[%s2497 + $0xe8] sm:$0xff]
      %v2561 = vld [vmem:[%s2497 + $0xf0] sm:$0xff]
      %v2562 = vmul.f32 %v2546, %v1934
      %v2563 = vmul.f32 %v2547, %v1934
      %v2564 = vmul.f32 %v2548, %v1934
      %v2565 = vmul.f32 %v2549, %v1934
      %v2566 = vmul.f32 %v2550, %v1934
      %v2567 = vmul.f32 %v2551, %v1934
      %v2568 = vmul.f32 %v2552, %v1934
      %v2569 = vmul.f32 %v2553, %v1934
      %v2570 = vmul.f32 %v2554, %v1934
      %v2571 = vmul.f32 %v2555, %v1934
      %v2572 = vmul.f32 %v2556, %v1934
      %v2573 = vmul.f32 %v2557, %v1934
      %v2574 = vmul.f32 %v2558, %v1934
      %v2575 = vmul.f32 %v2559, %v1934
      %v2576 = vmul.f32 %v2560, %v1934
      %v2577 = vmul.f32 %v2561, %v1934
      %v2578 = vadd.f32 %v2530, %v2562
      %v2579 = vadd.f32 %v2531, %v2563
      %v2580 = vadd.f32 %v2532, %v2564
      %v2581 = vadd.f32 %v2533, %v2565
      %v2582 = vadd.f32 %v2534, %v2566
      %v2583 = vadd.f32 %v2535, %v2567
      %v2584 = vadd.f32 %v2536, %v2568
      %v2585 = vadd.f32 %v2537, %v2569
      %v2586 = vadd.f32 %v2538, %v2570
      %v2587 = vadd.f32 %v2539, %v2571
      %v2588 = vadd.f32 %v2540, %v2572
      %v2589 = vadd.f32 %v2541, %v2573
      %v2590 = vadd.f32 %v2542, %v2574
      %v2591 = vadd.f32 %v2543, %v2575
      %v2592 = vadd.f32 %v2544, %v2576
      %v2593 = vadd.f32 %v2545, %v2577
      %v2594 = vld [vmem:[%s2497 + $0x9] sm:$0xff]
      %v2595 = vld [vmem:[%s2497 + $0x11] sm:$0xff]
      %v2596 = vld [vmem:[%s2497 + $0x29] sm:$0xff]
      %v2597 = vld [vmem:[%s2497 + $0x31] sm:$0xff]
      %v2598 = vld [vmem:[%s2497 + $0x49] sm:$0xff]
      %v2599 = vld [vmem:[%s2497 + $0x51] sm:$0xff]
      %v2600 = vld [vmem:[%s2497 + $0x69] sm:$0xff]
      %v2601 = vld [vmem:[%s2497 + $0x71] sm:$0xff]
      %v2602 = vld [vmem:[%s2497 + $0x89] sm:$0xff]
      %v2603 = vld [vmem:[%s2497 + $0x91] sm:$0xff]
      %v2604 = vld [vmem:[%s2497 + $0xa9] sm:$0xff]
      %v2605 = vld [vmem:[%s2497 + $0xb1] sm:$0xff]
      %v2606 = vld [vmem:[%s2497 + $0xc9] sm:$0xff]
      %v2607 = vld [vmem:[%s2497 + $0xd1] sm:$0xff]
      %v2608 = vld [vmem:[%s2497 + $0xe9] sm:$0xff]
      %v2609 = vld [vmem:[%s2497 + $0xf1] sm:$0xff]
      %v2610 = vmul.f32 %v2594, %v1986
      %v2611 = vmul.f32 %v2595, %v1986
      %v2612 = vmul.f32 %v2596, %v1986
      %v2613 = vmul.f32 %v2597, %v1986
      %v2614 = vmul.f32 %v2598, %v1986
      %v2615 = vmul.f32 %v2599, %v1986
      %v2616 = vmul.f32 %v2600, %v1986
      %v2617 = vmul.f32 %v2601, %v1986
      %v2618 = vmul.f32 %v2602, %v1986
      %v2619 = vmul.f32 %v2603, %v1986
      %v2620 = vmul.f32 %v2604, %v1986
      %v2621 = vmul.f32 %v2605, %v1986
      %v2622 = vmul.f32 %v2606, %v1986
      %v2623 = vmul.f32 %v2607, %v1986
      %v2624 = vmul.f32 %v2608, %v1986
      %v2625 = vmul.f32 %v2609, %v1986
      %v2626 = vadd.f32 %v2578, %v2610
      %v2627 = vadd.f32 %v2579, %v2611
      %v2628 = vadd.f32 %v2580, %v2612
      %v2629 = vadd.f32 %v2581, %v2613
      %v2630 = vadd.f32 %v2582, %v2614
      %v2631 = vadd.f32 %v2583, %v2615
      %v2632 = vadd.f32 %v2584, %v2616
      %v2633 = vadd.f32 %v2585, %v2617
      %v2634 = vadd.f32 %v2586, %v2618
      %v2635 = vadd.f32 %v2587, %v2619
      %v2636 = vadd.f32 %v2588, %v2620
      %v2637 = vadd.f32 %v2589, %v2621
      %v2638 = vadd.f32 %v2590, %v2622
      %v2639 = vadd.f32 %v2591, %v2623
      %v2640 = vadd.f32 %v2592, %v2624
      %v2641 = vadd.f32 %v2593, %v2625
      %v2642 = vadd.f32 %v2626, %v2023
      %v2643 = vadd.f32 %v2627, %v2023
      %v2644 = vadd.f32 %v2628, %v2023
      %v2645 = vadd.f32 %v2629, %v2023
      %v2646 = vadd.f32 %v2630, %v2023
      %v2647 = vadd.f32 %v2631, %v2023
      %v2648 = vadd.f32 %v2632, %v2023
      %v2649 = vadd.f32 %v2633, %v2023
      %v2650 = vadd.f32 %v2634, %v2023
      %v2651 = vadd.f32 %v2635, %v2023
      %v2652 = vadd.f32 %v2636, %v2023
      %v2653 = vadd.f32 %v2637, %v2023
      %v2654 = vadd.f32 %v2638, %v2023
      %v2655 = vadd.f32 %v2639, %v2023
      %v2656 = vadd.f32 %v2640, %v2023
      %v2657 = vadd.f32 %v2641, %v2023
      %v2658 = vxor.u32 %v2642, 2147483648
      %v2659 = vxor.u32 %v2643, 2147483648
      %v2660 = vxor.u32 %v2644, 2147483648
      %v2661 = vxor.u32 %v2645, 2147483648
      %v2662 = vxor.u32 %v2646, 2147483648
      %v2663 = vxor.u32 %v2647, 2147483648
      %v2664 = vxor.u32 %v2648, 2147483648
      %v2665 = vxor.u32 %v2649, 2147483648
      %v2666 = vxor.u32 %v2650, 2147483648
      %v2667 = vxor.u32 %v2651, 2147483648
      %v2668 = vxor.u32 %v2652, 2147483648
      %v2669 = vxor.u32 %v2653, 2147483648
      %v2670 = vxor.u32 %v2654, 2147483648
      %v2671 = vxor.u32 %v2655, 2147483648
      %v2672 = vxor.u32 %v2656, 2147483648
      %v2673 = vxor.u32 %v2657, 2147483648
      %v2674 = vmul.f32 %v2658, 1.442695
      %v2675 = vpow.pop %v2674
      %v2676 = vmul.f32 %v2659, 1.442695
      %v2677 = vpow.pop %v2676
      %v2678 = vmul.f32 %v2660, 1.442695
      %v2679 = vpow.pop %v2678
      %v2680 = vmul.f32 %v2661, 1.442695
      %v2681 = vpow.pop %v2680
      %v2682 = vmul.f32 %v2662, 1.442695
      %v2683 = vpow.pop %v2682
      %v2684 = vmul.f32 %v2663, 1.442695
      %v2685 = vpow.pop %v2684
      %v2686 = vmul.f32 %v2664, 1.442695
      %v2687 = vpow.pop %v2686
      %v2688 = vmul.f32 %v2665, 1.442695
      %v2689 = vpow.pop %v2688
      %v2690 = vmul.f32 %v2666, 1.442695
      %v2691 = vpow.pop %v2690
      %v2692 = vmul.f32 %v2667, 1.442695
      %v2693 = vpow.pop %v2692
      %v2694 = vmul.f32 %v2668, 1.442695
      %v2695 = vpow.pop %v2694
      %v2696 = vmul.f32 %v2669, 1.442695
      %v2697 = vpow.pop %v2696
      %v2698 = vmul.f32 %v2670, 1.442695
      %v2699 = vpow.pop %v2698
      %v2700 = vmul.f32 %v2671, 1.442695
      %v2701 = vpow.pop %v2700
      %v2702 = vmul.f32 %v2672, 1.442695
      %v2703 = vpow.pop %v2702
      %v2704 = vmul.f32 %v2673, 1.442695
      %v2705 = vpow.pop %v2704
      %v2706 = vadd.f32 %v2675, 1.0
      %v2707 = vadd.f32 %v2677, 1.0
      %v2708 = vadd.f32 %v2679, 1.0
      %v2709 = vadd.f32 %v2681, 1.0
      %v2710 = vadd.f32 %v2683, 1.0
      %v2711 = vadd.f32 %v2685, 1.0
      %v2712 = vadd.f32 %v2687, 1.0
      %v2713 = vadd.f32 %v2689, 1.0
      %v2714 = vadd.f32 %v2691, 1.0
      %v2715 = vadd.f32 %v2693, 1.0
      %v2716 = vadd.f32 %v2695, 1.0
      %v2717 = vadd.f32 %v2697, 1.0
      %v2718 = vadd.f32 %v2699, 1.0
      %v2719 = vadd.f32 %v2701, 1.0
      %v2720 = vadd.f32 %v2703, 1.0
      %v2721 = vadd.f32 %v2705, 1.0
      %v2722 = vrcp.pop %v2706
      %v2723 = vmul.f32 1.0, %v2722
      %v2724 = vrcp.pop %v2707
      %v2725 = vmul.f32 1.0, %v2724
      %v2726 = vrcp.pop %v2708
      %v2727 = vmul.f32 1.0, %v2726
      %v2728 = vrcp.pop %v2709
      %v2729 = vmul.f32 1.0, %v2728
      %v2730 = vrcp.pop %v2710
      %v2731 = vmul.f32 1.0, %v2730
      %v2732 = vrcp.pop %v2711
      %v2733 = vmul.f32 1.0, %v2732
      %v2734 = vrcp.pop %v2712
      %v2735 = vmul.f32 1.0, %v2734
      %v2736 = vrcp.pop %v2713
      %v2737 = vmul.f32 1.0, %v2736
      %v2738 = vrcp.pop %v2714
      %v2739 = vmul.f32 1.0, %v2738
      %v2740 = vrcp.pop %v2715
      %v2741 = vmul.f32 1.0, %v2740
      %v2742 = vrcp.pop %v2716
      %v2743 = vmul.f32 1.0, %v2742
      %v2744 = vrcp.pop %v2717
      %v2745 = vmul.f32 1.0, %v2744
      %v2746 = vrcp.pop %v2718
      %v2747 = vmul.f32 1.0, %v2746
      %v2748 = vrcp.pop %v2719
      %v2749 = vmul.f32 1.0, %v2748
      %v2750 = vrcp.pop %v2720
      %v2751 = vmul.f32 1.0, %v2750
      %v2752 = vrcp.pop %v2721
      %v2753 = vmul.f32 1.0, %v2752
      %v2754 = vmul.f32 %v2642, %v2723
      %v2755 = vmul.f32 %v2643, %v2725
      %v2756 = vmul.f32 %v2644, %v2727
      %v2757 = vmul.f32 %v2645, %v2729
      %v2758 = vmul.f32 %v2646, %v2731
      %v2759 = vmul.f32 %v2647, %v2733
      %v2760 = vmul.f32 %v2648, %v2735
      %v2761 = vmul.f32 %v2649, %v2737
      %v2762 = vmul.f32 %v2650, %v2739
      %v2763 = vmul.f32 %v2651, %v2741
      %v2764 = vmul.f32 %v2652, %v2743
      %v2765 = vmul.f32 %v2653, %v2745
      %v2766 = vmul.f32 %v2654, %v2747
      %v2767 = vmul.f32 %v2655, %v2749
      %v2768 = vmul.f32 %v2656, %v2751
      %v2769 = vmul.f32 %v2657, %v2753
      %s2770 = scalar_lea.vmem [#allocation3], 128
      %2771 = vst.msk [vmem:[%s2770] sm:$0xff] %vm390, %v2754
      %2772 = vst.msk [vmem:[%s2770 + $0x8] sm:$0xff] %vm390, %v2755
      %2773 = vst.msk [vmem:[%s2770 + $0x10] sm:$0xff] %vm390, %v2756
      %2774 = vst.msk [vmem:[%s2770 + $0x18] sm:$0xff] %vm390, %v2757
      %2775 = vst.msk [vmem:[%s2770 + $0x20] sm:$0xff] %vm390, %v2758
      %2776 = vst.msk [vmem:[%s2770 + $0x28] sm:$0xff] %vm390, %v2759
      %2777 = vst.msk [vmem:[%s2770 + $0x30] sm:$0xff] %vm390, %v2760
      %2778 = vst.msk [vmem:[%s2770 + $0x38] sm:$0xff] %vm390, %v2761
      %2779 = vst.msk [vmem:[%s2770 + $0x40] sm:$0xff] %vm390, %v2762
      %2780 = vst.msk [vmem:[%s2770 + $0x48] sm:$0xff] %vm390, %v2763
      %2781 = vst.msk [vmem:[%s2770 + $0x50] sm:$0xff] %vm390, %v2764
      %2782 = vst.msk [vmem:[%s2770 + $0x58] sm:$0xff] %vm390, %v2765
      %2783 = vst.msk [vmem:[%s2770 + $0x60] sm:$0xff] %vm390, %v2766
      %2784 = vst.msk [vmem:[%s2770 + $0x68] sm:$0xff] %vm390, %v2767
      %2785 = vst.msk [vmem:[%s2770 + $0x70] sm:$0xff] %vm390, %v2768
      %2786 = vst.msk [vmem:[%s2770 + $0x78] sm:$0xff] %vm390, %v2769
      %v2787 = vsel %vm390, %v2754, 0.0
      %v2788 = vsel %vm390, %v2755, 0.0
      %v2789 = vadd.f32 %v2787, %v2788
      %v2790 = vsel %vm390, %v2756, 0.0
      %v2791 = vadd.f32 %v2789, %v2790
      %v2792 = vsel %vm390, %v2757, 0.0
      %v2793 = vadd.f32 %v2791, %v2792
      %v2794 = vsel %vm390, %v2758, 0.0
      %v2795 = vadd.f32 %v2793, %v2794
      %v2796 = vsel %vm390, %v2759, 0.0
      %v2797 = vadd.f32 %v2795, %v2796
      %v2798 = vsel %vm390, %v2760, 0.0
      %v2799 = vadd.f32 %v2797, %v2798
      %v2800 = vsel %vm390, %v2761, 0.0
      %v2801 = vadd.f32 %v2799, %v2800
      %v2802 = vsel %vm390, %v2762, 0.0
      %v2803 = vadd.f32 %v2801, %v2802
      %v2804 = vsel %vm390, %v2763, 0.0
      %v2805 = vadd.f32 %v2803, %v2804
      %v2806 = vsel %vm390, %v2764, 0.0
      %v2807 = vadd.f32 %v2805, %v2806
      %v2808 = vsel %vm390, %v2765, 0.0
      %v2809 = vadd.f32 %v2807, %v2808
      %v2810 = vsel %vm390, %v2766, 0.0
      %v2811 = vadd.f32 %v2809, %v2810
      %v2812 = vsel %vm390, %v2767, 0.0
      %v2813 = vadd.f32 %v2811, %v2812
      %v2814 = vsel %vm390, %v2768, 0.0
      %v2815 = vadd.f32 %v2813, %v2814
      %v2816 = vsel %vm390, %v2769, 0.0
      %v2817 = vadd.f32 %v2815, %v2816
      %v2818 = vrot.slane %v2817, 4
      %v2819 = vadd.f32 %v2817, %v2818
      %v2820 = vrot.slane %v2819, 2
      %v2821 = vadd.f32 %v2819, %v2820
      %v2822 = vrot.slane %v2821, 1
      %v2823 = vadd.f32 %v2821, %v2822
      %v2824 = vadd.f32 %v2206, %v2823
      %v2825 = vmul.f32 %v2824, 0.00390625
      %v2826 = vld [vmem:[%s5] sm:$0x1]
      %v2827 = vmul.f32 %v2826, %v2825
      %v2828 = vsel %vm401, %v2827, 0.0
      %2829 = vadd.xlane.f32.xlu0 %v2828
      %v2830 = vpop.xlane.xlu0 %2829
      %v2831 = vld [vmem:[#allocation4] sm:$0x1]
      %v2832 = vadd.f32 %v2830, %v2831
      %v2833 = vxor.u32 %v2832, 2147483648
      %v2834 = vmul.f32 %v2833, 1.442695
      %v2835 = vpow.pop %v2834
      %v2836 = vadd.f32 %v2835, 1.0
      %v2837 = vrcp.pop %v2836
      %v2838 = vmul.f32 1.0, %v2837
      %v2839 = vmul.f32 %v2832, %v2838
      %v2840 = vld [vmem:[%s7] sm:$0x1]
      %2842 = vset.pattern.permute.xlu0 0
      %2843 = vperm.xlu0 %2842, %v2839
      %v2844 = vpop.permute.xlu0 %2843
      %v2846 = vmul.f32 %v2840, %v2844
      %v2847 = vadd.f32 %v2846, 0.0
      %v2848 = vld [vmem:[%s8] sm:$0x1]
      %v2849 = vadd.f32 %v2847, %v2848
      %v2850 = vxor.u32 %v2849, 2147483648
      %v2851 = vmul.f32 %v2850, 1.442695
      %v2852 = vpow.pop %v2851
      %v2853 = vadd.f32 %v2852, 1.0
      %v2854 = vrcp.pop %v2853
      %v2855 = vmul.f32 1.0, %v2854
      %v2856 = vld [vmem:[%s9] sm:$0xf]
      %v2857 = vld [vmem:[%s9 + $0x4] sm:$0xf]
      %v2858 = vld [vmem:[%s10] sm:$0x1]
      %v2859 = vld [vmem:[#allocation3] sm:$0xff]
      %v2860 = vld [vmem:[#allocation3 + $0x8] sm:$0xff]
      %v2861 = vld [vmem:[#allocation3 + $0x10] sm:$0xff]
      %v2862 = vld [vmem:[#allocation3 + $0x18] sm:$0xff]
      %v2863 = vld [vmem:[#allocation3 + $0x20] sm:$0xff]
      %v2864 = vld [vmem:[#allocation3 + $0x28] sm:$0xff]
      %v2865 = vld [vmem:[#allocation3 + $0x30] sm:$0xff]
      %v2866 = vld [vmem:[#allocation3 + $0x38] sm:$0xff]
      %v2867 = vld [vmem:[#allocation3 + $0x40] sm:$0xff]
      %v2868 = vld [vmem:[#allocation3 + $0x48] sm:$0xff]
      %v2869 = vld [vmem:[#allocation3 + $0x50] sm:$0xff]
      %v2870 = vld [vmem:[#allocation3 + $0x58] sm:$0xff]
      %v2871 = vld [vmem:[#allocation3 + $0x60] sm:$0xff]
      %v2872 = vld [vmem:[#allocation3 + $0x68] sm:$0xff]
      %v2873 = vld [vmem:[#allocation3 + $0x70] sm:$0xff]
      %v2874 = vld [vmem:[#allocation3 + $0x78] sm:$0xff]
      %v2876 = vlaneseq
      %v2877 = vshrl.u32 %v2876, 7
      %v2878 = vsub.s32 0, %v2877
      %v2879 = vrot.slane %v2855, %v2878
      %v2881 = vmul.f32 %v2859, %v2879
      %v2882 = vmul.f32 %v2860, %v2879
      %v2883 = vmul.f32 %v2861, %v2879
      %v2884 = vmul.f32 %v2862, %v2879
      %v2885 = vmul.f32 %v2863, %v2879
      %v2886 = vmul.f32 %v2864, %v2879
      %v2887 = vmul.f32 %v2865, %v2879
      %v2888 = vmul.f32 %v2866, %v2879
      %v2889 = vmul.f32 %v2867, %v2879
      %v2890 = vmul.f32 %v2868, %v2879
      %v2891 = vmul.f32 %v2869, %v2879
      %v2892 = vmul.f32 %v2870, %v2879
      %v2893 = vmul.f32 %v2871, %v2879
      %v2894 = vmul.f32 %v2872, %v2879
      %v2895 = vmul.f32 %v2873, %v2879
      %v2896 = vmul.f32 %v2874, %v2879
      %v2897 = vpack.c.bf16 %v2882, %v2881
      %v2898 = vpack.c.bf16 %v2884, %v2883
      %v2899 = vpack.c.bf16 %v2886, %v2885
      %v2900 = vpack.c.bf16 %v2888, %v2887
      %v2901 = vpack.c.bf16 %v2890, %v2889
      %v2902 = vpack.c.bf16 %v2892, %v2891
      %v2903 = vpack.c.bf16 %v2894, %v2893
      %v2904 = vpack.c.bf16 %v2896, %v2895
      %v2906 = vlaneseq
      %v2907 = vshrl.u32 %v2906, 7
      %v2908 = vsub.s32 0, %v2907
      %v2909 = vrot.slane %v2858, %v2908
      %v2913 = vunpack.c.l.b16 %v2856
      %v2914 = vunpack.c.l.b16 %v2857
      %v2915 = vpack.c.b16 %v2914, %v2913
      %v2918 = vsel %vm390, %v2897, 0
      %v2921 = vsel %vm390, %v2898, 0
      %v2924 = vsel %vm390, %v2899, 0
      %v2927 = vsel %vm390, %v2900, 0
      %v2930 = vsel %vm390, %v2901, 0
      %v2933 = vsel %vm390, %v2902, 0
      %v2936 = vsel %vm390, %v2903, 0
      %v2939 = vsel %vm390, %v2904, 0
      %2941 = vmatprep.subr.bf16.mxu0 0
      %2942 = vmatpush1.bf16.msra.mxu0 %v2915
      %2943 = vmatprep.subr.bf16.mxu0 0
      %2944 = vmatpush1.bf16.msra.mxu0 0
      %2945 = vmatprep.subr.bf16.mxu0 0
      %2946 = vmatpush1.bf16.msra.mxu0 0
      %2947 = vmatprep.subr.bf16.mxu0 0
      %2948 = vmatpush1.bf16.msra.mxu0 0
      %2949 = vmatprep.subr.bf16.mxu0 0
      %2950 = vmatpush1.bf16.msra.mxu0 0
      %2951 = vmatprep.subr.bf16.mxu0 0
      %2952 = vmatpush1.bf16.msra.mxu0 0
      %2953 = vmatprep.subr.bf16.mxu0 0
      %2954 = vmatpush1.bf16.msra.mxu0 0
      %2955 = vmatprep.subr.bf16.mxu0 0
      %2956 = vmatpush1.bf16.msra.mxu0 0
      %2957 = vmatprep.subr.bf16.mxu0 0
      %2958 = vmatpush1.bf16.msra.mxu0 0
      %2959 = vmatprep.subr.bf16.mxu0 0
      %2960 = vmatpush1.bf16.msra.mxu0 0
      %2961 = vmatprep.subr.bf16.mxu0 0
      %2962 = vmatpush1.bf16.msra.mxu0 0
      %2963 = vmatprep.subr.bf16.mxu0 0
      %2964 = vmatpush1.bf16.msra.mxu0 0
      %2965 = vmatprep.subr.bf16.mxu0 0
      %2966 = vmatpush1.bf16.msra.mxu0 0
      %2967 = vmatprep.subr.bf16.mxu0 0
      %2968 = vmatpush1.bf16.msra.mxu0 0
      %2969 = vmatprep.subr.bf16.mxu0 0
      %2970 = vmatpush1.bf16.msra.mxu0 0
      %2971 = vmatprep.subr.bf16.mxu0 0
      %2972 = vmatpush1.bf16.msra.mxu0 0
      %2973 = vmatprep.mubr.bf16.mxu0 0
      %2974 = vmatmul.mubr.bf16.gmra.mrb[0].mxu0 %v2918
      %v2975 = vpop.f32.mrb[0].mxu0
      %v2976 = vadd.f32 %v2909, %v2975
      %v2977 = vpop.f32.mrb[0].mxu0
      %v2978 = vpop.f32.mrb[0].mxu0
      %v2979 = vadd.f32 %v2909, %v2978
      %v2980 = vpop.f32.mrb[0].mxu0
      %2981 = vmatprep.mubr.bf16.mxu0 0
      %2982 = vmatmul.mubr.bf16.gmra.mrb[0].mxu0 %v2921
      %v2983 = vpop.f32.mrb[0].mxu0
      %v2984 = vadd.f32 %v2909, %v2983
      %v2985 = vpop.f32.mrb[0].mxu0
      %v2986 = vpop.f32.mrb[0].mxu0
      %v2987 = vadd.f32 %v2909, %v2986
      %v2988 = vpop.f32.mrb[0].mxu0
      %2989 = vmatprep.mubr.bf16.mxu0 0
      %2990 = vmatmul.mubr.bf16.gmra.mrb[0].mxu0 %v2924
      %v2991 = vpop.f32.mrb[0].mxu0
      %v2992 = vadd.f32 %v2909, %v2991
      %v2993 = vpop.f32.mrb[0].mxu0
      %v2994 = vpop.f32.mrb[0].mxu0
      %v2995 = vadd.f32 %v2909, %v2994
      %v2996 = vpop.f32.mrb[0].mxu0
      %2997 = vmatprep.mubr.bf16.mxu0 0
      %2998 = vmatmul.mubr.bf16.gmra.mrb[0].mxu0 %v2927
      %v2999 = vpop.f32.mrb[0].mxu0
      %v3000 = vadd.f32 %v2909, %v2999
      %v3001 = vpop.f32.mrb[0].mxu0
      %v3002 = vpop.f32.mrb[0].mxu0
      %v3003 = vadd.f32 %v2909, %v3002
      %v3004 = vpop.f32.mrb[0].mxu0
      %3005 = vmatprep.mubr.bf16.mxu0 0
      %3006 = vmatmul.mubr.bf16.gmra.mrb[0].mxu0 %v2930
      %v3007 = vpop.f32.mrb[0].mxu0
      %v3008 = vadd.f32 %v2909, %v3007
      %v3009 = vpop.f32.mrb[0].mxu0
      %v3010 = vpop.f32.mrb[0].mxu0
      %v3011 = vadd.f32 %v2909, %v3010
      %v3012 = vpop.f32.mrb[0].mxu0
      %3013 = vmatprep.mubr.bf16.mxu0 0
      %3014 = vmatmul.mubr.bf16.gmra.mrb[0].mxu0 %v2933
      %v3015 = vpop.f32.mrb[0].mxu0
      %v3016 = vadd.f32 %v2909, %v3015
      %v3017 = vpop.f32.mrb[0].mxu0
      %v3018 = vpop.f32.mrb[0].mxu0
      %v3019 = vadd.f32 %v2909, %v3018
      %v3020 = vpop.f32.mrb[0].mxu0
      %3021 = vmatprep.mubr.bf16.mxu0 0
      %3022 = vmatmul.mubr.bf16.gmra.mrb[0].mxu0 %v2936
      %v3023 = vpop.f32.mrb[0].mxu0
      %v3024 = vadd.f32 %v2909, %v3023
      %v3025 = vpop.f32.mrb[0].mxu0
      %v3026 = vpop.f32.mrb[0].mxu0
      %v3027 = vadd.f32 %v2909, %v3026
      %v3028 = vpop.f32.mrb[0].mxu0
      %3029 = vmatprep.mubr.bf16.mxu0 0
      %3030 = vmatmul.mubr.bf16.gmra.mrb[0].mxu0 %v2939
      %v3031 = vpop.f32.mrb[0].mxu0
      %v3032 = vadd.f32 %v2909, %v3031
      %v3033 = vpop.f32.mrb[0].mxu0
      %v3034 = vpop.f32.mrb[0].mxu0
      %v3035 = vadd.f32 %v2909, %v3034
      %v3036 = vpop.f32.mrb[0].mxu0
      %3037 = vdwg.mxu0
      %v3038 = vadd.f32 %v2976, %v434
      %v3039 = vadd.f32 %v2979, %v435
      %v3040 = vadd.f32 %v2984, %v436
      %v3041 = vadd.f32 %v2987, %v437
      %v3042 = vadd.f32 %v2992, %v438
      %v3043 = vadd.f32 %v2995, %v439
      %v3044 = vadd.f32 %v3000, %v440
      %v3045 = vadd.f32 %v3003, %v441
      %v3046 = vadd.f32 %v3008, %v442
      %v3047 = vadd.f32 %v3011, %v443
      %v3048 = vadd.f32 %v3016, %v444
      %v3049 = vadd.f32 %v3019, %v445
      %v3050 = vadd.f32 %v3024, %v446
      %v3051 = vadd.f32 %v3027, %v447
      %v3052 = vadd.f32 %v3032, %v448
      %v3053 = vadd.f32 %v3035, %v449
      %vm3054 = vcmask 31744
      %3055 = vst.msk [vmem:[%s388] sm:$0xff] %vm3054, %v3038
      %3056 = vst.msk [vmem:[%s388 + $0x8] sm:$0xff] %vm3054, %v3039
      %3057 = vst.msk [vmem:[%s388 + $0x10] sm:$0xff] %vm3054, %v3040
      %3058 = vst.msk [vmem:[%s388 + $0x18] sm:$0xff] %vm3054, %v3041
      %3059 = vst.msk [vmem:[%s388 + $0x20] sm:$0xff] %vm3054, %v3042
      %3060 = vst.msk [vmem:[%s388 + $0x28] sm:$0xff] %vm3054, %v3043
      %3061 = vst.msk [vmem:[%s388 + $0x30] sm:$0xff] %vm3054, %v3044
      %3062 = vst.msk [vmem:[%s388 + $0x38] sm:$0xff] %vm3054, %v3045
      %3063 = vst.msk [vmem:[%s388 + $0x40] sm:$0xff] %vm3054, %v3046
      %3064 = vst.msk [vmem:[%s388 + $0x48] sm:$0xff] %vm3054, %v3047
      %3065 = vst.msk [vmem:[%s388 + $0x50] sm:$0xff] %vm3054, %v3048
      %3066 = vst.msk [vmem:[%s388 + $0x58] sm:$0xff] %vm3054, %v3049
      %3067 = vst.msk [vmem:[%s388 + $0x60] sm:$0xff] %vm3054, %v3050
      %3068 = vst.msk [vmem:[%s388 + $0x68] sm:$0xff] %vm3054, %v3051
      %3069 = vst.msk [vmem:[%s388 + $0x70] sm:$0xff] %vm3054, %v3052
      %3070 = vst.msk [vmem:[%s388 + $0x78] sm:$0xff] %vm3054, %v3053
      %v3071 = vld [vmem:[%s2770] sm:$0xff]
      %v3072 = vld [vmem:[%s2770 + $0x8] sm:$0xff]
      %v3073 = vld [vmem:[%s2770 + $0x10] sm:$0xff]
      %v3074 = vld [vmem:[%s2770 + $0x18] sm:$0xff]
      %v3075 = vld [vmem:[%s2770 + $0x20] sm:$0xff]
      %v3076 = vld [vmem:[%s2770 + $0x28] sm:$0xff]
      %v3077 = vld [vmem:[%s2770 + $0x30] sm:$0xff]
      %v3078 = vld [vmem:[%s2770 + $0x38] sm:$0xff]
      %v3079 = vld [vmem:[%s2770 + $0x40] sm:$0xff]
      %v3080 = vld [vmem:[%s2770 + $0x48] sm:$0xff]
      %v3081 = vld [vmem:[%s2770 + $0x50] sm:$0xff]
      %v3082 = vld [vmem:[%s2770 + $0x58] sm:$0xff]
      %v3083 = vld [vmem:[%s2770 + $0x60] sm:$0xff]
      %v3084 = vld [vmem:[%s2770 + $0x68] sm:$0xff]
      %v3085 = vld [vmem:[%s2770 + $0x70] sm:$0xff]
      %v3086 = vld [vmem:[%s2770 + $0x78] sm:$0xff]
      %v3087 = vmul.f32 %v3071, %v2879
      %v3088 = vmul.f32 %v3072, %v2879
      %v3089 = vmul.f32 %v3073, %v2879
      %v3090 = vmul.f32 %v3074, %v2879
      %v3091 = vmul.f32 %v3075, %v2879
      %v3092 = vmul.f32 %v3076, %v2879
      %v3093 = vmul.f32 %v3077, %v2879
      %v3094 = vmul.f32 %v3078, %v2879
      %v3095 = vmul.f32 %v3079, %v2879
      %v3096 = vmul.f32 %v3080, %v2879
      %v3097 = vmul.f32 %v3081, %v2879
      %v3098 = vmul.f32 %v3082, %v2879
      %v3099 = vmul.f32 %v3083, %v2879
      %v3100 = vmul.f32 %v3084, %v2879
      %v3101 = vmul.f32 %v3085, %v2879
      %v3102 = vmul.f32 %v3086, %v2879
      %v3103 = vpack.c.bf16 %v3088, %v3087
      %v3104 = vpack.c.bf16 %v3090, %v3089
      %v3105 = vpack.c.bf16 %v3092, %v3091
      %v3106 = vpack.c.bf16 %v3094, %v3093
      %v3107 = vpack.c.bf16 %v3096, %v3095
      %v3108 = vpack.c.bf16 %v3098, %v3097
      %v3109 = vpack.c.bf16 %v3100, %v3099
      %v3110 = vpack.c.bf16 %v3102, %v3101
      %v3112 = vsel %vm390, %v3103, 0
      %v3115 = vsel %vm390, %v3104, 0
      %v3118 = vsel %vm390, %v3105, 0
      %v3121 = vsel %vm390, %v3106, 0
      %v3124 = vsel %vm390, %v3107, 0
      %v3127 = vsel %vm390, %v3108, 0
      %v3130 = vsel %vm390, %v3109, 0
      %v3133 = vsel %vm390, %v3110, 0
      %3135 = vmatprep.subr.bf16.mxu0 0
      %3136 = vmatpush1.bf16.msra.mxu0 %v2915
      %3137 = vmatprep.subr.bf16.mxu0 0
      %3138 = vmatpush1.bf16.msra.mxu0 0
      %3139 = vmatprep.subr.bf16.mxu0 0
      %3140 = vmatpush1.bf16.msra.mxu0 0
      %3141 = vmatprep.subr.bf16.mxu0 0
      %3142 = vmatpush1.bf16.msra.mxu0 0
      %3143 = vmatprep.subr.bf16.mxu0 0
      %3144 = vmatpush1.bf16.msra.mxu0 0
      %3145 = vmatprep.subr.bf16.mxu0 0
      %3146 = vmatpush1.bf16.msra.mxu0 0
      %3147 = vmatprep.subr.bf16.mxu0 0
      %3148 = vmatpush1.bf16.msra.mxu0 0
      %3149 = vmatprep.subr.bf16.mxu0 0
      %3150 = vmatpush1.bf16.msra.mxu0 0
      %3151 = vmatprep.subr.bf16.mxu0 0
      %3152 = vmatpush1.bf16.msra.mxu0 0
      %3153 = vmatprep.subr.bf16.mxu0 0
      %3154 = vmatpush1.bf16.msra.mxu0 0
      %3155 = vmatprep.subr.bf16.mxu0 0
      %3156 = vmatpush1.bf16.msra.mxu0 0
      %3157 = vmatprep.subr.bf16.mxu0 0
      %3158 = vmatpush1.bf16.msra.mxu0 0
      %3159 = vmatprep.subr.bf16.mxu0 0
      %3160 = vmatpush1.bf16.msra.mxu0 0
      %3161 = vmatprep.subr.bf16.mxu0 0
      %3162 = vmatpush1.bf16.msra.mxu0 0
      %3163 = vmatprep.subr.bf16.mxu0 0
      %3164 = vmatpush1.bf16.msra.mxu0 0
      %3165 = vmatprep.subr.bf16.mxu0 0
      %3166 = vmatpush1.bf16.msra.mxu0 0
      %3167 = vmatprep.mubr.bf16.mxu0 0
      %3168 = vmatmul.mubr.bf16.gmra.mrb[0].mxu0 %v3112
      %v3169 = vpop.f32.mrb[0].mxu0
      %v3170 = vadd.f32 %v2909, %v3169
      %v3171 = vpop.f32.mrb[0].mxu0
      %v3172 = vpop.f32.mrb[0].mxu0
      %v3173 = vadd.f32 %v2909, %v3172
      %v3174 = vpop.f32.mrb[0].mxu0
      %3175 = vmatprep.mubr.bf16.mxu0 0
      %3176 = vmatmul.mubr.bf16.gmra.mrb[0].mxu0 %v3115
      %v3177 = vpop.f32.mrb[0].mxu0
      %v3178 = vadd.f32 %v2909, %v3177
      %v3179 = vpop.f32.mrb[0].mxu0
      %v3180 = vpop.f32.mrb[0].mxu0
      %v3181 = vadd.f32 %v2909, %v3180
      %v3182 = vpop.f32.mrb[0].mxu0
      %3183 = vmatprep.mubr.bf16.mxu0 0
      %3184 = vmatmul.mubr.bf16.gmra.mrb[0].mxu0 %v3118
      %v3185 = vpop.f32.mrb[0].mxu0
      %v3186 = vadd.f32 %v2909, %v3185
      %v3187 = vpop.f32.mrb[0].mxu0
      %v3188 = vpop.f32.mrb[0].mxu0
      %v3189 = vadd.f32 %v2909, %v3188
      %v3190 = vpop.f32.mrb[0].mxu0
      %3191 = vmatprep.mubr.bf16.mxu0 0
      %3192 = vmatmul.mubr.bf16.gmra.mrb[0].mxu0 %v3121
      %v3193 = vpop.f32.mrb[0].mxu0
      %v3194 = vadd.f32 %v2909, %v3193
      %v3195 = vpop.f32.mrb[0].mxu0
      %v3196 = vpop.f32.mrb[0].mxu0
      %v3197 = vadd.f32 %v2909, %v3196
      %v3198 = vpop.f32.mrb[0].mxu0
      %3199 = vmatprep.mubr.bf16.mxu0 0
      %3200 = vmatmul.mubr.bf16.gmra.mrb[0].mxu0 %v3124
      %v3201 = vpop.f32.mrb[0].mxu0
      %v3202 = vadd.f32 %v2909, %v3201
      %v3203 = vpop.f32.mrb[0].mxu0
      %v3204 = vpop.f32.mrb[0].mxu0
      %v3205 = vadd.f32 %v2909, %v3204
      %v3206 = vpop.f32.mrb[0].mxu0
      %3207 = vmatprep.mubr.bf16.mxu0 0
      %3208 = vmatmul.mubr.bf16.gmra.mrb[0].mxu0 %v3127
      %v3209 = vpop.f32.mrb[0].mxu0
      %v3210 = vadd.f32 %v2909, %v3209
      %v3211 = vpop.f32.mrb[0].mxu0
      %v3212 = vpop.f32.mrb[0].mxu0
      %v3213 = vadd.f32 %v2909, %v3212
      %v3214 = vpop.f32.mrb[0].mxu0
      %3215 = vmatprep.mubr.bf16.mxu0 0
      %3216 = vmatmul.mubr.bf16.gmra.mrb[0].mxu0 %v3130
      %v3217 = vpop.f32.mrb[0].mxu0
      %v3218 = vadd.f32 %v2909, %v3217
      %v3219 = vpop.f32.mrb[0].mxu0
      %v3220 = vpop.f32.mrb[0].mxu0
      %v3221 = vadd.f32 %v2909, %v3220
      %v3222 = vpop.f32.mrb[0].mxu0
      %3223 = vmatprep.mubr.bf16.mxu0 0
      %3224 = vmatmul.mubr.bf16.gmra.mrb[0].mxu0 %v3133
      %v3225 = vpop.f32.mrb[0].mxu0
      %v3226 = vadd.f32 %v2909, %v3225
      %v3227 = vpop.f32.mrb[0].mxu0
      %v3228 = vpop.f32.mrb[0].mxu0
      %v3229 = vadd.f32 %v2909, %v3228
      %v3230 = vpop.f32.mrb[0].mxu0
      %3231 = vdwg.mxu0
      %v3232 = vadd.f32 %v3170, %v450
      %v3233 = vadd.f32 %v3173, %v451
      %v3234 = vadd.f32 %v3178, %v452
      %v3235 = vadd.f32 %v3181, %v453
      %v3236 = vadd.f32 %v3186, %v454
      %v3237 = vadd.f32 %v3189, %v455
      %v3238 = vadd.f32 %v3194, %v456
      %v3239 = vadd.f32 %v3197, %v457
      %v3240 = vadd.f32 %v3202, %v458
      %v3241 = vadd.f32 %v3205, %v459
      %v3242 = vadd.f32 %v3210, %v460
      %v3243 = vadd.f32 %v3213, %v461
      %v3244 = vadd.f32 %v3218, %v462
      %v3245 = vadd.f32 %v3221, %v463
      %v3246 = vadd.f32 %v3226, %v464
      %v3247 = vadd.f32 %v3229, %v465
      %s3248 = scalar_lea.vmem %s388, 128
      %3249 = vst.msk [vmem:[%s3248] sm:$0xff] %vm3054, %v3232
      %3250 = vst.msk [vmem:[%s3248 + $0x8] sm:$0xff] %vm3054, %v3233
      %3251 = vst.msk [vmem:[%s3248 + $0x10] sm:$0xff] %vm3054, %v3234
      %3252 = vst.msk [vmem:[%s3248 + $0x18] sm:$0xff] %vm3054, %v3235
      %3253 = vst.msk [vmem:[%s3248 + $0x20] sm:$0xff] %vm3054, %v3236
      %3254 = vst.msk [vmem:[%s3248 + $0x28] sm:$0xff] %vm3054, %v3237
      %3255 = vst.msk [vmem:[%s3248 + $0x30] sm:$0xff] %vm3054, %v3238
      %3256 = vst.msk [vmem:[%s3248 + $0x38] sm:$0xff] %vm3054, %v3239
      %3257 = vst.msk [vmem:[%s3248 + $0x40] sm:$0xff] %vm3054, %v3240
      %3258 = vst.msk [vmem:[%s3248 + $0x48] sm:$0xff] %vm3054, %v3241
      %3259 = vst.msk [vmem:[%s3248 + $0x50] sm:$0xff] %vm3054, %v3242
      %3260 = vst.msk [vmem:[%s3248 + $0x58] sm:$0xff] %vm3054, %v3243
      %3261 = vst.msk [vmem:[%s3248 + $0x60] sm:$0xff] %vm3054, %v3244
      %3262 = vst.msk [vmem:[%s3248 + $0x68] sm:$0xff] %vm3054, %v3245
      %3263 = vst.msk [vmem:[%s3248 + $0x70] sm:$0xff] %vm3054, %v3246
      %3264 = vst.msk [vmem:[%s3248 + $0x78] sm:$0xff] %vm3054, %v3247
      %p3265 = scmp.lt.s32.totalorder %s24, 1
      %s3266 = scalar_select %p3265, %s24, 1
      %s3267 = smul.addr %s3266, 32
      %s3268 = smul.addr %s3267, 8
      %s3269 = scalar_lea.vmem %s11, %s3268
      // Predicated region
      $region65: #{tpu_custom_call.1} parent=63 // pred_check
        %p3270 = pneg %p278
      $region66: #{tpu_custom_call.1} parent=63 // pred_check_branch
        %3272 = sbr.rel (%p3270) target = $region68
      $region67: #{tpu_custom_call.1} parent=63 // pred_region
        _
      $region68: #{tpu_custom_call.1} parent=63 // pred_fallthru
        _
    $region64: #{tpu_custom_call.1} parent=5 // pred_fallthru
      _
    %p3273 = scmp.le.s32.totalorder 2, %s19
    // Predicated region
    $region69: #{tpu_custom_call.1} parent=5 // pred_check
      %p3274 = pneg %p3273
    $region70: #{tpu_custom_call.1} parent=5 // pred_check_branch
      %3276 = sbr.rel (%p3274) target = $region72
    $region71: #{tpu_custom_call.1} parent=5 // pred_region
      %s3277 = ssub.s32 %s19, 2
      // Predicated region
      $region73: #{tpu_custom_call.1} parent=71 // pred_check
        %p3278 = pneg %p284
      $region74: #{tpu_custom_call.1} parent=71 // pred_check_branch
        %3280 = sbr.rel (%p3278) target = $region76
      $region75: #{tpu_custom_call.1} parent=71 // pred_region
        %p3281 = scmp.lt.s32.totalorder %s25, 1
        %s3282 = scalar_select %p3281, %s25, 1
        %s3283 = smul.addr %s3282, 32
        %s3284 = smul.addr %s3283, 8
        %s3285 = scalar_lea.vmem %s11, %s3284
      $region76: #{tpu_custom_call.1} parent=71 // pred_fallthru
        _
    $region72: #{tpu_custom_call.1} parent=5 // pred_fallthru
      _
  $region6: #{tpu_custom_call.1} parent=0 // loop_footer
    %s23 = sadd.s32 1, %s19
  $region7: #{tpu_custom_call.1} parent=0 // loop_footer_branch
    %18 = sbr.rel target = $region3
  $region8: #{tpu_custom_call.1} parent=0 // loop_exit
    _

</llo_original>
